<compile_context>
chip_gen: v5e
topology: v5e:2x2
jax: 0.10.0
libtpu: 0.0.40
codegen_flags: <defaults>
</compile_context>

<pallas_src>
import jax
import jax.numpy as jnp
from jax.experimental import pallas as pl
from jax.experimental.pallas import tpu as pltpu

D_HIDDEN = 1024   # pooler / RGCN dim (hardcoded 1024 in the module)
D_CAT = 2048      # classifier input dim (hardcoded 2048 in the module)
EMB = 256         # synthetic token-embedding dim
VOCAB = 64


def _round_up16(n):
    # bf16 packs 16 sublanes per vreg -> round node/row pads to 16.
    return max(16, -(-n // 16) * 16)


# ----------------------------------------------------------------------------
# Single fused kernel: encoder-pooler + RGCNConv(1024,1024,2) + both heads.
#
# grid = (D_HIDDEN // tn,) over output-column tiles of the RGCN GEMM
# ("arbitrary": sequential accumulation on one core).  Step 0 prologue (once):
#   whole   = tanh(pooled @ Wp + bp)                      (all nodes)
#   xcat    = [whole | A0@whole | A1@whole]               (bf16, n_pad x 3D)
#   xcat_g  = sel @ xcat   (one-hot row gather of classified nodes, exact)
#   logits  = whole_g @ Wpack_whole + b_pack              (whole half + bias)
# Every step j:
#   ge_j    = xcat_g @ Wcat[:, j*tn:(j+1)*tn] + b_conv[j*tn:(j+1)*tn]
#   logits += bf16(ge_j) @ Wpack_ge[j*tn:(j+1)*tn]
# Last step: per-head log_softmax, emit lane-dense (m_pad, 128) slab.
# ----------------------------------------------------------------------------
def _fused_kernel(pooled_ref, wp_ref, bp_ref, a0_ref, a1_ref, sel_ref,
                  wcat_ref, bconv_ref, wpk_ge_ref, wpk_wh_ref, bpack_ref,
                  o_ref, xcatg_sc, logits_sc):
    j = pl.program_id(0)

    @pl.when(j == 0)
    def _prologue():
        # pooler: whole = tanh(pooled @ Wp + bp)
        whole = jnp.tanh(
            jnp.dot(pooled_ref[...], wp_ref[...],
                    preferred_element_type=jnp.float32) + bp_ref[...])
        whole_bf = whole.astype(jnp.bfloat16)
        # per-relation mean aggregation (bf16 adjacency, f32 accumulate)
        xa0 = jnp.dot(a0_ref[...], whole_bf, preferred_element_type=jnp.float32)
        xa1 = jnp.dot(a1_ref[...], whole_bf, preferred_element_type=jnp.float32)
        xcat = jnp.concatenate(
            [whole_bf, xa0.astype(jnp.bfloat16), xa1.astype(jnp.bfloat16)],
            axis=1)
        # one-hot row gather of classified nodes (exact select via MXU)
        xg = jnp.dot(sel_ref[...], xcat,
                     preferred_element_type=jnp.float32).astype(jnp.bfloat16)
        xcatg_sc[...] = xg
        # classifier: `whole`-feature half + packed bias (done once)
        whole_g = xg[:, 0:D_HIDDEN]
        logits_sc[...] = (
            jnp.dot(whole_g, wpk_wh_ref[...],
                    preferred_element_type=jnp.float32) + bpack_ref[...])

    # per-tile RGCN GEMM (K = 3*D) + classifier accumulation
    ge_tile = (jnp.dot(xcatg_sc[...], wcat_ref[...],
                       preferred_element_type=jnp.float32) + bconv_ref[...])
    logits_sc[...] += jnp.dot(ge_tile.astype(jnp.bfloat16), wpk_ge_ref[...],
                              preferred_element_type=jnp.float32)

    @pl.when(j == pl.num_programs(0) - 1)
    def _epilogue():
        lg = logits_sc[...]

        def log_softmax1(l0, l1):
            m = jnp.maximum(l0, l1)
            return l1 - (m + jnp.log(jnp.exp(l0 - m) + jnp.exp(l1 - m)))

        lp = log_softmax1(lg[:, 0:1], lg[:, 1:2])    # passage head, class 1
        lgr = log_softmax1(lg[:, 2:3], lg[:, 3:4])   # graph head, class 1
        lane = jax.lax.broadcasted_iota(jnp.int32, o_ref.shape, 1)
        o_ref[...] = jnp.where(lane == 0, lp, jnp.where(lane == 1, lgr, 0.0))


def fused_forward_pallas(pooled_bf16, a0_bf16, a1_bf16, sel_bf16, kp, *, tn=256):
    n_pad = pooled_bf16.shape[0]
    m_pad = sel_bf16.shape[0]
    d = D_HIDDEN
    return pl.pallas_call(
        _fused_kernel,
        out_shape=jax.ShapeDtypeStruct((m_pad, 128), jnp.float32),
        grid_spec=pltpu.PrefetchScalarGridSpec(
            num_scalar_prefetch=0,
            grid=(d // tn,),
            in_specs=[
                pl.BlockSpec((n_pad, EMB), lambda j: (0, 0)),     # pooled (bf16)
                pl.BlockSpec((EMB, d), lambda j: (0, 0)),         # W_pool (bf16)
                pl.BlockSpec((1, d), lambda j: (0, 0)),           # b_pool (f32)
                pl.BlockSpec((n_pad, n_pad), lambda j: (0, 0)),   # A0 (bf16)
                pl.BlockSpec((n_pad, n_pad), lambda j: (0, 0)),   # A1 (bf16)
                pl.BlockSpec((m_pad, n_pad), lambda j: (0, 0)),   # sel one-hot (bf16)
                pl.BlockSpec((3 * d, tn), lambda j: (0, j)),      # [Wroot;W0;W1] tile (bf16)
                pl.BlockSpec((1, tn), lambda j: (0, j)),          # b_conv tile (f32)
                pl.BlockSpec((tn, 8), lambda j: (j, 0)),          # Wpack_ge tile (bf16)
                pl.BlockSpec((d, 8), lambda j: (0, 0)),           # Wpack_whole (bf16)
                pl.BlockSpec((1, 8), lambda j: (0, 0)),           # b_pack (f32)
            ],
            out_specs=pl.BlockSpec((m_pad, 128), lambda j: (0, 0)),
            scratch_shapes=[pltpu.VMEM((m_pad, 3 * d), jnp.bfloat16),  # xcat_g
                            pltpu.VMEM((m_pad, 8), jnp.float32)],      # logits acc
        ),
        compiler_params=pltpu.CompilerParams(
            dimension_semantics=("arbitrary",),
            vmem_limit_bytes=32 * 1024 * 1024),
    )(pooled_bf16, kp['w_pool'], kp['b_pool'], a0_bf16, a1_bf16, sel_bf16,
      kp['w_cat'], kp['b_conv'], kp['w_pack_ge'], kp['w_pack_wh'], kp['b_pack'])


# ----------------------------------------------------------------------------
# Plain-JAX glue
# ----------------------------------------------------------------------------
def build_rel_adjacency(edge_index, edge_type, n_pad, rel):
    """Mean-normalized adjacency for one relation (PyG RGCNConv aggr='mean')."""
    # TODO(synk): at production graph sizes replace this dense O(N^2) build with
    # a scalar-prefetched CSR/edge-list gather + segment-sum inside the kernel
    # (the dense resident adjacency hits v7x's 64 MiB VMEM around N ~ 2k).
    src, dst = edge_index[0], edge_index[1]
    w = (edge_type == rel).astype(jnp.float32)
    a = jnp.zeros((n_pad, n_pad), jnp.float32).at[dst, src].add(w)
    deg = a.sum(axis=1, keepdims=True)
    return a / jnp.maximum(deg, 1.0)


def init_params(key):
    ks = jax.random.split(key, 10)
    p = {}
    p['emb'] = jax.random.normal(ks[0], (VOCAB, EMB), jnp.float32) * 0.02
    p['w_pool'] = jax.random.normal(ks[1], (EMB, D_HIDDEN), jnp.float32) * (EMB ** -0.5)
    p['b_pool'] = jnp.zeros((1, D_HIDDEN), jnp.float32)
    # RGCNConv(1024, 1024, 2): per-relation weights, root weight, bias
    p['w_rel'] = jax.random.normal(ks[2], (2, D_HIDDEN, D_HIDDEN), jnp.float32) * (D_HIDDEN ** -0.5)
    p['w_root'] = jax.random.normal(ks[3], (D_HIDDEN, D_HIDDEN), jnp.float32) * (D_HIDDEN ** -0.5)
    p['b_conv'] = jax.random.normal(ks[4], (1, D_HIDDEN), jnp.float32) * 0.01
    # nn.Linear(2048, 2), stored transposed as (in, out)
    p['w_pass'] = jax.random.normal(ks[5], (D_CAT, 2), jnp.float32) * (D_CAT ** -0.5)
    p['b_pass'] = jax.random.normal(ks[6], (2,), jnp.float32) * 0.01
    p['w_graph'] = jax.random.normal(ks[7], (D_CAT, 2), jnp.float32) * (D_CAT ** -0.5)
    p['b_graph'] = jax.random.normal(ks[8], (2,), jnp.float32) * 0.01
    return p


def pack_kernel_params(params):
    """Parameter-only packing/casting, done ONCE off the hot path."""
    d = D_HIDDEN
    w_cat = jnp.concatenate(
        [params['w_root'], params['w_rel'][0], params['w_rel'][1]], axis=0)
    # packed heads: lanes 0-1 = passage classifier, lanes 2-3 = graph classifier;
    # rows split between the graph_enhance half and the whole half of feats.
    w_pack_ge = jnp.zeros((d, 8), jnp.float32)
    w_pack_ge = (w_pack_ge.at[:, 0:2].set(params['w_pass'][:d])
                           .at[:, 2:4].set(params['w_graph'][:d]))
    w_pack_wh = jnp.zeros((d, 8), jnp.float32)
    w_pack_wh = (w_pack_wh.at[:, 0:2].set(params['w_pass'][d:])
                           .at[:, 2:4].set(params['w_graph'][d:]))
    b_pack = jnp.zeros((1, 8), jnp.float32)
    b_pack = b_pack.at[0, 0:2].set(params['b_pass']).at[0, 2:4].set(params['b_graph'])
    return {
        'w_pool': params['w_pool'].astype(jnp.bfloat16),
        'b_pool': params['b_pool'],
        'w_cat': w_cat.astype(jnp.bfloat16),
        'b_conv': params['b_conv'],
        'w_pack_ge': w_pack_ge.astype(jnp.bfloat16),
        'w_pack_wh': w_pack_wh.astype(jnp.bfloat16),
        'b_pack': b_pack,
    }


def two_level_forward(params, kparams, passages, subgraph_id_group,
                      passage_id_group, now_edge, now_edge_type):
    input_ids = passages['input_ids']
    attention_mask = passages['attention_mask']
    n = input_ids.shape[0]
    n_pad = _round_up16(n)

    # --- encode(): synthetic stand-in for the external BERT EncoderWrapper ---
    # TODO(synk): the real pretrained transformer encoder is external to this
    # module; a deterministic embedding + masked mean pool is used (the pooler
    # linear + tanh runs inside the fused kernel).
    tok = params['emb'][input_ids]                               # (N, S, E)
    mask = attention_mask[..., None].astype(jnp.float32)
    pooled = (tok * mask).sum(axis=1) / jnp.maximum(mask.sum(axis=1), 1.0)
    pooled = jnp.pad(pooled, ((0, n_pad - n), (0, 0))).astype(jnp.bfloat16)

    # mean-normalized per-relation adjacencies, bf16 (values <= 1)
    a0 = build_rel_adjacency(now_edge, now_edge_type, n_pad, 0).astype(jnp.bfloat16)
    a1 = build_rel_adjacency(now_edge, now_edge_type, n_pad, 1).astype(jnp.bfloat16)

    # one-hot row-selection matrix for the classified nodes (exact gather on MXU)
    ids_all = jnp.concatenate([passage_id_group, subgraph_id_group])
    m = ids_all.shape[0]
    m_pad = _round_up16(m)
    sel = jax.nn.one_hot(ids_all, n_pad, dtype=jnp.float32)
    sel = jnp.pad(sel, ((0, m_pad - m), (0, 0))).astype(jnp.bfloat16)
    # (padded rows of `whole` = tanh(b_pool) are unreachable: A has zero columns
    #  there and `sel` only selects rows < n; padded sel rows are all-zero.)

    scores = fused_forward_pallas(pooled, a0, a1, sel, kparams)

    n_pass = passage_id_group.shape[0]
    passage_scores = scores[:n_pass, 0]
    subgraph_scores = scores[n_pass:m, 1]
    return passage_scores, subgraph_scores


# Pure-JAX reference (f32, HIGHEST precision) for a correctness spot-check.
def reference_forward(params, passages, subgraph_id_group, passage_id_group,
                      now_edge, now_edge_type):
    hp = jax.lax.Precision.HIGHEST
    input_ids = passages['input_ids']
    attention_mask = passages['attention_mask']
    n = input_ids.shape[0]
    tok = params['emb'][input_ids]
    mask = attention_mask[..., None].astype(jnp.float32)
    pooled = (tok * mask).sum(axis=1) / jnp.maximum(mask.sum(axis=1), 1.0)
    whole = jnp.tanh(jnp.dot(pooled, params['w_pool'], precision=hp) + params['b_pool'])

    a0 = build_rel_adjacency(now_edge, now_edge_type, n, 0)
    a1 = build_rel_adjacency(now_edge, now_edge_type, n, 1)
    h = (jnp.dot(whole, params['w_root'], precision=hp)
         + jnp.dot(a0, jnp.dot(whole, params['w_rel'][0], precision=hp), precision=hp)
         + jnp.dot(a1, jnp.dot(whole, params['w_rel'][1], precision=hp), precision=hp)
         + params['b_conv'])

    def head(ids, w, b):
        feats = jnp.concatenate([h[ids], whole[ids]], axis=-1)
        logits = jnp.dot(feats, w, precision=hp) + b
        return jax.nn.log_softmax(logits, axis=-1)[:, 1]

    return (head(passage_id_group, params['w_pass'], params['b_pass']),
            head(subgraph_id_group, params['w_graph'], params['b_graph']))


if __name__ == "__main__":
    key = jax.random.PRNGKey(0)
    params = init_params(key)
    kparams = pack_kernel_params(params)

    # Small deterministic inputs: 12 passages/nodes, seq len 8, 20 edges.
    k_ids, k_len, k_e0, k_e1, k_et = jax.random.split(jax.random.PRNGKey(0), 5)
    n_passages, seq_len, n_edges = 12, 8, 20
    input_ids = jax.random.randint(k_ids, (n_passages, seq_len), 0, VOCAB, dtype=jnp.int32)
    lengths = jax.random.randint(k_len, (n_passages,), 3, seq_len + 1, dtype=jnp.int32)
    attention_mask = (jnp.arange(seq_len)[None, :] < lengths[:, None]).astype(jnp.int32)
    passages = {'input_ids': input_ids, 'attention_mask': attention_mask}

    now_edge = jnp.stack([
        jax.random.randint(k_e0, (n_edges,), 0, n_passages, dtype=jnp.int32),
        jax.random.randint(k_e1, (n_edges,), 0, n_passages, dtype=jnp.int32)])
    now_edge_type = jax.random.randint(k_et, (n_edges,), 0, 2, dtype=jnp.int32)

    passage_id_group = jnp.array([0, 2, 4, 5, 7, 9], dtype=jnp.int32)
    subgraph_id_group = jnp.array([1, 3, 6, 8, 10, 11], dtype=jnp.int32)

    p_scores, s_scores = two_level_forward(
        params, kparams, passages, subgraph_id_group, passage_id_group,
        now_edge, now_edge_type)
    jax.block_until_ready((p_scores, s_scores))

    p_ref, s_ref = reference_forward(
        params, passages, subgraph_id_group, passage_id_group, now_edge, now_edge_type)
    assert p_scores.shape == (passage_id_group.shape[0],)
    assert s_scores.shape == (subgraph_id_group.shape[0],)
    # bf16 operands (incl. bf16 adjacency) / f32 accumulation vs. f32 HIGHEST
    # reference: observed error is O(1e-4..1e-3) on these log-prob magnitudes.
    assert jnp.allclose(p_scores, p_ref, atol=3e-3, rtol=1e-2)
    assert jnp.allclose(s_scores, s_ref, atol=3e-3, rtol=1e-2)

    print("KERNEL_OK")
</pallas_src>

<mosaic_0001>
module attributes {stable_mosaic.version = 11 : i64} {
  func.func @_fused_kernel(%arg0: i32, %arg1: memref<16x256xbf16, #tpu.memory_space<vmem>>, %arg2: memref<256x1024xbf16, #tpu.memory_space<vmem>>, %arg3: memref<1x1024xf32, #tpu.memory_space<vmem>>, %arg4: memref<16x16xbf16, #tpu.memory_space<vmem>>, %arg5: memref<16x16xbf16, #tpu.memory_space<vmem>>, %arg6: memref<16x16xbf16, #tpu.memory_space<vmem>>, %arg7: memref<3072x256xbf16, #tpu.memory_space<vmem>>, %arg8: memref<1x256xf32, #tpu.memory_space<vmem>>, %arg9: memref<256x8xbf16, #tpu.memory_space<vmem>>, %arg10: memref<1024x8xbf16, #tpu.memory_space<vmem>>, %arg11: memref<1x8xf32, #tpu.memory_space<vmem>>, %arg12: memref<16x128xf32, #tpu.memory_space<vmem>>, %arg13: memref<16x3072xbf16, #tpu.memory_space<vmem>>, %arg14: memref<16x8xf32, #tpu.memory_space<vmem>>) attributes {dimension_semantics = [#tpu.dimension_semantics<arbitrary>], iteration_bounds = array<i64: 4>, scalar_prefetch = 0 : i64, scratch_operands = 2 : i64, tpu.core_type = #tpu.core_type<tc>, window_params = [{pipeline_mode = #tpu.pipeline_mode<synchronous>, transform_indices = @transform_0, window_bounds = array<i64: 16, 256>}, {pipeline_mode = #tpu.pipeline_mode<synchronous>, transform_indices = @transform_1, window_bounds = array<i64: 256, 1024>}, {pipeline_mode = #tpu.pipeline_mode<synchronous>, transform_indices = @transform_2, window_bounds = array<i64: 1, 1024>}, {pipeline_mode = #tpu.pipeline_mode<synchronous>, transform_indices = @transform_3, window_bounds = array<i64: 16, 16>}, {pipeline_mode = #tpu.pipeline_mode<synchronous>, transform_indices = @transform_4, window_bounds = array<i64: 16, 16>}, {pipeline_mode = #tpu.pipeline_mode<synchronous>, transform_indices = @transform_5, window_bounds = array<i64: 16, 16>}, {transform_indices = @transform_6, window_bounds = array<i64: 3072, 256>}, {transform_indices = @transform_7, window_bounds = array<i64: 1, 256>}, {transform_indices = @transform_8, window_bounds = array<i64: 256, 8>}, {pipeline_mode = #tpu.pipeline_mode<synchronous>, transform_indices = @transform_9, window_bounds = array<i64: 1024, 8>}, {pipeline_mode = #tpu.pipeline_mode<synchronous>, transform_indices = @transform_10, window_bounds = array<i64: 1, 8>}, {pipeline_mode = #tpu.pipeline_mode<synchronous>, transform_indices = @transform_11, window_bounds = array<i64: 16, 128>}]} {
    %c0_i32 = arith.constant 0 : i32
    %0 = arith.cmpi eq, %arg0, %c0_i32 : i32
    %1 = arith.extui %0 : i1 to i32
    %c0_i32_0 = arith.constant 0 : i32
    %2 = arith.cmpi ne, %1, %c0_i32_0 : i32
    scf.if %2 {
      %c0_14 = arith.constant 0 : index
      %c0_15 = arith.constant 0 : index
      %18 = vector.load %arg1[%c0_14, %c0_15] : memref<16x256xbf16, #tpu.memory_space<vmem>>, vector<16x256xbf16>
      %c0_16 = arith.constant 0 : index
      %c0_17 = arith.constant 0 : index
      %19 = vector.load %arg2[%c0_16, %c0_17] : memref<256x1024xbf16, #tpu.memory_space<vmem>>, vector<256x1024xbf16>
      %cst_18 = arith.constant dense<0.000000e+00> : vector<16x1024xf32>
      %20 = tpu.matmul %18, %19, %cst_18 {dimension_numbers = #tpu.dot_dimension_numbers<[1], [0], [0], [1], [0, 0, 1, 1], [], []>} : vector<16x256xbf16>, vector<256x1024xbf16>, vector<16x1024xf32> -> vector<16x1024xf32>
      %c0_19 = arith.constant 0 : index
      %c0_20 = arith.constant 0 : index
      %21 = vector.load %arg3[%c0_19, %c0_20] : memref<1x1024xf32, #tpu.memory_space<vmem>>, vector<1x1024xf32>
      %22 = vector.broadcast %21 : vector<1x1024xf32> to vector<16x1024xf32>
      %23 = arith.addf %20, %22 : vector<16x1024xf32>
      %24 = math.tanh %23 : vector<16x1024xf32>
      %25 = arith.truncf %24 : vector<16x1024xf32> to vector<16x1024xbf16>
      %c0_21 = arith.constant 0 : index
      %c0_22 = arith.constant 0 : index
      %26 = vector.load %arg4[%c0_21, %c0_22] : memref<16x16xbf16, #tpu.memory_space<vmem>>, vector<16x16xbf16>
      %cst_23 = arith.constant dense<0.000000e+00> : vector<16x1024xf32>
      %27 = tpu.matmul %26, %25, %cst_23 {dimension_numbers = #tpu.dot_dimension_numbers<[1], [0], [0], [1], [0, 0, 1, 1], [], []>} : vector<16x16xbf16>, vector<16x1024xbf16>, vector<16x1024xf32> -> vector<16x1024xf32>
      %c0_24 = arith.constant 0 : index
      %c0_25 = arith.constant 0 : index
      %28 = vector.load %arg5[%c0_24, %c0_25] : memref<16x16xbf16, #tpu.memory_space<vmem>>, vector<16x16xbf16>
      %cst_26 = arith.constant dense<0.000000e+00> : vector<16x1024xf32>
      %29 = tpu.matmul %28, %25, %cst_26 {dimension_numbers = #tpu.dot_dimension_numbers<[1], [0], [0], [1], [0, 0, 1, 1], [], []>} : vector<16x16xbf16>, vector<16x1024xbf16>, vector<16x1024xf32> -> vector<16x1024xf32>
      %30 = arith.truncf %27 : vector<16x1024xf32> to vector<16x1024xbf16>
      %31 = arith.truncf %29 : vector<16x1024xf32> to vector<16x1024xbf16>
      %32 = tpu.concatenate %25, %30, %31 in 1 : vector<16x1024xbf16>, vector<16x1024xbf16>, vector<16x1024xbf16> -> vector<16x3072xbf16>
      %c0_27 = arith.constant 0 : index
      %c0_28 = arith.constant 0 : index
      %33 = vector.load %arg6[%c0_27, %c0_28] : memref<16x16xbf16, #tpu.memory_space<vmem>>, vector<16x16xbf16>
      %cst_29 = arith.constant dense<0.000000e+00> : vector<16x3072xf32>
      %34 = tpu.matmul %33, %32, %cst_29 {dimension_numbers = #tpu.dot_dimension_numbers<[1], [0], [0], [1], [0, 0, 1, 1], [], []>} : vector<16x16xbf16>, vector<16x3072xbf16>, vector<16x3072xf32> -> vector<16x3072xf32>
      %35 = arith.truncf %34 : vector<16x3072xf32> to vector<16x3072xbf16>
      %c0_30 = arith.constant 0 : index
      %c0_31 = arith.constant 0 : index
      %36 = vector.load %arg13[%c0_30, %c0_31] : memref<16x3072xbf16, #tpu.memory_space<vmem>>, vector<16x3072xbf16>
      tpu.vector_store %arg13[%c0_30, %c0_31], %35 {strides = array<i32>} : memref<16x3072xbf16, #tpu.memory_space<vmem>>, vector<16x3072xbf16>,
      %37 = vector.extract_strided_slice %35 {offsets = [0, 0], sizes = [16, 1024], strides = [1, 1]} : vector<16x3072xbf16> to vector<16x1024xbf16>
      %c0_32 = arith.constant 0 : index
      %c0_33 = arith.constant 0 : index
      %38 = vector.load %arg10[%c0_32, %c0_33] : memref<1024x8xbf16, #tpu.memory_space<vmem>>, vector<1024x8xbf16>
      %cst_34 = arith.constant dense<0.000000e+00> : vector<16x8xf32>
      %39 = tpu.matmul %37, %38, %cst_34 {dimension_numbers = #tpu.dot_dimension_numbers<[1], [0], [0], [1], [0, 0, 1, 1], [], []>} : vector<16x1024xbf16>, vector<1024x8xbf16>, vector<16x8xf32> -> vector<16x8xf32>
      %c0_35 = arith.constant 0 : index
      %c0_36 = arith.constant 0 : index
      %40 = vector.load %arg11[%c0_35, %c0_36] : memref<1x8xf32, #tpu.memory_space<vmem>>, vector<1x8xf32>
      %41 = vector.broadcast %40 : vector<1x8xf32> to vector<16x8xf32>
      %42 = arith.addf %39, %41 : vector<16x8xf32>
      %c0_37 = arith.constant 0 : index
      %c0_38 = arith.constant 0 : index
      %43 = vector.load %arg14[%c0_37, %c0_38] : memref<16x8xf32, #tpu.memory_space<vmem>>, vector<16x8xf32>
      tpu.vector_store %arg14[%c0_37, %c0_38], %42 {strides = array<i32>} : memref<16x8xf32, #tpu.memory_space<vmem>>, vector<16x8xf32>,
    } else {
    }
    %c0 = arith.constant 0 : index
    %c0_1 = arith.constant 0 : index
    %3 = vector.load %arg13[%c0, %c0_1] : memref<16x3072xbf16, #tpu.memory_space<vmem>>, vector<16x3072xbf16>
    %c0_2 = arith.constant 0 : index
    %c0_3 = arith.constant 0 : index
    %4 = vector.load %arg7[%c0_2, %c0_3] : memref<3072x256xbf16, #tpu.memory_space<vmem>>, vector<3072x256xbf16>
    %cst = arith.constant dense<0.000000e+00> : vector<16x256xf32>
    %5 = tpu.matmul %3, %4, %cst {dimension_numbers = #tpu.dot_dimension_numbers<[1], [0], [0], [1], [0, 0, 1, 1], [], []>} : vector<16x3072xbf16>, vector<3072x256xbf16>, vector<16x256xf32> -> vector<16x256xf32>
    %c0_4 = arith.constant 0 : index
    %c0_5 = arith.constant 0 : index
    %6 = vector.load %arg8[%c0_4, %c0_5] : memref<1x256xf32, #tpu.memory_space<vmem>>, vector<1x256xf32>
    %7 = vector.broadcast %6 : vector<1x256xf32> to vector<16x256xf32>
    %8 = arith.addf %5, %7 : vector<16x256xf32>
    %c0_6 = arith.constant 0 : index
    %c0_7 = arith.constant 0 : index
    %9 = vector.load %arg14[%c0_6, %c0_7] : memref<16x8xf32, #tpu.memory_space<vmem>>, vector<16x8xf32>
    %10 = arith.truncf %8 : vector<16x256xf32> to vector<16x256xbf16>
    %c0_8 = arith.constant 0 : index
    %c0_9 = arith.constant 0 : index
    %11 = vector.load %arg9[%c0_8, %c0_9] : memref<256x8xbf16, #tpu.memory_space<vmem>>, vector<256x8xbf16>
    %cst_10 = arith.constant dense<0.000000e+00> : vector<16x8xf32>
    %12 = tpu.matmul %10, %11, %cst_10 {dimension_numbers = #tpu.dot_dimension_numbers<[1], [0], [0], [1], [0, 0, 1, 1], [], []>} : vector<16x256xbf16>, vector<256x8xbf16>, vector<16x8xf32> -> vector<16x8xf32>
    %13 = arith.addf %9, %12 : vector<16x8xf32>
    %c0_11 = arith.constant 0 : index
    %c0_12 = arith.constant 0 : index
    %14 = vector.load %arg14[%c0_11, %c0_12] : memref<16x8xf32, #tpu.memory_space<vmem>>, vector<16x8xf32>
    tpu.vector_store %arg14[%c0_11, %c0_12], %13 {strides = array<i32>} : memref<16x8xf32, #tpu.memory_space<vmem>>, vector<16x8xf32>,
    %c3_i32 = arith.constant 3 : i32
    %15 = arith.cmpi eq, %arg0, %c3_i32 : i32
    %16 = arith.extui %15 : i1 to i32
    %c0_i32_13 = arith.constant 0 : i32
    %17 = arith.cmpi ne, %16, %c0_i32_13 : i32
    scf.if %17 {
      %c0_14 = arith.constant 0 : index
      %c0_15 = arith.constant 0 : index
      %18 = vector.load %arg14[%c0_14, %c0_15] : memref<16x8xf32, #tpu.memory_space<vmem>>, vector<16x8xf32>
      %19 = vector.extract_strided_slice %18 {offsets = [0, 0], sizes = [16, 1], strides = [1, 1]} : vector<16x8xf32> to vector<16x1xf32>
      %20 = vector.extract_strided_slice %18 {offsets = [0, 1], sizes = [16, 1], strides = [1, 1]} : vector<16x8xf32> to vector<16x1xf32>
      %21 = arith.maximumf %19, %20 : vector<16x1xf32>
      %22 = arith.subf %19, %21 : vector<16x1xf32>
      %23 = math.exp %22 : vector<16x1xf32>
      %24 = arith.subf %20, %21 : vector<16x1xf32>
      %25 = math.exp %24 : vector<16x1xf32>
      %26 = arith.addf %23, %25 : vector<16x1xf32>
      %27 = math.log %26 : vector<16x1xf32>
      %28 = arith.addf %21, %27 : vector<16x1xf32>
      %29 = arith.subf %20, %28 : vector<16x1xf32>
      %30 = vector.extract_strided_slice %18 {offsets = [0, 2], sizes = [16, 1], strides = [1, 1]} : vector<16x8xf32> to vector<16x1xf32>
      %31 = vector.extract_strided_slice %18 {offsets = [0, 3], sizes = [16, 1], strides = [1, 1]} : vector<16x8xf32> to vector<16x1xf32>
      %32 = arith.maximumf %30, %31 : vector<16x1xf32>
      %33 = arith.subf %30, %32 : vector<16x1xf32>
      %34 = math.exp %33 : vector<16x1xf32>
      %35 = arith.subf %31, %32 : vector<16x1xf32>
      %36 = math.exp %35 : vector<16x1xf32>
      %37 = arith.addf %34, %36 : vector<16x1xf32>
      %38 = math.log %37 : vector<16x1xf32>
      %39 = arith.addf %32, %38 : vector<16x1xf32>
      %40 = arith.subf %31, %39 : vector<16x1xf32>
      %41 = tpu.iota {dimensions = array<i32: 1>} : vector<16x128xi32>
      %c0_i32_16 = arith.constant 0 : i32
      %42 = vector.broadcast %c0_i32_16 : i32 to vector<16x128xi32>
      %43 = arith.cmpi eq, %41, %42 : vector<16x128xi32>
      %c1_i32 = arith.constant 1 : i32
      %44 = vector.broadcast %c1_i32 : i32 to vector<16x128xi32>
      %45 = arith.cmpi eq, %41, %44 : vector<16x128xi32>
      %cst_17 = arith.constant 0.000000e+00 : f32
      %46 = vector.shape_cast %40 : vector<16x1xf32> to vector<16x1xf32>
      %47 = vector.broadcast %46 : vector<16x1xf32> to vector<16x128xf32>
      %48 = vector.broadcast %cst_17 : f32 to vector<16x128xf32>
      %49 = arith.select %45, %47, %48 : vector<16x128xi1>, vector<16x128xf32>
      %50 = vector.shape_cast %29 : vector<16x1xf32> to vector<16x1xf32>
      %51 = vector.broadcast %50 : vector<16x1xf32> to vector<16x128xf32>
      %52 = arith.select %43, %51, %49 : vector<16x128xi1>, vector<16x128xf32>
      %c0_18 = arith.constant 0 : index
      %c0_19 = arith.constant 0 : index
      %53 = vector.load %arg12[%c0_18, %c0_19] : memref<16x128xf32, #tpu.memory_space<vmem>>, vector<16x128xf32>
      tpu.vector_store %arg12[%c0_18, %c0_19], %52 {strides = array<i32>} : memref<16x128xf32, #tpu.memory_space<vmem>>, vector<16x128xf32>,
    } else {
    }
    return
  }
  func.func @transform_0(%arg0: i32) -> (i32, i32) {
    %c0_i32 = arith.constant 0 : i32
    %c0_i32_0 = arith.constant 0 : i32
    %c0_i32_1 = arith.constant 0 : i32
    return %c0_i32, %c0_i32_0 : i32, i32
  }
  func.func @transform_1(%arg0: i32) -> (i32, i32) {
    %c0_i32 = arith.constant 0 : i32
    %c0_i32_0 = arith.constant 0 : i32
    %c0_i32_1 = arith.constant 0 : i32
    return %c0_i32, %c0_i32_0 : i32, i32
  }
  func.func @transform_2(%arg0: i32) -> (i32, i32) {
    %c0_i32 = arith.constant 0 : i32
    %c0_i32_0 = arith.constant 0 : i32
    %c0_i32_1 = arith.constant 0 : i32
    return %c0_i32, %c0_i32_0 : i32, i32
  }
  func.func @transform_3(%arg0: i32) -> (i32, i32) {
    %c0_i32 = arith.constant 0 : i32
    %c0_i32_0 = arith.constant 0 : i32
    %c0_i32_1 = arith.constant 0 : i32
    return %c0_i32, %c0_i32_0 : i32, i32
  }
  func.func @transform_4(%arg0: i32) -> (i32, i32) {
    %c0_i32 = arith.constant 0 : i32
    %c0_i32_0 = arith.constant 0 : i32
    %c0_i32_1 = arith.constant 0 : i32
    return %c0_i32, %c0_i32_0 : i32, i32
  }
  func.func @transform_5(%arg0: i32) -> (i32, i32) {
    %c0_i32 = arith.constant 0 : i32
    %c0_i32_0 = arith.constant 0 : i32
    %c0_i32_1 = arith.constant 0 : i32
    return %c0_i32, %c0_i32_0 : i32, i32
  }
  func.func @transform_6(%arg0: i32) -> (i32, i32) {
    %c0_i32 = arith.constant 0 : i32
    %c0_i32_0 = arith.constant 0 : i32
    return %c0_i32, %arg0 : i32, i32
  }
  func.func @transform_7(%arg0: i32) -> (i32, i32) {
    %c0_i32 = arith.constant 0 : i32
    %c0_i32_0 = arith.constant 0 : i32
    return %c0_i32, %arg0 : i32, i32
  }
  func.func @transform_8(%arg0: i32) -> (i32, i32) {
    %c0_i32 = arith.constant 0 : i32
    %c0_i32_0 = arith.constant 0 : i32
    return %arg0, %c0_i32 : i32, i32
  }
  func.func @transform_9(%arg0: i32) -> (i32, i32) {
    %c0_i32 = arith.constant 0 : i32
    %c0_i32_0 = arith.constant 0 : i32
    %c0_i32_1 = arith.constant 0 : i32
    return %c0_i32, %c0_i32_0 : i32, i32
  }
  func.func @transform_10(%arg0: i32) -> (i32, i32) {
    %c0_i32 = arith.constant 0 : i32
    %c0_i32_0 = arith.constant 0 : i32
    %c0_i32_1 = arith.constant 0 : i32
    return %c0_i32, %c0_i32_0 : i32, i32
  }
  func.func @transform_11(%arg0: i32) -> (i32, i32) {
    %c0_i32 = arith.constant 0 : i32
    %c0_i32_0 = arith.constant 0 : i32
    %c0_i32_1 = arith.constant 0 : i32
    return %c0_i32, %c0_i32_0 : i32, i32
  }
}

</mosaic_0001>

<llo_original>
// kernel: tpu_custom_call.1
$region0: #{tpu_custom_call.1}
  #allocation0 [shape = 'u32[]', space=smem, size = 0x4, offset = 0x4, fixed_abs, tag = 'smem constant byte address 0x4 - core index']
  #allocation1 [shape = 'u32[72,128]{1,0:T(1,128)}', space=vmem, size = 0x9000, scoped, tag = 'internal scratch']
  #allocation2 [shape = 'bf16[16,3072]{1,0:T(8,128)(2,1)}', space=vmem, size = 0x18000, scoped, tag = 'scratch operand']
  #allocation3 [shape = 'f32[16,8]{1,0:T(8,128)}', space=vmem, size = 0x2000, scoped, tag = 'scratch operand']
  %s0 = inlined_call_operand.hbm [shape: bf16[16,256], index: 0, kind: input, shape index: {}]
  %s1 = inlined_call_operand.hbm [shape: bf16[256,1024], index: 1, kind: input, shape index: {}]
  %s2 = inlined_call_operand.hbm [shape: f32[1,1024], index: 2, kind: input, shape index: {}]
  %s3 = inlined_call_operand.hbm [shape: bf16[16,16], index: 3, kind: input, shape index: {}]
  %s4 = inlined_call_operand.hbm [shape: bf16[16,16], index: 4, kind: input, shape index: {}]
  %s5 = inlined_call_operand.hbm [shape: bf16[16,16], index: 5, kind: input, shape index: {}]
  %s6 = inlined_call_operand.hbm [shape: bf16[3072,1024], index: 6, kind: input, shape index: {}]
  %s7 = inlined_call_operand.hbm [shape: f32[1,1024], index: 7, kind: input, shape index: {}]
  %s8 = inlined_call_operand.vmem [shape: bf16[1024,8], index: 8, kind: input, shape index: {}]
  %s9 = inlined_call_operand.vmem [shape: bf16[1024,8], index: 9, kind: input, shape index: {}]
  %s10 = inlined_call_operand.hbm [shape: f32[1,8], index: 10, kind: input, shape index: {}]
  %s11 = inlined_call_operand.hbm [shape: f32[16,128], index: 11, kind: output, shape index: {}]
  %s12 = sld [smem:[#allocation0]]
  $region121: #{tpu_custom_call.1} parent=0
    _
  %s14 = ssub.s32 1, %s12
  %s15 = scalar_select 0, %s14, %s12
  $region1: #{tpu_custom_call.1} parent=0
    #allocation4 [shape = 'u8[8192]{0}', space=vmem, size = 0x2000, scoped, tag = 'input window, operand 0, single buffered']
    #allocation5 [shape = 's32[2]{0}', space=sflag, size = 0x8, scoped, tag = 'scoped memory for tpu_custom_call.1']
    #allocation6 [shape = 's32[2]{0}', space=sflag, size = 0x8, scoped, tag = 'scoped memory for tpu_custom_call.1']
    #allocation7 [shape = 'u8[524288]{0}', space=vmem, size = 0x80000, scoped, tag = 'input window, operand 1, single buffered']
    #allocation8 [shape = 's32[1]{0}', space=sflag, size = 0x4, scoped, tag = 'scoped memory for tpu_custom_call.1']
    #allocation9 [shape = 'u8[4096]{0}', space=vmem, size = 0x1000, scoped, tag = 'input window, operand 2, single buffered']
    #allocation10 [shape = 'u8[4096]{0}', space=vmem, size = 0x1000, scoped, tag = 'input window, operand 3, single buffered']
    #allocation11 [shape = 's32[1]{0}', space=sflag, size = 0x4, scoped, tag = 'scoped memory for tpu_custom_call.1']
    #allocation12 [shape = 'u8[4096]{0}', space=vmem, size = 0x1000, scoped, tag = 'input window, operand 4, single buffered']
    #allocation13 [shape = 'u8[4096]{0}', space=vmem, size = 0x1000, scoped, tag = 'input window, operand 5, single buffered']
    #allocation14 [shape = 's32[1]{0}', space=sflag, size = 0x4, scoped, tag = 'scoped memory for tpu_custom_call.1']
    #allocation15 [shape = 'u8[3145728]{0}', space=vmem, size = 0x300000, scoped, tag = 'input window, operand 6']
    #allocation16 [shape = 'u8[2048]{0}', space=vmem, size = 0x800, scoped, tag = 'input window, operand 7']
    #allocation17 [shape = 'u8[512]{0}', space=vmem, size = 0x400, scoped, tag = 'input window, operand 10, single buffered']
    #allocation18 [shape = 'u8[8192]{0}', space=vmem, size = 0x2000, scoped, tag = 'output window, operand 0, single buffered']
    %16 = vsyncpa [#allocation5], 0
    %17 = vsyncpa [#allocation8], 0
    %18 = vsyncpa [#allocation11], 0
    %19 = vsyncpa [#allocation14], 0
    %20 = vsyncpa [#allocation6], 0
    loop: start=0, step=1, limit=6
    $region2: #{tpu_custom_call.1} parent=1 // loop_pre_header
      _
    $region3: #{tpu_custom_call.1} parent=1 // loop_header
      %s22 = sphi 0, %s26
      %p23 = scmp.ge.s32.totalorder %s22, 6
      %s30 = sphi 0, %s30
      %s32 = sphi 0, %s30
      %s33 = sphi 0, %s32
      %s47 = sphi 0, %s33
      %s51 = sphi 0, %s51
      %s53 = sphi 0, %s51
      %s54 = sphi 0, %s53
      %s68 = sphi 0, %s54
      %s72 = sphi 0, %s72
      %s74 = sphi 0, %s72
      %s75 = sphi 0, %s74
      %s89 = sphi 0, %s75
      %s93 = sphi 0, %s93
      %s95 = sphi 0, %s93
      %s96 = sphi 0, %s95
      %s110 = sphi 0, %s96
      %s114 = sphi 0, %s114
      %s116 = sphi 0, %s114
      %s117 = sphi 0, %s116
      %s131 = sphi 0, %s117
      %s135 = sphi 0, %s135
      %s137 = sphi 0, %s135
      %s138 = sphi 0, %s137
      %s152 = sphi 0, %s138
      %s158 = sphi 0, %s160
      %s161 = sphi 0, %s158
      %s162 = sphi 0, %s161
      %s178 = sphi 0, %s162
      %s184 = sphi 0, %s186
      %s187 = sphi 0, %s184
      %s188 = sphi 0, %s187
      %s204 = sphi 0, %s188
      %s210 = sphi 0, %s212
      %s213 = sphi 0, %s210
      %s214 = sphi 0, %s213
      %s230 = sphi 0, %s214
      %s234 = sphi 0, %s234
      %s236 = sphi 0, %s234
      %s237 = sphi 0, %s236
      %s251 = sphi 0, %s237
      %s255 = sphi 0, %s255
      %s257 = sphi 0, %s255
      %s258 = sphi 0, %s257
      %s272 = sphi 0, %s258
      %s276 = sphi 0, %s276
      %s278 = sphi 0, %s276
      %s279 = sphi 0, %s278
      %s293 = sphi 0, %s279
    $region4: #{tpu_custom_call.1} parent=1 // loop_header_branch
      %25 = sbr.rel (%p23) target = $region8
    $region5: #{tpu_custom_call.1} parent=1 // loop_body
      %s27 = ssub.s32 %s22, 1
      %s28 = ssub.s32 %s22, 2
      %s29 = sadd.s32 %s22, 1
      %s31 = sadd.s32 %s30, 1
      %p34 = scmp.eq.s32.totalorder %s22, 3
      %p35 = scmp.ne.s32.totalorder %s30, %s32
      %p36 = scmp.eq.s32.totalorder %s22, 0
      %p37 = por %p35, %p36
      %p38 = scmp.ne.s32.totalorder %s30, %s32
      %p39 = scmp.eq.s32.totalorder %s27, 3
      %p40 = por %p38, %p39
      %p41 = scmp.ne.s32.totalorder %s32, %s33
      %p42 = scmp.eq.s32.totalorder %s27, 0
      %p43 = por %p41, %p42
      %p44 = scmp.ne.s32.totalorder %s32, %s33
      %p45 = scmp.eq.s32.totalorder %s28, 3
      %p46 = por %p44, %p45
      %p48 = scmp.ne.s32.totalorder %s33, %s47
      %p49 = scmp.eq.s32.totalorder %s28, 0
      %p50 = por %p48, %p49
      %s52 = sadd.s32 %s51, 1
      %p55 = scmp.eq.s32.totalorder %s22, 3
      %p56 = scmp.ne.s32.totalorder %s51, %s53
      %p57 = scmp.eq.s32.totalorder %s22, 0
      %p58 = por %p56, %p57
      %p59 = scmp.ne.s32.totalorder %s51, %s53
      %p60 = scmp.eq.s32.totalorder %s27, 3
      %p61 = por %p59, %p60
      %p62 = scmp.ne.s32.totalorder %s53, %s54
      %p63 = scmp.eq.s32.totalorder %s27, 0
      %p64 = por %p62, %p63
      %p65 = scmp.ne.s32.totalorder %s53, %s54
      %p66 = scmp.eq.s32.totalorder %s28, 3
      %p67 = por %p65, %p66
      %p69 = scmp.ne.s32.totalorder %s54, %s68
      %p70 = scmp.eq.s32.totalorder %s28, 0
      %p71 = por %p69, %p70
      %s73 = sadd.s32 %s72, 1
      %p76 = scmp.eq.s32.totalorder %s22, 3
      %p77 = scmp.ne.s32.totalorder %s72, %s74
      %p78 = scmp.eq.s32.totalorder %s22, 0
      %p79 = por %p77, %p78
      %p80 = scmp.ne.s32.totalorder %s72, %s74
      %p81 = scmp.eq.s32.totalorder %s27, 3
      %p82 = por %p80, %p81
      %p83 = scmp.ne.s32.totalorder %s74, %s75
      %p84 = scmp.eq.s32.totalorder %s27, 0
      %p85 = por %p83, %p84
      %p86 = scmp.ne.s32.totalorder %s74, %s75
      %p87 = scmp.eq.s32.totalorder %s28, 3
      %p88 = por %p86, %p87
      %p90 = scmp.ne.s32.totalorder %s75, %s89
      %p91 = scmp.eq.s32.totalorder %s28, 0
      %p92 = por %p90, %p91
      %s94 = sadd.s32 %s93, 1
      %p97 = scmp.eq.s32.totalorder %s22, 3
      %p98 = scmp.ne.s32.totalorder %s93, %s95
      %p99 = scmp.eq.s32.totalorder %s22, 0
      %p100 = por %p98, %p99
      %p101 = scmp.ne.s32.totalorder %s93, %s95
      %p102 = scmp.eq.s32.totalorder %s27, 3
      %p103 = por %p101, %p102
      %p104 = scmp.ne.s32.totalorder %s95, %s96
      %p105 = scmp.eq.s32.totalorder %s27, 0
      %p106 = por %p104, %p105
      %p107 = scmp.ne.s32.totalorder %s95, %s96
      %p108 = scmp.eq.s32.totalorder %s28, 3
      %p109 = por %p107, %p108
      %p111 = scmp.ne.s32.totalorder %s96, %s110
      %p112 = scmp.eq.s32.totalorder %s28, 0
      %p113 = por %p111, %p112
      %s115 = sadd.s32 %s114, 1
      %p118 = scmp.eq.s32.totalorder %s22, 3
      %p119 = scmp.ne.s32.totalorder %s114, %s116
      %p120 = scmp.eq.s32.totalorder %s22, 0
      %p121 = por %p119, %p120
      %p122 = scmp.ne.s32.totalorder %s114, %s116
      %p123 = scmp.eq.s32.totalorder %s27, 3
      %p124 = por %p122, %p123
      %p125 = scmp.ne.s32.totalorder %s116, %s117
      %p126 = scmp.eq.s32.totalorder %s27, 0
      %p127 = por %p125, %p126
      %p128 = scmp.ne.s32.totalorder %s116, %s117
      %p129 = scmp.eq.s32.totalorder %s28, 3
      %p130 = por %p128, %p129
      %p132 = scmp.ne.s32.totalorder %s117, %s131
      %p133 = scmp.eq.s32.totalorder %s28, 0
      %p134 = por %p132, %p133
      %s136 = sadd.s32 %s135, 1
      %p139 = scmp.eq.s32.totalorder %s22, 3
      %p140 = scmp.ne.s32.totalorder %s135, %s137
      %p141 = scmp.eq.s32.totalorder %s22, 0
      %p142 = por %p140, %p141
      %p143 = scmp.ne.s32.totalorder %s135, %s137
      %p144 = scmp.eq.s32.totalorder %s27, 3
      %p145 = por %p143, %p144
      %p146 = scmp.ne.s32.totalorder %s137, %s138
      %p147 = scmp.eq.s32.totalorder %s27, 0
      %p148 = por %p146, %p147
      %p149 = scmp.ne.s32.totalorder %s137, %s138
      %p150 = scmp.eq.s32.totalorder %s28, 3
      %p151 = por %p149, %p150
      %p153 = scmp.ne.s32.totalorder %s138, %s152
      %p154 = scmp.eq.s32.totalorder %s28, 0
      %p155 = por %p153, %p154
      %s156 = ssub.s32 %s22, %s29
      %p157 = scmp.eq.s32.totalorder %s156, 0
      %s159 = sadd.s32 %s158, 1
      %s160 = scalar_select %p157, %s158, %s159
      %p163 = pneg %p157
      %p164 = scmp.eq.s32.totalorder %s22, 3
      %p165 = por %p163, %p164
      %p166 = scmp.ne.s32.totalorder %s158, %s161
      %p167 = scmp.eq.s32.totalorder %s22, 0
      %p168 = por %p166, %p167
      %p169 = scmp.ne.s32.totalorder %s158, %s161
      %p170 = scmp.eq.s32.totalorder %s27, 3
      %p171 = por %p169, %p170
      %p172 = scmp.ne.s32.totalorder %s161, %s162
      %p173 = scmp.eq.s32.totalorder %s27, 0
      %p174 = por %p172, %p173
      %p175 = scmp.ne.s32.totalorder %s161, %s162
      %p176 = scmp.eq.s32.totalorder %s28, 3
      %p177 = por %p175, %p176
      %p179 = scmp.ne.s32.totalorder %s162, %s178
      %p180 = scmp.eq.s32.totalorder %s28, 0
      %p181 = por %p179, %p180
      %s182 = ssub.s32 %s22, %s29
      %p183 = scmp.eq.s32.totalorder %s182, 0
      %s185 = sadd.s32 %s184, 1
      %s186 = scalar_select %p183, %s184, %s185
      %p189 = pneg %p183
      %p190 = scmp.eq.s32.totalorder %s22, 3
      %p191 = por %p189, %p190
      %p192 = scmp.ne.s32.totalorder %s184, %s187
      %p193 = scmp.eq.s32.totalorder %s22, 0
      %p194 = por %p192, %p193
      %p195 = scmp.ne.s32.totalorder %s184, %s187
      %p196 = scmp.eq.s32.totalorder %s27, 3
      %p197 = por %p195, %p196
      %p198 = scmp.ne.s32.totalorder %s187, %s188
      %p199 = scmp.eq.s32.totalorder %s27, 0
      %p200 = por %p198, %p199
      %p201 = scmp.ne.s32.totalorder %s187, %s188
      %p202 = scmp.eq.s32.totalorder %s28, 3
      %p203 = por %p201, %p202
      %p205 = scmp.ne.s32.totalorder %s188, %s204
      %p206 = scmp.eq.s32.totalorder %s28, 0
      %p207 = por %p205, %p206
      %s208 = ssub.s32 %s22, %s29
      %p209 = scmp.eq.s32.totalorder %s208, 0
      %s211 = sadd.s32 %s210, 1
      %s212 = scalar_select %p209, %s210, %s211
      %p215 = pneg %p209
      %p216 = scmp.eq.s32.totalorder %s22, 3
      %p217 = por %p215, %p216
      %p218 = scmp.ne.s32.totalorder %s210, %s213
      %p219 = scmp.eq.s32.totalorder %s22, 0
      %p220 = por %p218, %p219
      %p221 = scmp.ne.s32.totalorder %s210, %s213
      %p222 = scmp.eq.s32.totalorder %s27, 3
      %p223 = por %p221, %p222
      %p224 = scmp.ne.s32.totalorder %s213, %s214
      %p225 = scmp.eq.s32.totalorder %s27, 0
      %p226 = por %p224, %p225
      %p227 = scmp.ne.s32.totalorder %s213, %s214
      %p228 = scmp.eq.s32.totalorder %s28, 3
      %p229 = por %p227, %p228
      %p231 = scmp.ne.s32.totalorder %s214, %s230
      %p232 = scmp.eq.s32.totalorder %s28, 0
      %p233 = por %p231, %p232
      %s235 = sadd.s32 %s234, 1
      %p238 = scmp.eq.s32.totalorder %s22, 3
      %p239 = scmp.ne.s32.totalorder %s234, %s236
      %p240 = scmp.eq.s32.totalorder %s22, 0
      %p241 = por %p239, %p240
      %p242 = scmp.ne.s32.totalorder %s234, %s236
      %p243 = scmp.eq.s32.totalorder %s27, 3
      %p244 = por %p242, %p243
      %p245 = scmp.ne.s32.totalorder %s236, %s237
      %p246 = scmp.eq.s32.totalorder %s27, 0
      %p247 = por %p245, %p246
      %p248 = scmp.ne.s32.totalorder %s236, %s237
      %p249 = scmp.eq.s32.totalorder %s28, 3
      %p250 = por %p248, %p249
      %p252 = scmp.ne.s32.totalorder %s237, %s251
      %p253 = scmp.eq.s32.totalorder %s28, 0
      %p254 = por %p252, %p253
      %s256 = sadd.s32 %s255, 1
      %p259 = scmp.eq.s32.totalorder %s22, 3
      %p260 = scmp.ne.s32.totalorder %s255, %s257
      %p261 = scmp.eq.s32.totalorder %s22, 0
      %p262 = por %p260, %p261
      %p263 = scmp.ne.s32.totalorder %s255, %s257
      %p264 = scmp.eq.s32.totalorder %s27, 3
      %p265 = por %p263, %p264
      %p266 = scmp.ne.s32.totalorder %s257, %s258
      %p267 = scmp.eq.s32.totalorder %s27, 0
      %p268 = por %p266, %p267
      %p269 = scmp.ne.s32.totalorder %s257, %s258
      %p270 = scmp.eq.s32.totalorder %s28, 3
      %p271 = por %p269, %p270
      %p273 = scmp.ne.s32.totalorder %s258, %s272
      %p274 = scmp.eq.s32.totalorder %s28, 0
      %p275 = por %p273, %p274
      %s277 = sadd.s32 %s276, 1
      %p280 = scmp.eq.s32.totalorder %s22, 3
      %p281 = scmp.ne.s32.totalorder %s276, %s278
      %p282 = scmp.eq.s32.totalorder %s22, 0
      %p283 = por %p281, %p282
      %p284 = scmp.ne.s32.totalorder %s276, %s278
      %p285 = scmp.eq.s32.totalorder %s27, 3
      %p286 = por %p284, %p285
      %p287 = scmp.ne.s32.totalorder %s278, %s279
      %p288 = scmp.eq.s32.totalorder %s27, 0
      %p289 = por %p287, %p288
      %p290 = scmp.ne.s32.totalorder %s278, %s279
      %p291 = scmp.eq.s32.totalorder %s28, 3
      %p292 = por %p290, %p291
      %p294 = scmp.ne.s32.totalorder %s279, %s293
      %p295 = scmp.eq.s32.totalorder %s28, 0
      %p296 = por %p294, %p295
      %p297 = scmp.le.s32.totalorder 1, %s22
      %p298 = scmp.lt.s32.totalorder %s22, 5
      %p299 = pnand %p297, %p298
      %p300 = pneg %p299
      // Predicated region
      $region9: #{tpu_custom_call.1} parent=5 // pred_check
        _
      $region10: #{tpu_custom_call.1} parent=5 // pred_check_branch
        %302 = sbr.rel (%p299) target = $region12
      $region11: #{tpu_custom_call.1} parent=5 // pred_region
        %s303 = ssub.s32 %s22, 1
        // Predicated region
        $region13: #{tpu_custom_call.1} parent=11 // pred_check
          %p304 = pneg %p43
        $region14: #{tpu_custom_call.1} parent=11 // pred_check_branch
          %306 = sbr.rel (%p304) target = $region16
        $region15: #{tpu_custom_call.1} parent=11 // pred_region
          %308 = vsyncadd [#allocation5], 0
          %s309 = sshll.u32 %s0, 4
          %s310 = int_to_ptr.hbm [resolvable:$true] %s309
          %s311 = sshll.u32 [#allocation4], 4
          %s312 = int_to_ptr.vmem [resolvable:$true] %s311
          %317 = dma.hbm_to_vmem [thread:$0]  %s310, 256, %s312, [#allocation5], 128, 128, 8
        $region16: #{tpu_custom_call.1} parent=11 // pred_fallthru
          _
        // Predicated region
        $region17: #{tpu_custom_call.1} parent=11 // pred_check
          %p318 = pneg %p64
        $region18: #{tpu_custom_call.1} parent=11 // pred_check_branch
          %320 = sbr.rel (%p318) target = $region20
        $region19: #{tpu_custom_call.1} parent=11 // pred_region
          %322 = vsyncadd [#allocation8], 0
          %s323 = sshll.u32 %s1, 4
          %s324 = int_to_ptr.hbm [resolvable:$true] %s323
          %s325 = sshll.u32 [#allocation7], 4
          %s326 = int_to_ptr.vmem [resolvable:$true] %s325
          %331 = dma.hbm_to_vmem [thread:$0]  %s324, 16384, %s326, [#allocation8], 512, 512, 32
        $region20: #{tpu_custom_call.1} parent=11 // pred_fallthru
          _
        // Predicated region
        $region21: #{tpu_custom_call.1} parent=11 // pred_check
          %p332 = pneg %p85
        $region22: #{tpu_custom_call.1} parent=11 // pred_check_branch
          %334 = sbr.rel (%p332) target = $region24
        $region23: #{tpu_custom_call.1} parent=11 // pred_region
          %336 = vsyncadd [#allocation8], 0
          %s338 = sshll.u32 %s2, 4
          %s339 = int_to_ptr.hbm [resolvable:$true] %s338
          %s340 = sshll.u32 [#allocation9], 4
          %s341 = int_to_ptr.vmem [resolvable:$true] %s340
          %343 = dma.hbm_to_vmem [thread:$0]  %s339, 128, %s341, [#allocation8]
        $region24: #{tpu_custom_call.1} parent=11 // pred_fallthru
          _
        // Predicated region
        $region25: #{tpu_custom_call.1} parent=11 // pred_check
          %p344 = pneg %p106
        $region26: #{tpu_custom_call.1} parent=11 // pred_check_branch
          %346 = sbr.rel (%p344) target = $region28
        $region27: #{tpu_custom_call.1} parent=11 // pred_region
          %348 = vsyncadd [#allocation11], 0
          %s349 = sshll.u32 %s3, 4
          %s350 = int_to_ptr.hbm [resolvable:$true] %s349
          %s351 = sshll.u32 [#allocation10], 4
          %s352 = int_to_ptr.vmem [resolvable:$true] %s351
          %357 = dma.hbm_to_vmem [thread:$0]  %s350, 128, %s352, [#allocation11], 64, 64, 4
        $region28: #{tpu_custom_call.1} parent=11 // pred_fallthru
          _
        // Predicated region
        $region29: #{tpu_custom_call.1} parent=11 // pred_check
          %p358 = pneg %p127
        $region30: #{tpu_custom_call.1} parent=11 // pred_check_branch
          %360 = sbr.rel (%p358) target = $region32
        $region31: #{tpu_custom_call.1} parent=11 // pred_region
          %362 = vsyncadd [#allocation11], 0
          %s363 = sshll.u32 %s4, 4
          %s364 = int_to_ptr.hbm [resolvable:$true] %s363
          %s365 = sshll.u32 [#allocation12], 4
          %s366 = int_to_ptr.vmem [resolvable:$true] %s365
          %371 = dma.hbm_to_vmem [thread:$0]  %s364, 128, %s366, [#allocation11], 64, 64, 4
        $region32: #{tpu_custom_call.1} parent=11 // pred_fallthru
          _
        // Predicated region
        $region33: #{tpu_custom_call.1} parent=11 // pred_check
          %p372 = pneg %p148
        $region34: #{tpu_custom_call.1} parent=11 // pred_check_branch
          %374 = sbr.rel (%p372) target = $region36
        $region35: #{tpu_custom_call.1} parent=11 // pred_region
          %376 = vsyncadd [#allocation14], 0
          %s377 = sshll.u32 %s5, 4
          %s378 = int_to_ptr.hbm [resolvable:$true] %s377
          %s379 = sshll.u32 [#allocation13], 4
          %s380 = int_to_ptr.vmem [resolvable:$true] %s379
          %385 = dma.hbm_to_vmem [thread:$0]  %s378, 128, %s380, [#allocation14], 64, 64, 4
        $region36: #{tpu_custom_call.1} parent=11 // pred_fallthru
          _
        // Predicated region
        $region37: #{tpu_custom_call.1} parent=11 // pred_check
          %p386 = pneg %p247
        $region38: #{tpu_custom_call.1} parent=11 // pred_check_branch
          %388 = sbr.rel (%p386) target = $region40
        $region39: #{tpu_custom_call.1} parent=11 // pred_region
          _
        $region40: #{tpu_custom_call.1} parent=11 // pred_fallthru
          _
        // Predicated region
        $region41: #{tpu_custom_call.1} parent=11 // pred_check
          %p389 = pneg %p268
        $region42: #{tpu_custom_call.1} parent=11 // pred_check_branch
          %391 = sbr.rel (%p389) target = $region44
        $region43: #{tpu_custom_call.1} parent=11 // pred_region
          %393 = vsyncadd [#allocation8], 0
          %s395 = sshll.u32 %s10, 4
          %s396 = int_to_ptr.hbm [resolvable:$true] %s395
          %s397 = sshll.u32 [#allocation17], 4
          %s398 = int_to_ptr.vmem [resolvable:$true] %s397
          %400 = dma.hbm_to_vmem [thread:$0]  %s396, 16, %s398, [#allocation8]
        $region44: #{tpu_custom_call.1} parent=11 // pred_fallthru
          _
      $region12: #{tpu_custom_call.1} parent=5 // pred_fallthru
        _
      %p401 = scmp.lt.s32.totalorder %s22, 4
      // Predicated region
      $region45: #{tpu_custom_call.1} parent=5 // pred_check
        %p402 = pneg %p401
      $region46: #{tpu_custom_call.1} parent=5 // pred_check_branch
        %404 = sbr.rel (%p402) target = $region48
      $region47: #{tpu_custom_call.1} parent=5 // pred_region
        // Predicated region
        $region49: #{tpu_custom_call.1} parent=47 // pred_check
          %p405 = pneg %p168
        $region50: #{tpu_custom_call.1} parent=47 // pred_check_branch
          %407 = sbr.rel (%p405) target = $region52
        $region51: #{tpu_custom_call.1} parent=47 // pred_region
          %s408 = sand.u32 %s22, 1
          %s409 = scalar_lea.sflag [#allocation5], %s408
          %s410 = sand.u32 %s158, 1
          %s411 = smul.addr %s410, 3072
          %s412 = scalar_lea.vmem [#allocation15], %s411
          %s413 = smul.u32 2, %s22
          %415 = vsyncadd %s409, 0
          %s416 = smul.addr %s413, 4
          %s417 = scalar_lea.hbm %s6, %s416
          %s418 = sshll.u32 %s417, 4
          %s419 = int_to_ptr.hbm [resolvable:$true] %s418
          %s420 = sshll.u32 %s412, 4
          %s421 = int_to_ptr.vmem [resolvable:$true] %s420
          %426 = dma.hbm_to_vmem [thread:$0]  %s419, 49152, %s421, %s409, 512, 128, 8
        $region52: #{tpu_custom_call.1} parent=47 // pred_fallthru
          _
        // Predicated region
        $region53: #{tpu_custom_call.1} parent=47 // pred_check
          %p427 = pneg %p194
        $region54: #{tpu_custom_call.1} parent=47 // pred_check_branch
          %429 = sbr.rel (%p427) target = $region56
        $region55: #{tpu_custom_call.1} parent=47 // pred_region
          %s430 = sand.u32 %s22, 1
          %s431 = scalar_lea.sflag [#allocation5], %s430
          %s432 = sand.u32 %s184, 1
          %s433 = smul.addr %s432, 2
          %s434 = scalar_lea.vmem [#allocation16], %s433
          %s435 = smul.u32 2, %s22
          %437 = vsyncadd %s431, 0
          %s438 = scalar_lea.hbm %s7, %s435
          %s440 = sshll.u32 %s438, 4
          %s441 = int_to_ptr.hbm [resolvable:$true] %s440
          %s442 = sshll.u32 %s434, 4
          %s443 = int_to_ptr.vmem [resolvable:$true] %s442
          %445 = dma.hbm_to_vmem [thread:$0]  %s441, 32, %s443, %s431
        $region56: #{tpu_custom_call.1} parent=47 // pred_fallthru
          _
        // Predicated region
        $region57: #{tpu_custom_call.1} parent=47 // pred_check
          %p446 = pneg %p220
        $region58: #{tpu_custom_call.1} parent=47 // pred_check_branch
          %448 = sbr.rel (%p446) target = $region60
        $region59: #{tpu_custom_call.1} parent=47 // pred_region
          %s449 = smul.u32 32, %s22
          %p450 = scmp.lt.s32.totalorder %s449, 127
          %s451 = scalar_select %p450, %s449, 127
          %s452 = smul.addr %s451, 4
          %s453 = scalar_lea.vmem %s8, %s452
          %s454 = smul.u32 32, %s22
        $region60: #{tpu_custom_call.1} parent=47 // pred_fallthru
          _
      $region48: #{tpu_custom_call.1} parent=5 // pred_fallthru
        _
      %p455 = scmp.le.s32.totalorder 1, %s22
      %p456 = scmp.lt.s32.totalorder %s22, 5
      %p457 = pnand %p455, %p456
      %p458 = pneg %p457
      // Predicated region
      $region61: #{tpu_custom_call.1} parent=5 // pred_check
        _
      $region62: #{tpu_custom_call.1} parent=5 // pred_check_branch
        %460 = sbr.rel (%p457) target = $region64
      $region63: #{tpu_custom_call.1} parent=5 // pred_region
        %s461 = ssub.s32 %s22, 1
        // Predicated region
        $region65: #{tpu_custom_call.1} parent=63 // pred_check
          %p462 = pneg %p43
        $region66: #{tpu_custom_call.1} parent=63 // pred_check_branch
          %464 = sbr.rel (%p462) target = $region68
        $region67: #{tpu_custom_call.1} parent=63 // pred_region
          %466 = dma.done [#allocation5], 256
        $region68: #{tpu_custom_call.1} parent=63 // pred_fallthru
          _
        // Predicated region
        $region69: #{tpu_custom_call.1} parent=63 // pred_check
          %p467 = pneg %p64
        $region70: #{tpu_custom_call.1} parent=63 // pred_check_branch
          %469 = sbr.rel (%p467) target = $region72
        $region71: #{tpu_custom_call.1} parent=63 // pred_region
          %471 = dma.done [#allocation8], 16384
        $region72: #{tpu_custom_call.1} parent=63 // pred_fallthru
          _
        // Predicated region
        $region73: #{tpu_custom_call.1} parent=63 // pred_check
          %p472 = pneg %p85
        $region74: #{tpu_custom_call.1} parent=63 // pred_check_branch
          %474 = sbr.rel (%p472) target = $region76
        $region75: #{tpu_custom_call.1} parent=63 // pred_region
          %476 = dma.done [#allocation8], 128
        $region76: #{tpu_custom_call.1} parent=63 // pred_fallthru
          _
        // Predicated region
        $region77: #{tpu_custom_call.1} parent=63 // pred_check
          %p477 = pneg %p106
        $region78: #{tpu_custom_call.1} parent=63 // pred_check_branch
          %479 = sbr.rel (%p477) target = $region80
        $region79: #{tpu_custom_call.1} parent=63 // pred_region
          %481 = dma.done [#allocation11], 128
        $region80: #{tpu_custom_call.1} parent=63 // pred_fallthru
          _
        // Predicated region
        $region81: #{tpu_custom_call.1} parent=63 // pred_check
          %p482 = pneg %p127
        $region82: #{tpu_custom_call.1} parent=63 // pred_check_branch
          %484 = sbr.rel (%p482) target = $region84
        $region83: #{tpu_custom_call.1} parent=63 // pred_region
          %486 = dma.done [#allocation11], 128
        $region84: #{tpu_custom_call.1} parent=63 // pred_fallthru
          _
        // Predicated region
        $region85: #{tpu_custom_call.1} parent=63 // pred_check
          %p487 = pneg %p148
        $region86: #{tpu_custom_call.1} parent=63 // pred_check_branch
          %489 = sbr.rel (%p487) target = $region88
        $region87: #{tpu_custom_call.1} parent=63 // pred_region
          %491 = dma.done [#allocation14], 128
        $region88: #{tpu_custom_call.1} parent=63 // pred_fallthru
          _
        %s492 = sand.u32 %s27, 1
        %s493 = scalar_lea.sflag [#allocation5], %s492
        %s494 = sand.u32 %s161, 1
        %s495 = smul.addr %s494, 3072
        %s496 = scalar_lea.vmem [#allocation15], %s495
        // Predicated region
        $region89: #{tpu_custom_call.1} parent=63 // pred_check
          %p497 = pneg %p174
        $region90: #{tpu_custom_call.1} parent=63 // pred_check_branch
          %499 = sbr.rel (%p497) target = $region92
        $region91: #{tpu_custom_call.1} parent=63 // pred_region
          %501 = dma.done %s493, 49152
        $region92: #{tpu_custom_call.1} parent=63 // pred_fallthru
          _
        %s502 = sand.u32 %s27, 1
        %s503 = scalar_lea.sflag [#allocation5], %s502
        %s504 = sand.u32 %s187, 1
        %s505 = smul.addr %s504, 2
        %s506 = scalar_lea.vmem [#allocation16], %s505
        // Predicated region
        $region93: #{tpu_custom_call.1} parent=63 // pred_check
          %p507 = pneg %p200
        $region94: #{tpu_custom_call.1} parent=63 // pred_check_branch
          %509 = sbr.rel (%p507) target = $region96
        $region95: #{tpu_custom_call.1} parent=63 // pred_region
          %511 = dma.done %s503, 32
        $region96: #{tpu_custom_call.1} parent=63 // pred_fallthru
          _
        // Predicated region
        $region97: #{tpu_custom_call.1} parent=63 // pred_check
          %p512 = pneg %p268
        $region98: #{tpu_custom_call.1} parent=63 // pred_check_branch
          %514 = sbr.rel (%p512) target = $region100
        $region99: #{tpu_custom_call.1} parent=63 // pred_region
          %516 = dma.done [#allocation8], 16
        $region100: #{tpu_custom_call.1} parent=63 // pred_fallthru
          _
        %p517 = pneg %p43
        %p518 = pneg %p40
        %p519 = pneg %p64
        %p520 = pneg %p61
        %p521 = pneg %p85
        %p522 = pneg %p82
        %p523 = pneg %p106
        %p524 = pneg %p103
        %p525 = pneg %p127
        %p526 = pneg %p124
        %p527 = pneg %p148
        %p528 = pneg %p145
        %s529 = sand.u32 %s27, 1
        %s530 = scalar_lea.sflag [#allocation5], %s529
        %s531 = sand.u32 %s161, 1
        %s532 = smul.addr %s531, 3072
        %s533 = scalar_lea.vmem [#allocation15], %s532
        %p534 = pneg %p174
        %p535 = pneg %p171
        %s536 = sand.u32 %s27, 1
        %s537 = scalar_lea.sflag [#allocation5], %s536
        %s538 = sand.u32 %s187, 1
        %s539 = smul.addr %s538, 2
        %s540 = scalar_lea.vmem [#allocation16], %s539
        %p541 = pneg %p200
        %p542 = pneg %p197
        %s543 = smul.u32 32, %s27
        %p544 = scmp.lt.s32.totalorder %s543, 127
        %s545 = scalar_select %p544, %s543, 127
        %s546 = smul.addr %s545, 4
        %s547 = scalar_lea.vmem %s8, %s546
        %p548 = pneg %p226
        %p549 = pneg %p223
        %p550 = pneg %p247
        %p551 = pneg %p244
        %p552 = pneg %p268
        %p553 = pneg %p265
        %p554 = pneg %p289
        %p555 = pneg %p286
        %s556 = smul.u32 2, %s27
        %s557 = smul.u32 2, %s27
        %s558 = smul.u32 32, %s27
        %p559 = scmp.lt.s32.totalorder %s558, 127
        %s560 = scalar_select %p559, %s558, 127
        %s561 = smul.addr %s560, 4
        %s562 = scalar_lea.vmem %s8, %s561
        %s563 = smul.u32 32, %s27
        %p565 = scmp.eq.s32.totalorder %s27, 0
        // Predicated region
        $region101: #{tpu_custom_call.1} parent=63 // pred_check
          %p566 = pneg %p565
        $region102: #{tpu_custom_call.1} parent=63 // pred_check_branch
          %568 = sbr.rel (%p566) target = $region104
        $region103: #{tpu_custom_call.1} parent=63 // pred_region
          %v569 = vld [vmem:[#allocation4] sm:$0xff]
          %v570 = vld [vmem:[#allocation4 + $0x8] sm:$0xff]
          %v571 = vld [vmem:[#allocation7] sm:$0xff]
          %v572 = vld [vmem:[#allocation7 + $0x8] sm:$0xff]
          %v573 = vld [vmem:[#allocation7 + $0x10] sm:$0xff]
          %v574 = vld [vmem:[#allocation7 + $0x18] sm:$0xff]
          %v575 = vld [vmem:[#allocation7 + $0x20] sm:$0xff]
          %v576 = vld [vmem:[#allocation7 + $0x28] sm:$0xff]
          %v577 = vld [vmem:[#allocation7 + $0x30] sm:$0xff]
          %v578 = vld [vmem:[#allocation7 + $0x38] sm:$0xff]
          %v579 = vld [vmem:[#allocation7 + $0x40] sm:$0xff]
          %v580 = vld [vmem:[#allocation7 + $0x48] sm:$0xff]
          %v581 = vld [vmem:[#allocation7 + $0x50] sm:$0xff]
          %v582 = vld [vmem:[#allocation7 + $0x58] sm:$0xff]
          %v583 = vld [vmem:[#allocation7 + $0x60] sm:$0xff]
          %v584 = vld [vmem:[#allocation7 + $0x68] sm:$0xff]
          %v585 = vld [vmem:[#allocation7 + $0x70] sm:$0xff]
          %v586 = vld [vmem:[#allocation7 + $0x78] sm:$0xff]
          %v587 = vld [vmem:[#allocation7 + $0x80] sm:$0xff]
          %v588 = vld [vmem:[#allocation7 + $0x88] sm:$0xff]
          %v589 = vld [vmem:[#allocation7 + $0x90] sm:$0xff]
          %v590 = vld [vmem:[#allocation7 + $0x98] sm:$0xff]
          %v591 = vld [vmem:[#allocation7 + $0xa0] sm:$0xff]
          %v592 = vld [vmem:[#allocation7 + $0xa8] sm:$0xff]
          %v593 = vld [vmem:[#allocation7 + $0xb0] sm:$0xff]
          %v594 = vld [vmem:[#allocation7 + $0xb8] sm:$0xff]
          %v595 = vld [vmem:[#allocation7 + $0xc0] sm:$0xff]
          %v596 = vld [vmem:[#allocation7 + $0xc8] sm:$0xff]
          %v597 = vld [vmem:[#allocation7 + $0xd0] sm:$0xff]
          %v598 = vld [vmem:[#allocation7 + $0xd8] sm:$0xff]
          %v599 = vld [vmem:[#allocation7 + $0xe0] sm:$0xff]
          %v600 = vld [vmem:[#allocation7 + $0xe8] sm:$0xff]
          %v601 = vld [vmem:[#allocation7 + $0xf0] sm:$0xff]
          %v602 = vld [vmem:[#allocation7 + $0xf8] sm:$0xff]
          %v603 = vld [vmem:[#allocation7 + $0x100] sm:$0xff]
          %v604 = vld [vmem:[#allocation7 + $0x108] sm:$0xff]
          %v605 = vld [vmem:[#allocation7 + $0x110] sm:$0xff]
          %v606 = vld [vmem:[#allocation7 + $0x118] sm:$0xff]
          %v607 = vld [vmem:[#allocation7 + $0x120] sm:$0xff]
          %v608 = vld [vmem:[#allocation7 + $0x128] sm:$0xff]
          %v609 = vld [vmem:[#allocation7 + $0x130] sm:$0xff]
          %v610 = vld [vmem:[#allocation7 + $0x138] sm:$0xff]
          %v611 = vld [vmem:[#allocation7 + $0x140] sm:$0xff]
          %v612 = vld [vmem:[#allocation7 + $0x148] sm:$0xff]
          %v613 = vld [vmem:[#allocation7 + $0x150] sm:$0xff]
          %v614 = vld [vmem:[#allocation7 + $0x158] sm:$0xff]
          %v615 = vld [vmem:[#allocation7 + $0x160] sm:$0xff]
          %v616 = vld [vmem:[#allocation7 + $0x168] sm:$0xff]
          %v617 = vld [vmem:[#allocation7 + $0x170] sm:$0xff]
          %v618 = vld [vmem:[#allocation7 + $0x178] sm:$0xff]
          %v619 = vld [vmem:[#allocation7 + $0x180] sm:$0xff]
          %v620 = vld [vmem:[#allocation7 + $0x188] sm:$0xff]
          %v621 = vld [vmem:[#allocation7 + $0x190] sm:$0xff]
          %v622 = vld [vmem:[#allocation7 + $0x198] sm:$0xff]
          %v623 = vld [vmem:[#allocation7 + $0x1a0] sm:$0xff]
          %v624 = vld [vmem:[#allocation7 + $0x1a8] sm:$0xff]
          %v625 = vld [vmem:[#allocation7 + $0x1b0] sm:$0xff]
          %v626 = vld [vmem:[#allocation7 + $0x1b8] sm:$0xff]
          %v627 = vld [vmem:[#allocation7 + $0x1c0] sm:$0xff]
          %v628 = vld [vmem:[#allocation7 + $0x1c8] sm:$0xff]
          %v629 = vld [vmem:[#allocation7 + $0x1d0] sm:$0xff]
          %v630 = vld [vmem:[#allocation7 + $0x1d8] sm:$0xff]
          %v631 = vld [vmem:[#allocation7 + $0x1e0] sm:$0xff]
          %v632 = vld [vmem:[#allocation7 + $0x1e8] sm:$0xff]
          %v633 = vld [vmem:[#allocation7 + $0x1f0] sm:$0xff]
          %v634 = vld [vmem:[#allocation7 + $0x1f8] sm:$0xff]
          %v635 = vld [vmem:[#allocation7 + $0x200] sm:$0xff]
          %v636 = vld [vmem:[#allocation7 + $0x208] sm:$0xff]
          %v637 = vld [vmem:[#allocation7 + $0x210] sm:$0xff]
          %v638 = vld [vmem:[#allocation7 + $0x218] sm:$0xff]
          %v639 = vld [vmem:[#allocation7 + $0x220] sm:$0xff]
          %v640 = vld [vmem:[#allocation7 + $0x228] sm:$0xff]
          %v641 = vld [vmem:[#allocation7 + $0x230] sm:$0xff]
          %v642 = vld [vmem:[#allocation7 + $0x238] sm:$0xff]
          %v643 = vld [vmem:[#allocation7 + $0x240] sm:$0xff]
          %v644 = vld [vmem:[#allocation7 + $0x248] sm:$0xff]
          %v645 = vld [vmem:[#allocation7 + $0x250] sm:$0xff]
          %v646 = vld [vmem:[#allocation7 + $0x258] sm:$0xff]
          %v647 = vld [vmem:[#allocation7 + $0x260] sm:$0xff]
          %v648 = vld [vmem:[#allocation7 + $0x268] sm:$0xff]
          %v649 = vld [vmem:[#allocation7 + $0x270] sm:$0xff]
          %v650 = vld [vmem:[#allocation7 + $0x278] sm:$0xff]
          %v651 = vld [vmem:[#allocation7 + $0x280] sm:$0xff]
          %v652 = vld [vmem:[#allocation7 + $0x288] sm:$0xff]
          %v653 = vld [vmem:[#allocation7 + $0x290] sm:$0xff]
          %v654 = vld [vmem:[#allocation7 + $0x298] sm:$0xff]
          %v655 = vld [vmem:[#allocation7 + $0x2a0] sm:$0xff]
          %v656 = vld [vmem:[#allocation7 + $0x2a8] sm:$0xff]
          %v657 = vld [vmem:[#allocation7 + $0x2b0] sm:$0xff]
          %v658 = vld [vmem:[#allocation7 + $0x2b8] sm:$0xff]
          %v659 = vld [vmem:[#allocation7 + $0x2c0] sm:$0xff]
          %v660 = vld [vmem:[#allocation7 + $0x2c8] sm:$0xff]
          %v661 = vld [vmem:[#allocation7 + $0x2d0] sm:$0xff]
          %v662 = vld [vmem:[#allocation7 + $0x2d8] sm:$0xff]
          %v663 = vld [vmem:[#allocation7 + $0x2e0] sm:$0xff]
          %v664 = vld [vmem:[#allocation7 + $0x2e8] sm:$0xff]
          %v665 = vld [vmem:[#allocation7 + $0x2f0] sm:$0xff]
          %v666 = vld [vmem:[#allocation7 + $0x2f8] sm:$0xff]
          %v667 = vld [vmem:[#allocation7 + $0x300] sm:$0xff]
          %v668 = vld [vmem:[#allocation7 + $0x308] sm:$0xff]
          %v669 = vld [vmem:[#allocation7 + $0x310] sm:$0xff]
          %v670 = vld [vmem:[#allocation7 + $0x318] sm:$0xff]
          %v671 = vld [vmem:[#allocation7 + $0x320] sm:$0xff]
          %v672 = vld [vmem:[#allocation7 + $0x328] sm:$0xff]
          %v673 = vld [vmem:[#allocation7 + $0x330] sm:$0xff]
          %v674 = vld [vmem:[#allocation7 + $0x338] sm:$0xff]
          %v675 = vld [vmem:[#allocation7 + $0x340] sm:$0xff]
          %v676 = vld [vmem:[#allocation7 + $0x348] sm:$0xff]
          %v677 = vld [vmem:[#allocation7 + $0x350] sm:$0xff]
          %v678 = vld [vmem:[#allocation7 + $0x358] sm:$0xff]
          %v679 = vld [vmem:[#allocation7 + $0x360] sm:$0xff]
          %v680 = vld [vmem:[#allocation7 + $0x368] sm:$0xff]
          %v681 = vld [vmem:[#allocation7 + $0x370] sm:$0xff]
          %v682 = vld [vmem:[#allocation7 + $0x378] sm:$0xff]
          %v683 = vld [vmem:[#allocation7 + $0x380] sm:$0xff]
          %v684 = vld [vmem:[#allocation7 + $0x388] sm:$0xff]
          %v685 = vld [vmem:[#allocation7 + $0x390] sm:$0xff]
          %v686 = vld [vmem:[#allocation7 + $0x398] sm:$0xff]
          %v687 = vld [vmem:[#allocation7 + $0x3a0] sm:$0xff]
          %v688 = vld [vmem:[#allocation7 + $0x3a8] sm:$0xff]
          %v689 = vld [vmem:[#allocation7 + $0x3b0] sm:$0xff]
          %v690 = vld [vmem:[#allocation7 + $0x3b8] sm:$0xff]
          %v691 = vld [vmem:[#allocation7 + $0x3c0] sm:$0xff]
          %v692 = vld [vmem:[#allocation7 + $0x3c8] sm:$0xff]
          %v693 = vld [vmem:[#allocation7 + $0x3d0] sm:$0xff]
          %v694 = vld [vmem:[#allocation7 + $0x3d8] sm:$0xff]
          %v695 = vld [vmem:[#allocation7 + $0x3e0] sm:$0xff]
          %v696 = vld [vmem:[#allocation7 + $0x3e8] sm:$0xff]
          %v697 = vld [vmem:[#allocation7 + $0x3f0] sm:$0xff]
          %v698 = vld [vmem:[#allocation7 + $0x3f8] sm:$0xff]
          %v699 = vld [vmem:[#allocation9] sm:$0xff]
          %v701 = vperm.slane %v699, 0
          %v702 = vperm.slane %v699, 1
          %v703 = vperm.slane %v699, 2
          %v704 = vperm.slane %v699, 3
          %v705 = vperm.slane %v699, 4
          %v706 = vperm.slane %v699, 5
          %v707 = vperm.slane %v699, 6
          %v708 = vperm.slane %v699, 7
          %v719 = vunpack.c.l.b16 %v569
          %v720 = vunpack.c.h.b16 %v569
          %v721 = vunpack.c.l.b16 %v570
          %v722 = vunpack.c.h.b16 %v570
          %v723 = vpack.c.b16 %v721, %v719
          %v724 = vpack.c.b16 %v722, %v720
          %v855 = vunpack.c.l.b16 %v571
          %v856 = vunpack.c.h.b16 %v571
          %v857 = vunpack.c.l.b16 %v572
          %v858 = vunpack.c.h.b16 %v572
          %v859 = vunpack.c.l.b16 %v573
          %v860 = vunpack.c.h.b16 %v573
          %v861 = vunpack.c.l.b16 %v574
          %v862 = vunpack.c.h.b16 %v574
          %v863 = vunpack.c.l.b16 %v575
          %v864 = vunpack.c.h.b16 %v575
          %v865 = vunpack.c.l.b16 %v576
          %v866 = vunpack.c.h.b16 %v576
          %v867 = vunpack.c.l.b16 %v577
          %v868 = vunpack.c.h.b16 %v577
          %v869 = vunpack.c.l.b16 %v578
          %v870 = vunpack.c.h.b16 %v578
          %v871 = vunpack.c.l.b16 %v579
          %v872 = vunpack.c.h.b16 %v579
          %v873 = vunpack.c.l.b16 %v580
          %v874 = vunpack.c.h.b16 %v580
          %v875 = vunpack.c.l.b16 %v581
          %v876 = vunpack.c.h.b16 %v581
          %v877 = vunpack.c.l.b16 %v582
          %v878 = vunpack.c.h.b16 %v582
          %v879 = vunpack.c.l.b16 %v583
          %v880 = vunpack.c.h.b16 %v583
          %v881 = vunpack.c.l.b16 %v584
          %v882 = vunpack.c.h.b16 %v584
          %v883 = vunpack.c.l.b16 %v585
          %v884 = vunpack.c.h.b16 %v585
          %v885 = vunpack.c.l.b16 %v586
          %v886 = vunpack.c.h.b16 %v586
          %v887 = vunpack.c.l.b16 %v587
          %v888 = vunpack.c.h.b16 %v587
          %v889 = vunpack.c.l.b16 %v588
          %v890 = vunpack.c.h.b16 %v588
          %v891 = vunpack.c.l.b16 %v589
          %v892 = vunpack.c.h.b16 %v589
          %v893 = vunpack.c.l.b16 %v590
          %v894 = vunpack.c.h.b16 %v590
          %v895 = vunpack.c.l.b16 %v591
          %v896 = vunpack.c.h.b16 %v591
          %v897 = vunpack.c.l.b16 %v592
          %v898 = vunpack.c.h.b16 %v592
          %v899 = vunpack.c.l.b16 %v593
          %v900 = vunpack.c.h.b16 %v593
          %v901 = vunpack.c.l.b16 %v594
          %v902 = vunpack.c.h.b16 %v594
          %v903 = vunpack.c.l.b16 %v595
          %v904 = vunpack.c.h.b16 %v595
          %v905 = vunpack.c.l.b16 %v596
          %v906 = vunpack.c.h.b16 %v596
          %v907 = vunpack.c.l.b16 %v597
          %v908 = vunpack.c.h.b16 %v597
          %v909 = vunpack.c.l.b16 %v598
          %v910 = vunpack.c.h.b16 %v598
          %v911 = vunpack.c.l.b16 %v599
          %v912 = vunpack.c.h.b16 %v599
          %v913 = vunpack.c.l.b16 %v600
          %v914 = vunpack.c.h.b16 %v600
          %v915 = vunpack.c.l.b16 %v601
          %v916 = vunpack.c.h.b16 %v601
          %v917 = vunpack.c.l.b16 %v602
          %v918 = vunpack.c.h.b16 %v602
          %v919 = vunpack.c.l.b16 %v603
          %v920 = vunpack.c.h.b16 %v603
          %v921 = vunpack.c.l.b16 %v604
          %v922 = vunpack.c.h.b16 %v604
          %v923 = vunpack.c.l.b16 %v605
          %v924 = vunpack.c.h.b16 %v605
          %v925 = vunpack.c.l.b16 %v606
          %v926 = vunpack.c.h.b16 %v606
          %v927 = vunpack.c.l.b16 %v607
          %v928 = vunpack.c.h.b16 %v607
          %v929 = vunpack.c.l.b16 %v608
          %v930 = vunpack.c.h.b16 %v608
          %v931 = vunpack.c.l.b16 %v609
          %v932 = vunpack.c.h.b16 %v609
          %v933 = vunpack.c.l.b16 %v610
          %v934 = vunpack.c.h.b16 %v610
          %v935 = vunpack.c.l.b16 %v611
          %v936 = vunpack.c.h.b16 %v611
          %v937 = vunpack.c.l.b16 %v612
          %v938 = vunpack.c.h.b16 %v612
          %v939 = vunpack.c.l.b16 %v613
          %v940 = vunpack.c.h.b16 %v613
          %v941 = vunpack.c.l.b16 %v614
          %v942 = vunpack.c.h.b16 %v614
          %v943 = vunpack.c.l.b16 %v615
          %v944 = vunpack.c.h.b16 %v615
          %v945 = vunpack.c.l.b16 %v616
          %v946 = vunpack.c.h.b16 %v616
          %v947 = vunpack.c.l.b16 %v617
          %v948 = vunpack.c.h.b16 %v617
          %v949 = vunpack.c.l.b16 %v618
          %v950 = vunpack.c.h.b16 %v618
          %v951 = vunpack.c.l.b16 %v619
          %v952 = vunpack.c.h.b16 %v619
          %v953 = vunpack.c.l.b16 %v620
          %v954 = vunpack.c.h.b16 %v620
          %v955 = vunpack.c.l.b16 %v621
          %v956 = vunpack.c.h.b16 %v621
          %v957 = vunpack.c.l.b16 %v622
          %v958 = vunpack.c.h.b16 %v622
          %v959 = vunpack.c.l.b16 %v623
          %v960 = vunpack.c.h.b16 %v623
          %v961 = vunpack.c.l.b16 %v624
          %v962 = vunpack.c.h.b16 %v624
          %v963 = vunpack.c.l.b16 %v625
          %v964 = vunpack.c.h.b16 %v625
          %v965 = vunpack.c.l.b16 %v626
          %v966 = vunpack.c.h.b16 %v626
          %v967 = vunpack.c.l.b16 %v627
          %v968 = vunpack.c.h.b16 %v627
          %v969 = vunpack.c.l.b16 %v628
          %v970 = vunpack.c.h.b16 %v628
          %v971 = vunpack.c.l.b16 %v629
          %v972 = vunpack.c.h.b16 %v629
          %v973 = vunpack.c.l.b16 %v630
          %v974 = vunpack.c.h.b16 %v630
          %v975 = vunpack.c.l.b16 %v631
          %v976 = vunpack.c.h.b16 %v631
          %v977 = vunpack.c.l.b16 %v632
          %v978 = vunpack.c.h.b16 %v632
          %v979 = vunpack.c.l.b16 %v633
          %v980 = vunpack.c.h.b16 %v633
          %v981 = vunpack.c.l.b16 %v634
          %v982 = vunpack.c.h.b16 %v634
          %v983 = vunpack.c.l.b16 %v635
          %v984 = vunpack.c.h.b16 %v635
          %v985 = vunpack.c.l.b16 %v636
          %v986 = vunpack.c.h.b16 %v636
          %v987 = vunpack.c.l.b16 %v637
          %v988 = vunpack.c.h.b16 %v637
          %v989 = vunpack.c.l.b16 %v638
          %v990 = vunpack.c.h.b16 %v638
          %v991 = vunpack.c.l.b16 %v639
          %v992 = vunpack.c.h.b16 %v639
          %v993 = vunpack.c.l.b16 %v640
          %v994 = vunpack.c.h.b16 %v640
          %v995 = vunpack.c.l.b16 %v641
          %v996 = vunpack.c.h.b16 %v641
          %v997 = vunpack.c.l.b16 %v642
          %v998 = vunpack.c.h.b16 %v642
          %v999 = vunpack.c.l.b16 %v643
          %v1000 = vunpack.c.h.b16 %v643
          %v1001 = vunpack.c.l.b16 %v644
          %v1002 = vunpack.c.h.b16 %v644
          %v1003 = vunpack.c.l.b16 %v645
          %v1004 = vunpack.c.h.b16 %v645
          %v1005 = vunpack.c.l.b16 %v646
          %v1006 = vunpack.c.h.b16 %v646
          %v1007 = vunpack.c.l.b16 %v647
          %v1008 = vunpack.c.h.b16 %v647
          %v1009 = vunpack.c.l.b16 %v648
          %v1010 = vunpack.c.h.b16 %v648
          %v1011 = vunpack.c.l.b16 %v649
          %v1012 = vunpack.c.h.b16 %v649
          %v1013 = vunpack.c.l.b16 %v650
          %v1014 = vunpack.c.h.b16 %v650
          %v1015 = vunpack.c.l.b16 %v651
          %v1016 = vunpack.c.h.b16 %v651
          %v1017 = vunpack.c.l.b16 %v652
          %v1018 = vunpack.c.h.b16 %v652
          %v1019 = vunpack.c.l.b16 %v653
          %v1020 = vunpack.c.h.b16 %v653
          %v1021 = vunpack.c.l.b16 %v654
          %v1022 = vunpack.c.h.b16 %v654
          %v1023 = vunpack.c.l.b16 %v655
          %v1024 = vunpack.c.h.b16 %v655
          %v1025 = vunpack.c.l.b16 %v656
          %v1026 = vunpack.c.h.b16 %v656
          %v1027 = vunpack.c.l.b16 %v657
          %v1028 = vunpack.c.h.b16 %v657
          %v1029 = vunpack.c.l.b16 %v658
          %v1030 = vunpack.c.h.b16 %v658
          %v1031 = vunpack.c.l.b16 %v659
          %v1032 = vunpack.c.h.b16 %v659
          %v1033 = vunpack.c.l.b16 %v660
          %v1034 = vunpack.c.h.b16 %v660
          %v1035 = vunpack.c.l.b16 %v661
          %v1036 = vunpack.c.h.b16 %v661
          %v1037 = vunpack.c.l.b16 %v662
          %v1038 = vunpack.c.h.b16 %v662
          %v1039 = vunpack.c.l.b16 %v663
          %v1040 = vunpack.c.h.b16 %v663
          %v1041 = vunpack.c.l.b16 %v664
          %v1042 = vunpack.c.h.b16 %v664
          %v1043 = vunpack.c.l.b16 %v665
          %v1044 = vunpack.c.h.b16 %v665
          %v1045 = vunpack.c.l.b16 %v666
          %v1046 = vunpack.c.h.b16 %v666
          %v1047 = vunpack.c.l.b16 %v667
          %v1048 = vunpack.c.h.b16 %v667
          %v1049 = vunpack.c.l.b16 %v668
          %v1050 = vunpack.c.h.b16 %v668
          %v1051 = vunpack.c.l.b16 %v669
          %v1052 = vunpack.c.h.b16 %v669
          %v1053 = vunpack.c.l.b16 %v670
          %v1054 = vunpack.c.h.b16 %v670
          %v1055 = vunpack.c.l.b16 %v671
          %v1056 = vunpack.c.h.b16 %v671
          %v1057 = vunpack.c.l.b16 %v672
          %v1058 = vunpack.c.h.b16 %v672
          %v1059 = vunpack.c.l.b16 %v673
          %v1060 = vunpack.c.h.b16 %v673
          %v1061 = vunpack.c.l.b16 %v674
          %v1062 = vunpack.c.h.b16 %v674
          %v1063 = vunpack.c.l.b16 %v675
          %v1064 = vunpack.c.h.b16 %v675
          %v1065 = vunpack.c.l.b16 %v676
          %v1066 = vunpack.c.h.b16 %v676
          %v1067 = vunpack.c.l.b16 %v677
          %v1068 = vunpack.c.h.b16 %v677
          %v1069 = vunpack.c.l.b16 %v678
          %v1070 = vunpack.c.h.b16 %v678
          %v1071 = vunpack.c.l.b16 %v679
          %v1072 = vunpack.c.h.b16 %v679
          %v1073 = vunpack.c.l.b16 %v680
          %v1074 = vunpack.c.h.b16 %v680
          %v1075 = vunpack.c.l.b16 %v681
          %v1076 = vunpack.c.h.b16 %v681
          %v1077 = vunpack.c.l.b16 %v682
          %v1078 = vunpack.c.h.b16 %v682
          %v1079 = vunpack.c.l.b16 %v683
          %v1080 = vunpack.c.h.b16 %v683
          %v1081 = vunpack.c.l.b16 %v684
          %v1082 = vunpack.c.h.b16 %v684
          %v1083 = vunpack.c.l.b16 %v685
          %v1084 = vunpack.c.h.b16 %v685
          %v1085 = vunpack.c.l.b16 %v686
          %v1086 = vunpack.c.h.b16 %v686
          %v1087 = vunpack.c.l.b16 %v687
          %v1088 = vunpack.c.h.b16 %v687
          %v1089 = vunpack.c.l.b16 %v688
          %v1090 = vunpack.c.h.b16 %v688
          %v1091 = vunpack.c.l.b16 %v689
          %v1092 = vunpack.c.h.b16 %v689
          %v1093 = vunpack.c.l.b16 %v690
          %v1094 = vunpack.c.h.b16 %v690
          %v1095 = vunpack.c.l.b16 %v691
          %v1096 = vunpack.c.h.b16 %v691
          %v1097 = vunpack.c.l.b16 %v692
          %v1098 = vunpack.c.h.b16 %v692
          %v1099 = vunpack.c.l.b16 %v693
          %v1100 = vunpack.c.h.b16 %v693
          %v1101 = vunpack.c.l.b16 %v694
          %v1102 = vunpack.c.h.b16 %v694
          %v1103 = vunpack.c.l.b16 %v695
          %v1104 = vunpack.c.h.b16 %v695
          %v1105 = vunpack.c.l.b16 %v696
          %v1106 = vunpack.c.h.b16 %v696
          %v1107 = vunpack.c.l.b16 %v697
          %v1108 = vunpack.c.h.b16 %v697
          %v1109 = vunpack.c.l.b16 %v698
          %v1110 = vunpack.c.h.b16 %v698
          %v1111 = vpack.c.b16 %v863, %v855
          %v1112 = vpack.c.b16 %v864, %v856
          %v1113 = vpack.c.b16 %v865, %v857
          %v1114 = vpack.c.b16 %v866, %v858
          %v1115 = vpack.c.b16 %v867, %v859
          %v1116 = vpack.c.b16 %v868, %v860
          %v1117 = vpack.c.b16 %v869, %v861
          %v1118 = vpack.c.b16 %v870, %v862
          %v1119 = vpack.c.b16 %v879, %v871
          %v1120 = vpack.c.b16 %v880, %v872
          %v1121 = vpack.c.b16 %v881, %v873
          %v1122 = vpack.c.b16 %v882, %v874
          %v1123 = vpack.c.b16 %v883, %v875
          %v1124 = vpack.c.b16 %v884, %v876
          %v1125 = vpack.c.b16 %v885, %v877
          %v1126 = vpack.c.b16 %v886, %v878
          %v1127 = vpack.c.b16 %v895, %v887
          %v1128 = vpack.c.b16 %v896, %v888
          %v1129 = vpack.c.b16 %v897, %v889
          %v1130 = vpack.c.b16 %v898, %v890
          %v1131 = vpack.c.b16 %v899, %v891
          %v1132 = vpack.c.b16 %v900, %v892
          %v1133 = vpack.c.b16 %v901, %v893
          %v1134 = vpack.c.b16 %v902, %v894
          %v1135 = vpack.c.b16 %v911, %v903
          %v1136 = vpack.c.b16 %v912, %v904
          %v1137 = vpack.c.b16 %v913, %v905
          %v1138 = vpack.c.b16 %v914, %v906
          %v1139 = vpack.c.b16 %v915, %v907
          %v1140 = vpack.c.b16 %v916, %v908
          %v1141 = vpack.c.b16 %v917, %v909
          %v1142 = vpack.c.b16 %v918, %v910
          %v1143 = vpack.c.b16 %v927, %v919
          %v1144 = vpack.c.b16 %v928, %v920
          %v1145 = vpack.c.b16 %v929, %v921
          %v1146 = vpack.c.b16 %v930, %v922
          %v1147 = vpack.c.b16 %v931, %v923
          %v1148 = vpack.c.b16 %v932, %v924
          %v1149 = vpack.c.b16 %v933, %v925
          %v1150 = vpack.c.b16 %v934, %v926
          %v1151 = vpack.c.b16 %v943, %v935
          %v1152 = vpack.c.b16 %v944, %v936
          %v1153 = vpack.c.b16 %v945, %v937
          %v1154 = vpack.c.b16 %v946, %v938
          %v1155 = vpack.c.b16 %v947, %v939
          %v1156 = vpack.c.b16 %v948, %v940
          %v1157 = vpack.c.b16 %v949, %v941
          %v1158 = vpack.c.b16 %v950, %v942
          %v1159 = vpack.c.b16 %v959, %v951
          %v1160 = vpack.c.b16 %v960, %v952
          %v1161 = vpack.c.b16 %v961, %v953
          %v1162 = vpack.c.b16 %v962, %v954
          %v1163 = vpack.c.b16 %v963, %v955
          %v1164 = vpack.c.b16 %v964, %v956
          %v1165 = vpack.c.b16 %v965, %v957
          %v1166 = vpack.c.b16 %v966, %v958
          %v1167 = vpack.c.b16 %v975, %v967
          %v1168 = vpack.c.b16 %v976, %v968
          %v1169 = vpack.c.b16 %v977, %v969
          %v1170 = vpack.c.b16 %v978, %v970
          %v1171 = vpack.c.b16 %v979, %v971
          %v1172 = vpack.c.b16 %v980, %v972
          %v1173 = vpack.c.b16 %v981, %v973
          %v1174 = vpack.c.b16 %v982, %v974
          %v1175 = vpack.c.b16 %v991, %v983
          %v1176 = vpack.c.b16 %v992, %v984
          %v1177 = vpack.c.b16 %v993, %v985
          %v1178 = vpack.c.b16 %v994, %v986
          %v1179 = vpack.c.b16 %v995, %v987
          %v1180 = vpack.c.b16 %v996, %v988
          %v1181 = vpack.c.b16 %v997, %v989
          %v1182 = vpack.c.b16 %v998, %v990
          %v1183 = vpack.c.b16 %v1007, %v999
          %v1184 = vpack.c.b16 %v1008, %v1000
          %v1185 = vpack.c.b16 %v1009, %v1001
          %v1186 = vpack.c.b16 %v1010, %v1002
          %v1187 = vpack.c.b16 %v1011, %v1003
          %v1188 = vpack.c.b16 %v1012, %v1004
          %v1189 = vpack.c.b16 %v1013, %v1005
          %v1190 = vpack.c.b16 %v1014, %v1006
          %v1191 = vpack.c.b16 %v1023, %v1015
          %v1192 = vpack.c.b16 %v1024, %v1016
          %v1193 = vpack.c.b16 %v1025, %v1017
          %v1194 = vpack.c.b16 %v1026, %v1018
          %v1195 = vpack.c.b16 %v1027, %v1019
          %v1196 = vpack.c.b16 %v1028, %v1020
          %v1197 = vpack.c.b16 %v1029, %v1021
          %v1198 = vpack.c.b16 %v1030, %v1022
          %v1199 = vpack.c.b16 %v1039, %v1031
          %v1200 = vpack.c.b16 %v1040, %v1032
          %v1201 = vpack.c.b16 %v1041, %v1033
          %v1202 = vpack.c.b16 %v1042, %v1034
          %v1203 = vpack.c.b16 %v1043, %v1035
          %v1204 = vpack.c.b16 %v1044, %v1036
          %v1205 = vpack.c.b16 %v1045, %v1037
          %v1206 = vpack.c.b16 %v1046, %v1038
          %v1207 = vpack.c.b16 %v1055, %v1047
          %v1208 = vpack.c.b16 %v1056, %v1048
          %v1209 = vpack.c.b16 %v1057, %v1049
          %v1210 = vpack.c.b16 %v1058, %v1050
          %v1211 = vpack.c.b16 %v1059, %v1051
          %v1212 = vpack.c.b16 %v1060, %v1052
          %v1213 = vpack.c.b16 %v1061, %v1053
          %v1214 = vpack.c.b16 %v1062, %v1054
          %v1215 = vpack.c.b16 %v1071, %v1063
          %v1216 = vpack.c.b16 %v1072, %v1064
          %v1217 = vpack.c.b16 %v1073, %v1065
          %v1218 = vpack.c.b16 %v1074, %v1066
          %v1219 = vpack.c.b16 %v1075, %v1067
          %v1220 = vpack.c.b16 %v1076, %v1068
          %v1221 = vpack.c.b16 %v1077, %v1069
          %v1222 = vpack.c.b16 %v1078, %v1070
          %v1223 = vpack.c.b16 %v1087, %v1079
          %v1224 = vpack.c.b16 %v1088, %v1080
          %v1225 = vpack.c.b16 %v1089, %v1081
          %v1226 = vpack.c.b16 %v1090, %v1082
          %v1227 = vpack.c.b16 %v1091, %v1083
          %v1228 = vpack.c.b16 %v1092, %v1084
          %v1229 = vpack.c.b16 %v1093, %v1085
          %v1230 = vpack.c.b16 %v1094, %v1086
          %v1231 = vpack.c.b16 %v1103, %v1095
          %v1232 = vpack.c.b16 %v1104, %v1096
          %v1233 = vpack.c.b16 %v1105, %v1097
          %v1234 = vpack.c.b16 %v1106, %v1098
          %v1235 = vpack.c.b16 %v1107, %v1099
          %v1236 = vpack.c.b16 %v1108, %v1100
          %v1237 = vpack.c.b16 %v1109, %v1101
          %v1238 = vpack.c.b16 %v1110, %v1102
          %1367 = vmatpush.bf16.msra.mxu0 %v1167
          %1368 = vmatpush.bf16.msra.mxu0 %v1159
          %1369 = vmatpush.bf16.msra.mxu0 %v1151
          %1370 = vmatpush.bf16.msra.mxu0 %v1143
          %1371 = vmatpush.bf16.msra.mxu0 %v1135
          %1372 = vmatpush.bf16.msra.mxu0 %v1127
          %1373 = vmatpush.bf16.msra.mxu0 %v1119
          %1374 = vmatpush.bf16.msra.mxu0 %v1111
          %1375 = vmatmul.bf16.gmra.mxu0 %v723
          %v1376 = vpop.f32.mrf.mxu0
          %v1377 = vadd.f32 %v701, %v1376
          %v1378 = vpop.f32.mrf.mxu0
          %v1379 = vadd.f32 %v701, %v1378
          %1380 = vdwg.mxu0
          %1381 = vmatpush.bf16.msra.mxu0 %v1231
          %1382 = vmatpush.bf16.msra.mxu0 %v1223
          %1383 = vmatpush.bf16.msra.mxu0 %v1215
          %1384 = vmatpush.bf16.msra.mxu0 %v1207
          %1385 = vmatpush.bf16.msra.mxu0 %v1199
          %1386 = vmatpush.bf16.msra.mxu0 %v1191
          %1387 = vmatpush.bf16.msra.mxu0 %v1183
          %1388 = vmatpush.bf16.msra.mxu0 %v1175
          %1389 = vmatmul.bf16.gmra.mxu0 %v724
          %v1390 = vpop.f32.mrf.mxu0
          %v1391 = vadd.f32 %v1377, %v1390
          %v1392 = vpop.f32.mrf.mxu0
          %v1393 = vadd.f32 %v1379, %v1392
          %1394 = vdwg.mxu0
          %1395 = vmatpush.bf16.msra.mxu0 %v1168
          %1396 = vmatpush.bf16.msra.mxu0 %v1160
          %1397 = vmatpush.bf16.msra.mxu0 %v1152
          %1398 = vmatpush.bf16.msra.mxu0 %v1144
          %1399 = vmatpush.bf16.msra.mxu0 %v1136
          %1400 = vmatpush.bf16.msra.mxu0 %v1128
          %1401 = vmatpush.bf16.msra.mxu0 %v1120
          %1402 = vmatpush.bf16.msra.mxu0 %v1112
          %1403 = vmatmul.bf16.gmra.mxu0 %v723
          %v1404 = vpop.f32.mrf.mxu0
          %v1405 = vadd.f32 %v702, %v1404
          %v1406 = vpop.f32.mrf.mxu0
          %v1407 = vadd.f32 %v702, %v1406
          %1408 = vdwg.mxu0
          %1409 = vmatpush.bf16.msra.mxu0 %v1232
          %1410 = vmatpush.bf16.msra.mxu0 %v1224
          %1411 = vmatpush.bf16.msra.mxu0 %v1216
          %1412 = vmatpush.bf16.msra.mxu0 %v1208
          %1413 = vmatpush.bf16.msra.mxu0 %v1200
          %1414 = vmatpush.bf16.msra.mxu0 %v1192
          %1415 = vmatpush.bf16.msra.mxu0 %v1184
          %1416 = vmatpush.bf16.msra.mxu0 %v1176
          %1417 = vmatmul.bf16.gmra.mxu0 %v724
          %v1418 = vpop.f32.mrf.mxu0
          %v1419 = vadd.f32 %v1405, %v1418
          %v1420 = vpop.f32.mrf.mxu0
          %v1421 = vadd.f32 %v1407, %v1420
          %1422 = vdwg.mxu0
          %1423 = vmatpush.bf16.msra.mxu0 %v1169
          %1424 = vmatpush.bf16.msra.mxu0 %v1161
          %1425 = vmatpush.bf16.msra.mxu0 %v1153
          %1426 = vmatpush.bf16.msra.mxu0 %v1145
          %1427 = vmatpush.bf16.msra.mxu0 %v1137
          %1428 = vmatpush.bf16.msra.mxu0 %v1129
          %1429 = vmatpush.bf16.msra.mxu0 %v1121
          %1430 = vmatpush.bf16.msra.mxu0 %v1113
          %1431 = vmatmul.bf16.gmra.mxu0 %v723
          %v1432 = vpop.f32.mrf.mxu0
          %v1433 = vadd.f32 %v703, %v1432
          %v1434 = vpop.f32.mrf.mxu0
          %v1435 = vadd.f32 %v703, %v1434
          %1436 = vdwg.mxu0
          %1437 = vmatpush.bf16.msra.mxu0 %v1233
          %1438 = vmatpush.bf16.msra.mxu0 %v1225
          %1439 = vmatpush.bf16.msra.mxu0 %v1217
          %1440 = vmatpush.bf16.msra.mxu0 %v1209
          %1441 = vmatpush.bf16.msra.mxu0 %v1201
          %1442 = vmatpush.bf16.msra.mxu0 %v1193
          %1443 = vmatpush.bf16.msra.mxu0 %v1185
          %1444 = vmatpush.bf16.msra.mxu0 %v1177
          %1445 = vmatmul.bf16.gmra.mxu0 %v724
          %v1446 = vpop.f32.mrf.mxu0
          %v1447 = vadd.f32 %v1433, %v1446
          %v1448 = vpop.f32.mrf.mxu0
          %v1449 = vadd.f32 %v1435, %v1448
          %1450 = vdwg.mxu0
          %1451 = vmatpush.bf16.msra.mxu0 %v1170
          %1452 = vmatpush.bf16.msra.mxu0 %v1162
          %1453 = vmatpush.bf16.msra.mxu0 %v1154
          %1454 = vmatpush.bf16.msra.mxu0 %v1146
          %1455 = vmatpush.bf16.msra.mxu0 %v1138
          %1456 = vmatpush.bf16.msra.mxu0 %v1130
          %1457 = vmatpush.bf16.msra.mxu0 %v1122
          %1458 = vmatpush.bf16.msra.mxu0 %v1114
          %1459 = vmatmul.bf16.gmra.mxu0 %v723
          %v1460 = vpop.f32.mrf.mxu0
          %v1461 = vadd.f32 %v704, %v1460
          %v1462 = vpop.f32.mrf.mxu0
          %v1463 = vadd.f32 %v704, %v1462
          %1464 = vdwg.mxu0
          %1465 = vmatpush.bf16.msra.mxu0 %v1234
          %1466 = vmatpush.bf16.msra.mxu0 %v1226
          %1467 = vmatpush.bf16.msra.mxu0 %v1218
          %1468 = vmatpush.bf16.msra.mxu0 %v1210
          %1469 = vmatpush.bf16.msra.mxu0 %v1202
          %1470 = vmatpush.bf16.msra.mxu0 %v1194
          %1471 = vmatpush.bf16.msra.mxu0 %v1186
          %1472 = vmatpush.bf16.msra.mxu0 %v1178
          %1473 = vmatmul.bf16.gmra.mxu0 %v724
          %v1474 = vpop.f32.mrf.mxu0
          %v1475 = vadd.f32 %v1461, %v1474
          %v1476 = vpop.f32.mrf.mxu0
          %v1477 = vadd.f32 %v1463, %v1476
          %1478 = vdwg.mxu0
          %1479 = vmatpush.bf16.msra.mxu0 %v1171
          %1480 = vmatpush.bf16.msra.mxu0 %v1163
          %1481 = vmatpush.bf16.msra.mxu0 %v1155
          %1482 = vmatpush.bf16.msra.mxu0 %v1147
          %1483 = vmatpush.bf16.msra.mxu0 %v1139
          %1484 = vmatpush.bf16.msra.mxu0 %v1131
          %1485 = vmatpush.bf16.msra.mxu0 %v1123
          %1486 = vmatpush.bf16.msra.mxu0 %v1115
          %1487 = vmatmul.bf16.gmra.mxu0 %v723
          %v1488 = vpop.f32.mrf.mxu0
          %v1489 = vadd.f32 %v705, %v1488
          %v1490 = vpop.f32.mrf.mxu0
          %v1491 = vadd.f32 %v705, %v1490
          %1492 = vdwg.mxu0
          %1493 = vmatpush.bf16.msra.mxu0 %v1235
          %1494 = vmatpush.bf16.msra.mxu0 %v1227
          %1495 = vmatpush.bf16.msra.mxu0 %v1219
          %1496 = vmatpush.bf16.msra.mxu0 %v1211
          %1497 = vmatpush.bf16.msra.mxu0 %v1203
          %1498 = vmatpush.bf16.msra.mxu0 %v1195
          %1499 = vmatpush.bf16.msra.mxu0 %v1187
          %1500 = vmatpush.bf16.msra.mxu0 %v1179
          %1501 = vmatmul.bf16.gmra.mxu0 %v724
          %v1502 = vpop.f32.mrf.mxu0
          %v1503 = vadd.f32 %v1489, %v1502
          %v1504 = vpop.f32.mrf.mxu0
          %v1505 = vadd.f32 %v1491, %v1504
          %1506 = vdwg.mxu0
          %1507 = vmatpush.bf16.msra.mxu0 %v1172
          %1508 = vmatpush.bf16.msra.mxu0 %v1164
          %1509 = vmatpush.bf16.msra.mxu0 %v1156
          %1510 = vmatpush.bf16.msra.mxu0 %v1148
          %1511 = vmatpush.bf16.msra.mxu0 %v1140
          %1512 = vmatpush.bf16.msra.mxu0 %v1132
          %1513 = vmatpush.bf16.msra.mxu0 %v1124
          %1514 = vmatpush.bf16.msra.mxu0 %v1116
          %1515 = vmatmul.bf16.gmra.mxu0 %v723
          %v1516 = vpop.f32.mrf.mxu0
          %v1517 = vadd.f32 %v706, %v1516
          %v1518 = vpop.f32.mrf.mxu0
          %v1519 = vadd.f32 %v706, %v1518
          %1520 = vdwg.mxu0
          %1521 = vmatpush.bf16.msra.mxu0 %v1236
          %1522 = vmatpush.bf16.msra.mxu0 %v1228
          %1523 = vmatpush.bf16.msra.mxu0 %v1220
          %1524 = vmatpush.bf16.msra.mxu0 %v1212
          %1525 = vmatpush.bf16.msra.mxu0 %v1204
          %1526 = vmatpush.bf16.msra.mxu0 %v1196
          %1527 = vmatpush.bf16.msra.mxu0 %v1188
          %1528 = vmatpush.bf16.msra.mxu0 %v1180
          %1529 = vmatmul.bf16.gmra.mxu0 %v724
          %v1530 = vpop.f32.mrf.mxu0
          %v1531 = vadd.f32 %v1517, %v1530
          %v1532 = vpop.f32.mrf.mxu0
          %v1533 = vadd.f32 %v1519, %v1532
          %1534 = vdwg.mxu0
          %1535 = vmatpush.bf16.msra.mxu0 %v1173
          %1536 = vmatpush.bf16.msra.mxu0 %v1165
          %1537 = vmatpush.bf16.msra.mxu0 %v1157
          %1538 = vmatpush.bf16.msra.mxu0 %v1149
          %1539 = vmatpush.bf16.msra.mxu0 %v1141
          %1540 = vmatpush.bf16.msra.mxu0 %v1133
          %1541 = vmatpush.bf16.msra.mxu0 %v1125
          %1542 = vmatpush.bf16.msra.mxu0 %v1117
          %1543 = vmatmul.bf16.gmra.mxu0 %v723
          %v1544 = vpop.f32.mrf.mxu0
          %v1545 = vadd.f32 %v707, %v1544
          %v1546 = vpop.f32.mrf.mxu0
          %v1547 = vadd.f32 %v707, %v1546
          %1548 = vdwg.mxu0
          %1549 = vmatpush.bf16.msra.mxu0 %v1237
          %1550 = vmatpush.bf16.msra.mxu0 %v1229
          %1551 = vmatpush.bf16.msra.mxu0 %v1221
          %1552 = vmatpush.bf16.msra.mxu0 %v1213
          %1553 = vmatpush.bf16.msra.mxu0 %v1205
          %1554 = vmatpush.bf16.msra.mxu0 %v1197
          %1555 = vmatpush.bf16.msra.mxu0 %v1189
          %1556 = vmatpush.bf16.msra.mxu0 %v1181
          %1557 = vmatmul.bf16.gmra.mxu0 %v724
          %v1558 = vpop.f32.mrf.mxu0
          %v1559 = vadd.f32 %v1545, %v1558
          %v1560 = vpop.f32.mrf.mxu0
          %v1561 = vadd.f32 %v1547, %v1560
          %1562 = vdwg.mxu0
          %1563 = vmatpush.bf16.msra.mxu0 %v1174
          %1564 = vmatpush.bf16.msra.mxu0 %v1166
          %1565 = vmatpush.bf16.msra.mxu0 %v1158
          %1566 = vmatpush.bf16.msra.mxu0 %v1150
          %1567 = vmatpush.bf16.msra.mxu0 %v1142
          %1568 = vmatpush.bf16.msra.mxu0 %v1134
          %1569 = vmatpush.bf16.msra.mxu0 %v1126
          %1570 = vmatpush.bf16.msra.mxu0 %v1118
          %1571 = vmatmul.bf16.gmra.mxu0 %v723
          %v1572 = vpop.f32.mrf.mxu0
          %v1573 = vadd.f32 %v708, %v1572
          %v1574 = vpop.f32.mrf.mxu0
          %v1575 = vadd.f32 %v708, %v1574
          %1576 = vdwg.mxu0
          %1577 = vmatpush.bf16.msra.mxu0 %v1238
          %1578 = vmatpush.bf16.msra.mxu0 %v1230
          %1579 = vmatpush.bf16.msra.mxu0 %v1222
          %1580 = vmatpush.bf16.msra.mxu0 %v1214
          %1581 = vmatpush.bf16.msra.mxu0 %v1206
          %1582 = vmatpush.bf16.msra.mxu0 %v1198
          %1583 = vmatpush.bf16.msra.mxu0 %v1190
          %1584 = vmatpush.bf16.msra.mxu0 %v1182
          %1585 = vmatmul.bf16.gmra.mxu0 %v724
          %v1586 = vpop.f32.mrf.mxu0
          %v1587 = vadd.f32 %v1573, %v1586
          %v1588 = vpop.f32.mrf.mxu0
          %v1589 = vadd.f32 %v1575, %v1588
          %1590 = vdwg.mxu0
          %v1591 = vtanh.pop %v1391
          %v1592 = vtanh.pop %v1419
          %v1593 = vtanh.pop %v1447
          %v1594 = vtanh.pop %v1475
          %v1595 = vtanh.pop %v1503
          %v1596 = vtanh.pop %v1531
          %v1597 = vtanh.pop %v1559
          %v1598 = vtanh.pop %v1587
          %v1599 = vtanh.pop %v1393
          %v1600 = vtanh.pop %v1421
          %v1601 = vtanh.pop %v1449
          %v1602 = vtanh.pop %v1477
          %v1603 = vtanh.pop %v1505
          %v1604 = vtanh.pop %v1533
          %v1605 = vtanh.pop %v1561
          %v1606 = vtanh.pop %v1589
          %v1607 = vpack.c.bf16 %v1592, %v1591
          %v1608 = vpack.c.bf16 %v1594, %v1593
          %v1609 = vpack.c.bf16 %v1596, %v1595
          %v1610 = vpack.c.bf16 %v1598, %v1597
          %v1611 = vpack.c.bf16 %v1600, %v1599
          %v1612 = vpack.c.bf16 %v1602, %v1601
          %v1613 = vpack.c.bf16 %v1604, %v1603
          %v1614 = vpack.c.bf16 %v1606, %v1605
          %v1615 = vld [vmem:[#allocation10] sm:$0xf]
          %v1616 = vld [vmem:[#allocation10 + $0x4] sm:$0xf]
          %v1619 = vunpack.c.l.b16 %v1615
          %v1620 = vunpack.c.l.b16 %v1616
          %v1621 = vpack.c.b16 %v1620, %v1619
          %v1630 = vunpack.c.l.b16 %v1607
          %v1631 = vunpack.c.h.b16 %v1607
          %v1632 = vunpack.c.l.b16 %v1608
          %v1633 = vunpack.c.h.b16 %v1608
          %v1634 = vunpack.c.l.b16 %v1609
          %v1635 = vunpack.c.h.b16 %v1609
          %v1636 = vunpack.c.l.b16 %v1610
          %v1637 = vunpack.c.h.b16 %v1610
          %v1638 = vunpack.c.l.b16 %v1611
          %v1639 = vunpack.c.h.b16 %v1611
          %v1640 = vunpack.c.l.b16 %v1612
          %v1641 = vunpack.c.h.b16 %v1612
          %v1642 = vunpack.c.l.b16 %v1613
          %v1643 = vunpack.c.h.b16 %v1613
          %v1644 = vunpack.c.l.b16 %v1614
          %v1645 = vunpack.c.h.b16 %v1614
          %v1646 = vpack.c.b16 %v1638, %v1630
          %v1647 = vpack.c.b16 %v1639, %v1631
          %v1648 = vpack.c.b16 %v1640, %v1632
          %v1649 = vpack.c.b16 %v1641, %v1633
          %v1650 = vpack.c.b16 %v1642, %v1634
          %v1651 = vpack.c.b16 %v1643, %v1635
          %v1652 = vpack.c.b16 %v1644, %v1636
          %v1653 = vpack.c.b16 %v1645, %v1637
          %vm1662 = vcmask 130048
          %v1664 = vsel %vm1662, %v1621, 0
          %1666 = vmatpush.bf16.msra.mxu0 0
          %1667 = vmatpush.bf16.msra.mxu0 0
          %1668 = vmatpush.bf16.msra.mxu0 0
          %1669 = vmatpush.bf16.msra.mxu0 0
          %1670 = vmatpush.bf16.msra.mxu0 0
          %1671 = vmatpush.bf16.msra.mxu0 0
          %1672 = vmatpush.bf16.msra.mxu0 0
          %1673 = vmatpush.bf16.msra.mxu0 %v1646
          %1674 = vmatmul.bf16.gmra.mxu0 %v1664
          %v1675 = vpop.f32.mrf.mxu0
          %v1676 = vadd.f32 0.0, %v1675
          %v1677 = vpop.f32.mrf.mxu0
          %v1678 = vadd.f32 0.0, %v1677
          %1679 = vdwg.mxu0
          %1680 = vmatpush.bf16.msra.mxu0 0
          %1681 = vmatpush.bf16.msra.mxu0 0
          %1682 = vmatpush.bf16.msra.mxu0 0
          %1683 = vmatpush.bf16.msra.mxu0 0
          %1684 = vmatpush.bf16.msra.mxu0 0
          %1685 = vmatpush.bf16.msra.mxu0 0
          %1686 = vmatpush.bf16.msra.mxu0 0
          %1687 = vmatpush.bf16.msra.mxu0 %v1647
          %1688 = vmatmul.bf16.gmra.mxu0 %v1664
          %v1689 = vpop.f32.mrf.mxu0
          %v1690 = vadd.f32 0.0, %v1689
          %v1691 = vpop.f32.mrf.mxu0
          %v1692 = vadd.f32 0.0, %v1691
          %1693 = vdwg.mxu0
          %1694 = vmatpush.bf16.msra.mxu0 0
          %1695 = vmatpush.bf16.msra.mxu0 0
          %1696 = vmatpush.bf16.msra.mxu0 0
          %1697 = vmatpush.bf16.msra.mxu0 0
          %1698 = vmatpush.bf16.msra.mxu0 0
          %1699 = vmatpush.bf16.msra.mxu0 0
          %1700 = vmatpush.bf16.msra.mxu0 0
          %1701 = vmatpush.bf16.msra.mxu0 %v1648
          %1702 = vmatmul.bf16.gmra.mxu0 %v1664
          %v1703 = vpop.f32.mrf.mxu0
          %v1704 = vadd.f32 0.0, %v1703
          %v1705 = vpop.f32.mrf.mxu0
          %v1706 = vadd.f32 0.0, %v1705
          %1707 = vdwg.mxu0
          %1708 = vmatpush.bf16.msra.mxu0 0
          %1709 = vmatpush.bf16.msra.mxu0 0
          %1710 = vmatpush.bf16.msra.mxu0 0
          %1711 = vmatpush.bf16.msra.mxu0 0
          %1712 = vmatpush.bf16.msra.mxu0 0
          %1713 = vmatpush.bf16.msra.mxu0 0
          %1714 = vmatpush.bf16.msra.mxu0 0
          %1715 = vmatpush.bf16.msra.mxu0 %v1649
          %1716 = vmatmul.bf16.gmra.mxu0 %v1664
          %v1717 = vpop.f32.mrf.mxu0
          %v1718 = vadd.f32 0.0, %v1717
          %v1719 = vpop.f32.mrf.mxu0
          %v1720 = vadd.f32 0.0, %v1719
          %1721 = vdwg.mxu0
          %1722 = vmatpush.bf16.msra.mxu0 0
          %1723 = vmatpush.bf16.msra.mxu0 0
          %1724 = vmatpush.bf16.msra.mxu0 0
          %1725 = vmatpush.bf16.msra.mxu0 0
          %1726 = vmatpush.bf16.msra.mxu0 0
          %1727 = vmatpush.bf16.msra.mxu0 0
          %1728 = vmatpush.bf16.msra.mxu0 0
          %1729 = vmatpush.bf16.msra.mxu0 %v1650
          %1730 = vmatmul.bf16.gmra.mxu0 %v1664
          %v1731 = vpop.f32.mrf.mxu0
          %v1732 = vadd.f32 0.0, %v1731
          %v1733 = vpop.f32.mrf.mxu0
          %v1734 = vadd.f32 0.0, %v1733
          %1735 = vdwg.mxu0
          %1736 = vmatpush.bf16.msra.mxu0 0
          %1737 = vmatpush.bf16.msra.mxu0 0
          %1738 = vmatpush.bf16.msra.mxu0 0
          %1739 = vmatpush.bf16.msra.mxu0 0
          %1740 = vmatpush.bf16.msra.mxu0 0
          %1741 = vmatpush.bf16.msra.mxu0 0
          %1742 = vmatpush.bf16.msra.mxu0 0
          %1743 = vmatpush.bf16.msra.mxu0 %v1651
          %1744 = vmatmul.bf16.gmra.mxu0 %v1664
          %v1745 = vpop.f32.mrf.mxu0
          %v1746 = vadd.f32 0.0, %v1745
          %v1747 = vpop.f32.mrf.mxu0
          %v1748 = vadd.f32 0.0, %v1747
          %1749 = vdwg.mxu0
          %1750 = vmatpush.bf16.msra.mxu0 0
          %1751 = vmatpush.bf16.msra.mxu0 0
          %1752 = vmatpush.bf16.msra.mxu0 0
          %1753 = vmatpush.bf16.msra.mxu0 0
          %1754 = vmatpush.bf16.msra.mxu0 0
          %1755 = vmatpush.bf16.msra.mxu0 0
          %1756 = vmatpush.bf16.msra.mxu0 0
          %1757 = vmatpush.bf16.msra.mxu0 %v1652
          %1758 = vmatmul.bf16.gmra.mxu0 %v1664
          %v1759 = vpop.f32.mrf.mxu0
          %v1760 = vadd.f32 0.0, %v1759
          %v1761 = vpop.f32.mrf.mxu0
          %v1762 = vadd.f32 0.0, %v1761
          %1763 = vdwg.mxu0
          %1764 = vmatpush.bf16.msra.mxu0 0
          %1765 = vmatpush.bf16.msra.mxu0 0
          %1766 = vmatpush.bf16.msra.mxu0 0
          %1767 = vmatpush.bf16.msra.mxu0 0
          %1768 = vmatpush.bf16.msra.mxu0 0
          %1769 = vmatpush.bf16.msra.mxu0 0
          %1770 = vmatpush.bf16.msra.mxu0 0
          %1771 = vmatpush.bf16.msra.mxu0 %v1653
          %1772 = vmatmul.bf16.gmra.mxu0 %v1664
          %v1773 = vpop.f32.mrf.mxu0
          %v1774 = vadd.f32 0.0, %v1773
          %v1775 = vpop.f32.mrf.mxu0
          %v1776 = vadd.f32 0.0, %v1775
          %1777 = vdwg.mxu0
          %v1778 = vld [vmem:[#allocation12] sm:$0xf]
          %v1779 = vld [vmem:[#allocation12 + $0x4] sm:$0xf]
          %v1782 = vunpack.c.l.b16 %v1778
          %v1783 = vunpack.c.l.b16 %v1779
          %v1784 = vpack.c.b16 %v1783, %v1782
          %v1786 = vsel %vm1662, %v1784, 0
          %1788 = vmatpush.bf16.msra.mxu0 0
          %1789 = vmatpush.bf16.msra.mxu0 0
          %1790 = vmatpush.bf16.msra.mxu0 0
          %1791 = vmatpush.bf16.msra.mxu0 0
          %1792 = vmatpush.bf16.msra.mxu0 0
          %1793 = vmatpush.bf16.msra.mxu0 0
          %1794 = vmatpush.bf16.msra.mxu0 0
          %1795 = vmatpush.bf16.msra.mxu0 %v1646
          %1796 = vmatmul.bf16.gmra.mxu0 %v1786
          %v1797 = vpop.f32.mrf.mxu0
          %v1798 = vadd.f32 0.0, %v1797
          %v1799 = vpop.f32.mrf.mxu0
          %v1800 = vadd.f32 0.0, %v1799
          %1801 = vdwg.mxu0
          %1802 = vmatpush.bf16.msra.mxu0 0
          %1803 = vmatpush.bf16.msra.mxu0 0
          %1804 = vmatpush.bf16.msra.mxu0 0
          %1805 = vmatpush.bf16.msra.mxu0 0
          %1806 = vmatpush.bf16.msra.mxu0 0
          %1807 = vmatpush.bf16.msra.mxu0 0
          %1808 = vmatpush.bf16.msra.mxu0 0
          %1809 = vmatpush.bf16.msra.mxu0 %v1647
          %1810 = vmatmul.bf16.gmra.mxu0 %v1786
          %v1811 = vpop.f32.mrf.mxu0
          %v1812 = vadd.f32 0.0, %v1811
          %v1813 = vpop.f32.mrf.mxu0
          %v1814 = vadd.f32 0.0, %v1813
          %1815 = vdwg.mxu0
          %1816 = vmatpush.bf16.msra.mxu0 0
          %1817 = vmatpush.bf16.msra.mxu0 0
          %1818 = vmatpush.bf16.msra.mxu0 0
          %1819 = vmatpush.bf16.msra.mxu0 0
          %1820 = vmatpush.bf16.msra.mxu0 0
          %1821 = vmatpush.bf16.msra.mxu0 0
          %1822 = vmatpush.bf16.msra.mxu0 0
          %1823 = vmatpush.bf16.msra.mxu0 %v1648
          %1824 = vmatmul.bf16.gmra.mxu0 %v1786
          %v1825 = vpop.f32.mrf.mxu0
          %v1826 = vadd.f32 0.0, %v1825
          %v1827 = vpop.f32.mrf.mxu0
          %v1828 = vadd.f32 0.0, %v1827
          %1829 = vdwg.mxu0
          %1830 = vmatpush.bf16.msra.mxu0 0
          %1831 = vmatpush.bf16.msra.mxu0 0
          %1832 = vmatpush.bf16.msra.mxu0 0
          %1833 = vmatpush.bf16.msra.mxu0 0
          %1834 = vmatpush.bf16.msra.mxu0 0
          %1835 = vmatpush.bf16.msra.mxu0 0
          %1836 = vmatpush.bf16.msra.mxu0 0
          %1837 = vmatpush.bf16.msra.mxu0 %v1649
          %1838 = vmatmul.bf16.gmra.mxu0 %v1786
          %v1839 = vpop.f32.mrf.mxu0
          %v1840 = vadd.f32 0.0, %v1839
          %v1841 = vpop.f32.mrf.mxu0
          %v1842 = vadd.f32 0.0, %v1841
          %1843 = vdwg.mxu0
          %1844 = vmatpush.bf16.msra.mxu0 0
          %1845 = vmatpush.bf16.msra.mxu0 0
          %1846 = vmatpush.bf16.msra.mxu0 0
          %1847 = vmatpush.bf16.msra.mxu0 0
          %1848 = vmatpush.bf16.msra.mxu0 0
          %1849 = vmatpush.bf16.msra.mxu0 0
          %1850 = vmatpush.bf16.msra.mxu0 0
          %1851 = vmatpush.bf16.msra.mxu0 %v1650
          %1852 = vmatmul.bf16.gmra.mxu0 %v1786
          %v1853 = vpop.f32.mrf.mxu0
          %v1854 = vadd.f32 0.0, %v1853
          %v1855 = vpop.f32.mrf.mxu0
          %v1856 = vadd.f32 0.0, %v1855
          %1857 = vdwg.mxu0
          %1858 = vmatpush.bf16.msra.mxu0 0
          %1859 = vmatpush.bf16.msra.mxu0 0
          %1860 = vmatpush.bf16.msra.mxu0 0
          %1861 = vmatpush.bf16.msra.mxu0 0
          %1862 = vmatpush.bf16.msra.mxu0 0
          %1863 = vmatpush.bf16.msra.mxu0 0
          %1864 = vmatpush.bf16.msra.mxu0 0
          %1865 = vmatpush.bf16.msra.mxu0 %v1651
          %1866 = vmatmul.bf16.gmra.mxu0 %v1786
          %v1867 = vpop.f32.mrf.mxu0
          %v1868 = vadd.f32 0.0, %v1867
          %v1869 = vpop.f32.mrf.mxu0
          %v1870 = vadd.f32 0.0, %v1869
          %1871 = vdwg.mxu0
          %1872 = vmatpush.bf16.msra.mxu0 0
          %1873 = vmatpush.bf16.msra.mxu0 0
          %1874 = vmatpush.bf16.msra.mxu0 0
          %1875 = vmatpush.bf16.msra.mxu0 0
          %1876 = vmatpush.bf16.msra.mxu0 0
          %1877 = vmatpush.bf16.msra.mxu0 0
          %1878 = vmatpush.bf16.msra.mxu0 0
          %1879 = vmatpush.bf16.msra.mxu0 %v1652
          %1880 = vmatmul.bf16.gmra.mxu0 %v1786
          %v1881 = vpop.f32.mrf.mxu0
          %v1882 = vadd.f32 0.0, %v1881
          %v1883 = vpop.f32.mrf.mxu0
          %v1884 = vadd.f32 0.0, %v1883
          %1885 = vdwg.mxu0
          %1886 = vmatpush.bf16.msra.mxu0 0
          %1887 = vmatpush.bf16.msra.mxu0 0
          %1888 = vmatpush.bf16.msra.mxu0 0
          %1889 = vmatpush.bf16.msra.mxu0 0
          %1890 = vmatpush.bf16.msra.mxu0 0
          %1891 = vmatpush.bf16.msra.mxu0 0
          %1892 = vmatpush.bf16.msra.mxu0 0
          %1893 = vmatpush.bf16.msra.mxu0 %v1653
          %1894 = vmatmul.bf16.gmra.mxu0 %v1786
          %v1895 = vpop.f32.mrf.mxu0
          %v1896 = vadd.f32 0.0, %v1895
          %v1897 = vpop.f32.mrf.mxu0
          %v1898 = vadd.f32 0.0, %v1897
          %1899 = vdwg.mxu0
          %v1900 = vpack.c.bf16 %v1690, %v1676
          %v1901 = vpack.c.bf16 %v1718, %v1704
          %v1902 = vpack.c.bf16 %v1746, %v1732
          %v1903 = vpack.c.bf16 %v1774, %v1760
          %v1904 = vpack.c.bf16 %v1692, %v1678
          %v1905 = vpack.c.bf16 %v1720, %v1706
          %v1906 = vpack.c.bf16 %v1748, %v1734
          %v1907 = vpack.c.bf16 %v1776, %v1762
          %v1908 = vpack.c.bf16 %v1812, %v1798
          %v1909 = vpack.c.bf16 %v1840, %v1826
          %v1910 = vpack.c.bf16 %v1868, %v1854
          %v1911 = vpack.c.bf16 %v1896, %v1882
          %v1912 = vpack.c.bf16 %v1814, %v1800
          %v1913 = vpack.c.bf16 %v1842, %v1828
          %v1914 = vpack.c.bf16 %v1870, %v1856
          %v1915 = vpack.c.bf16 %v1898, %v1884
          %v1924 = vunpack.c.l.b16 %v1900
          %v1925 = vunpack.c.h.b16 %v1900
          %v1926 = vunpack.c.l.b16 %v1901
          %v1927 = vunpack.c.h.b16 %v1901
          %v1928 = vunpack.c.l.b16 %v1902
          %v1929 = vunpack.c.h.b16 %v1902
          %v1930 = vunpack.c.l.b16 %v1903
          %v1931 = vunpack.c.h.b16 %v1903
          %v1932 = vunpack.c.l.b16 %v1904
          %v1933 = vunpack.c.h.b16 %v1904
          %v1934 = vunpack.c.l.b16 %v1905
          %v1935 = vunpack.c.h.b16 %v1905
          %v1936 = vunpack.c.l.b16 %v1906
          %v1937 = vunpack.c.h.b16 %v1906
          %v1938 = vunpack.c.l.b16 %v1907
          %v1939 = vunpack.c.h.b16 %v1907
          %v1940 = vpack.c.b16 %v1932, %v1924
          %v1941 = vpack.c.b16 %v1933, %v1925
          %v1942 = vpack.c.b16 %v1934, %v1926
          %v1943 = vpack.c.b16 %v1935, %v1927
          %v1944 = vpack.c.b16 %v1936, %v1928
          %v1945 = vpack.c.b16 %v1937, %v1929
          %v1946 = vpack.c.b16 %v1938, %v1930
          %v1947 = vpack.c.b16 %v1939, %v1931
          %v1964 = vunpack.c.l.b16 %v1908
          %v1965 = vunpack.c.h.b16 %v1908
          %v1966 = vunpack.c.l.b16 %v1909
          %v1967 = vunpack.c.h.b16 %v1909
          %v1968 = vunpack.c.l.b16 %v1910
          %v1969 = vunpack.c.h.b16 %v1910
          %v1970 = vunpack.c.l.b16 %v1911
          %v1971 = vunpack.c.h.b16 %v1911
          %v1972 = vunpack.c.l.b16 %v1912
          %v1973 = vunpack.c.h.b16 %v1912
          %v1974 = vunpack.c.l.b16 %v1913
          %v1975 = vunpack.c.h.b16 %v1913
          %v1976 = vunpack.c.l.b16 %v1914
          %v1977 = vunpack.c.h.b16 %v1914
          %v1978 = vunpack.c.l.b16 %v1915
          %v1979 = vunpack.c.h.b16 %v1915
          %v1980 = vpack.c.b16 %v1972, %v1964
          %v1981 = vpack.c.b16 %v1973, %v1965
          %v1982 = vpack.c.b16 %v1974, %v1966
          %v1983 = vpack.c.b16 %v1975, %v1967
          %v1984 = vpack.c.b16 %v1976, %v1968
          %v1985 = vpack.c.b16 %v1977, %v1969
          %v1986 = vpack.c.b16 %v1978, %v1970
          %v1987 = vpack.c.b16 %v1979, %v1971
          %v1996 = vld [vmem:[#allocation13] sm:$0xf]
          %v1997 = vld [vmem:[#allocation13 + $0x4] sm:$0xf]
          %v2000 = vunpack.c.l.b16 %v1996
          %v2001 = vunpack.c.l.b16 %v1997
          %v2002 = vpack.c.b16 %v2001, %v2000
          %v2004 = vsel %vm1662, %v2002, 0
          %2006 = vmatpush.bf16.msra.mxu0 0
          %2007 = vmatpush.bf16.msra.mxu0 0
          %2008 = vmatpush.bf16.msra.mxu0 0
          %2009 = vmatpush.bf16.msra.mxu0 0
          %2010 = vmatpush.bf16.msra.mxu0 0
          %2011 = vmatpush.bf16.msra.mxu0 0
          %2012 = vmatpush.bf16.msra.mxu0 0
          %2013 = vmatpush.bf16.msra.mxu0 %v1646
          %2014 = vmatmul.bf16.gmra.mxu0 %v2004
          %v2015 = vpop.f32.mrf.mxu0
          %v2016 = vadd.f32 0.0, %v2015
          %v2017 = vpop.f32.mrf.mxu0
          %v2018 = vadd.f32 0.0, %v2017
          %2019 = vdwg.mxu0
          %2020 = vmatpush.bf16.msra.mxu0 0
          %2021 = vmatpush.bf16.msra.mxu0 0
          %2022 = vmatpush.bf16.msra.mxu0 0
          %2023 = vmatpush.bf16.msra.mxu0 0
          %2024 = vmatpush.bf16.msra.mxu0 0
          %2025 = vmatpush.bf16.msra.mxu0 0
          %2026 = vmatpush.bf16.msra.mxu0 0
          %2027 = vmatpush.bf16.msra.mxu0 %v1647
          %2028 = vmatmul.bf16.gmra.mxu0 %v2004
          %v2029 = vpop.f32.mrf.mxu0
          %v2030 = vadd.f32 0.0, %v2029
          %v2031 = vpop.f32.mrf.mxu0
          %v2032 = vadd.f32 0.0, %v2031
          %2033 = vdwg.mxu0
          %2034 = vmatpush.bf16.msra.mxu0 0
          %2035 = vmatpush.bf16.msra.mxu0 0
          %2036 = vmatpush.bf16.msra.mxu0 0
          %2037 = vmatpush.bf16.msra.mxu0 0
          %2038 = vmatpush.bf16.msra.mxu0 0
          %2039 = vmatpush.bf16.msra.mxu0 0
          %2040 = vmatpush.bf16.msra.mxu0 0
          %2041 = vmatpush.bf16.msra.mxu0 %v1648
          %2042 = vmatmul.bf16.gmra.mxu0 %v2004
          %v2043 = vpop.f32.mrf.mxu0
          %v2044 = vadd.f32 0.0, %v2043
          %v2045 = vpop.f32.mrf.mxu0
          %v2046 = vadd.f32 0.0, %v2045
          %2047 = vdwg.mxu0
          %2048 = vmatpush.bf16.msra.mxu0 0
          %2049 = vmatpush.bf16.msra.mxu0 0
          %2050 = vmatpush.bf16.msra.mxu0 0
          %2051 = vmatpush.bf16.msra.mxu0 0
          %2052 = vmatpush.bf16.msra.mxu0 0
          %2053 = vmatpush.bf16.msra.mxu0 0
          %2054 = vmatpush.bf16.msra.mxu0 0
          %2055 = vmatpush.bf16.msra.mxu0 %v1649
          %2056 = vmatmul.bf16.gmra.mxu0 %v2004
          %v2057 = vpop.f32.mrf.mxu0
          %v2058 = vadd.f32 0.0, %v2057
          %v2059 = vpop.f32.mrf.mxu0
          %v2060 = vadd.f32 0.0, %v2059
          %2061 = vdwg.mxu0
          %2062 = vmatpush.bf16.msra.mxu0 0
          %2063 = vmatpush.bf16.msra.mxu0 0
          %2064 = vmatpush.bf16.msra.mxu0 0
          %2065 = vmatpush.bf16.msra.mxu0 0
          %2066 = vmatpush.bf16.msra.mxu0 0
          %2067 = vmatpush.bf16.msra.mxu0 0
          %2068 = vmatpush.bf16.msra.mxu0 0
          %2069 = vmatpush.bf16.msra.mxu0 %v1650
          %2070 = vmatmul.bf16.gmra.mxu0 %v2004
          %v2071 = vpop.f32.mrf.mxu0
          %v2072 = vadd.f32 0.0, %v2071
          %v2073 = vpop.f32.mrf.mxu0
          %v2074 = vadd.f32 0.0, %v2073
          %2075 = vdwg.mxu0
          %2076 = vmatpush.bf16.msra.mxu0 0
          %2077 = vmatpush.bf16.msra.mxu0 0
          %2078 = vmatpush.bf16.msra.mxu0 0
          %2079 = vmatpush.bf16.msra.mxu0 0
          %2080 = vmatpush.bf16.msra.mxu0 0
          %2081 = vmatpush.bf16.msra.mxu0 0
          %2082 = vmatpush.bf16.msra.mxu0 0
          %2083 = vmatpush.bf16.msra.mxu0 %v1651
          %2084 = vmatmul.bf16.gmra.mxu0 %v2004
          %v2085 = vpop.f32.mrf.mxu0
          %v2086 = vadd.f32 0.0, %v2085
          %v2087 = vpop.f32.mrf.mxu0
          %v2088 = vadd.f32 0.0, %v2087
          %2089 = vdwg.mxu0
          %2090 = vmatpush.bf16.msra.mxu0 0
          %2091 = vmatpush.bf16.msra.mxu0 0
          %2092 = vmatpush.bf16.msra.mxu0 0
          %2093 = vmatpush.bf16.msra.mxu0 0
          %2094 = vmatpush.bf16.msra.mxu0 0
          %2095 = vmatpush.bf16.msra.mxu0 0
          %2096 = vmatpush.bf16.msra.mxu0 0
          %2097 = vmatpush.bf16.msra.mxu0 %v1652
          %2098 = vmatmul.bf16.gmra.mxu0 %v2004
          %v2099 = vpop.f32.mrf.mxu0
          %v2100 = vadd.f32 0.0, %v2099
          %v2101 = vpop.f32.mrf.mxu0
          %v2102 = vadd.f32 0.0, %v2101
          %2103 = vdwg.mxu0
          %2104 = vmatpush.bf16.msra.mxu0 0
          %2105 = vmatpush.bf16.msra.mxu0 0
          %2106 = vmatpush.bf16.msra.mxu0 0
          %2107 = vmatpush.bf16.msra.mxu0 0
          %2108 = vmatpush.bf16.msra.mxu0 0
          %2109 = vmatpush.bf16.msra.mxu0 0
          %2110 = vmatpush.bf16.msra.mxu0 0
          %2111 = vmatpush.bf16.msra.mxu0 %v1653
          %2112 = vmatmul.bf16.gmra.mxu0 %v2004
          %v2113 = vpop.f32.mrf.mxu0
          %v2114 = vadd.f32 0.0, %v2113
          %v2115 = vpop.f32.mrf.mxu0
          %v2116 = vadd.f32 0.0, %v2115
          %2117 = vdwg.mxu0
          %2118 = vmatpush.bf16.msra.mxu0 0
          %2119 = vmatpush.bf16.msra.mxu0 0
          %2120 = vmatpush.bf16.msra.mxu0 0
          %2121 = vmatpush.bf16.msra.mxu0 0
          %2122 = vmatpush.bf16.msra.mxu0 0
          %2123 = vmatpush.bf16.msra.mxu0 0
          %2124 = vmatpush.bf16.msra.mxu0 0
          %2125 = vmatpush.bf16.msra.mxu0 %v1940
          %2126 = vmatmul.bf16.gmra.mxu0 %v2004
          %v2127 = vpop.f32.mrf.mxu0
          %v2128 = vadd.f32 0.0, %v2127
          %v2129 = vpop.f32.mrf.mxu0
          %v2130 = vadd.f32 0.0, %v2129
          %2131 = vdwg.mxu0
          %2132 = vmatpush.bf16.msra.mxu0 0
          %2133 = vmatpush.bf16.msra.mxu0 0
          %2134 = vmatpush.bf16.msra.mxu0 0
          %2135 = vmatpush.bf16.msra.mxu0 0
          %2136 = vmatpush.bf16.msra.mxu0 0
          %2137 = vmatpush.bf16.msra.mxu0 0
          %2138 = vmatpush.bf16.msra.mxu0 0
          %2139 = vmatpush.bf16.msra.mxu0 %v1941
          %2140 = vmatmul.bf16.gmra.mxu0 %v2004
          %v2141 = vpop.f32.mrf.mxu0
          %v2142 = vadd.f32 0.0, %v2141
          %v2143 = vpop.f32.mrf.mxu0
          %v2144 = vadd.f32 0.0, %v2143
          %2145 = vdwg.mxu0
          %2146 = vmatpush.bf16.msra.mxu0 0
          %2147 = vmatpush.bf16.msra.mxu0 0
          %2148 = vmatpush.bf16.msra.mxu0 0
          %2149 = vmatpush.bf16.msra.mxu0 0
          %2150 = vmatpush.bf16.msra.mxu0 0
          %2151 = vmatpush.bf16.msra.mxu0 0
          %2152 = vmatpush.bf16.msra.mxu0 0
          %2153 = vmatpush.bf16.msra.mxu0 %v1942
          %2154 = vmatmul.bf16.gmra.mxu0 %v2004
          %v2155 = vpop.f32.mrf.mxu0
          %v2156 = vadd.f32 0.0, %v2155
          %v2157 = vpop.f32.mrf.mxu0
          %v2158 = vadd.f32 0.0, %v2157
          %2159 = vdwg.mxu0
          %2160 = vmatpush.bf16.msra.mxu0 0
          %2161 = vmatpush.bf16.msra.mxu0 0
          %2162 = vmatpush.bf16.msra.mxu0 0
          %2163 = vmatpush.bf16.msra.mxu0 0
          %2164 = vmatpush.bf16.msra.mxu0 0
          %2165 = vmatpush.bf16.msra.mxu0 0
          %2166 = vmatpush.bf16.msra.mxu0 0
          %2167 = vmatpush.bf16.msra.mxu0 %v1943
          %2168 = vmatmul.bf16.gmra.mxu0 %v2004
          %v2169 = vpop.f32.mrf.mxu0
          %v2170 = vadd.f32 0.0, %v2169
          %v2171 = vpop.f32.mrf.mxu0
          %v2172 = vadd.f32 0.0, %v2171
          %2173 = vdwg.mxu0
          %2174 = vmatpush.bf16.msra.mxu0 0
          %2175 = vmatpush.bf16.msra.mxu0 0
          %2176 = vmatpush.bf16.msra.mxu0 0
          %2177 = vmatpush.bf16.msra.mxu0 0
          %2178 = vmatpush.bf16.msra.mxu0 0
          %2179 = vmatpush.bf16.msra.mxu0 0
          %2180 = vmatpush.bf16.msra.mxu0 0
          %2181 = vmatpush.bf16.msra.mxu0 %v1944
          %2182 = vmatmul.bf16.gmra.mxu0 %v2004
          %v2183 = vpop.f32.mrf.mxu0
          %v2184 = vadd.f32 0.0, %v2183
          %v2185 = vpop.f32.mrf.mxu0
          %v2186 = vadd.f32 0.0, %v2185
          %2187 = vdwg.mxu0
          %2188 = vmatpush.bf16.msra.mxu0 0
          %2189 = vmatpush.bf16.msra.mxu0 0
          %2190 = vmatpush.bf16.msra.mxu0 0
          %2191 = vmatpush.bf16.msra.mxu0 0
          %2192 = vmatpush.bf16.msra.mxu0 0
          %2193 = vmatpush.bf16.msra.mxu0 0
          %2194 = vmatpush.bf16.msra.mxu0 0
          %2195 = vmatpush.bf16.msra.mxu0 %v1945
          %2196 = vmatmul.bf16.gmra.mxu0 %v2004
          %v2197 = vpop.f32.mrf.mxu0
          %v2198 = vadd.f32 0.0, %v2197
          %v2199 = vpop.f32.mrf.mxu0
          %v2200 = vadd.f32 0.0, %v2199
          %2201 = vdwg.mxu0
          %2202 = vmatpush.bf16.msra.mxu0 0
          %2203 = vmatpush.bf16.msra.mxu0 0
          %2204 = vmatpush.bf16.msra.mxu0 0
          %2205 = vmatpush.bf16.msra.mxu0 0
          %2206 = vmatpush.bf16.msra.mxu0 0
          %2207 = vmatpush.bf16.msra.mxu0 0
          %2208 = vmatpush.bf16.msra.mxu0 0
          %2209 = vmatpush.bf16.msra.mxu0 %v1946
          %2210 = vmatmul.bf16.gmra.mxu0 %v2004
          %v2211 = vpop.f32.mrf.mxu0
          %v2212 = vadd.f32 0.0, %v2211
          %v2213 = vpop.f32.mrf.mxu0
          %v2214 = vadd.f32 0.0, %v2213
          %2215 = vdwg.mxu0
          %2216 = vmatpush.bf16.msra.mxu0 0
          %2217 = vmatpush.bf16.msra.mxu0 0
          %2218 = vmatpush.bf16.msra.mxu0 0
          %2219 = vmatpush.bf16.msra.mxu0 0
          %2220 = vmatpush.bf16.msra.mxu0 0
          %2221 = vmatpush.bf16.msra.mxu0 0
          %2222 = vmatpush.bf16.msra.mxu0 0
          %2223 = vmatpush.bf16.msra.mxu0 %v1947
          %2224 = vmatmul.bf16.gmra.mxu0 %v2004
          %v2225 = vpop.f32.mrf.mxu0
          %v2226 = vadd.f32 0.0, %v2225
          %v2227 = vpop.f32.mrf.mxu0
          %v2228 = vadd.f32 0.0, %v2227
          %2229 = vdwg.mxu0
          %2230 = vmatpush.bf16.msra.mxu0 0
          %2231 = vmatpush.bf16.msra.mxu0 0
          %2232 = vmatpush.bf16.msra.mxu0 0
          %2233 = vmatpush.bf16.msra.mxu0 0
          %2234 = vmatpush.bf16.msra.mxu0 0
          %2235 = vmatpush.bf16.msra.mxu0 0
          %2236 = vmatpush.bf16.msra.mxu0 0
          %2237 = vmatpush.bf16.msra.mxu0 %v1980
          %2238 = vmatmul.bf16.gmra.mxu0 %v2004
          %v2239 = vpop.f32.mrf.mxu0
          %v2240 = vadd.f32 0.0, %v2239
          %v2241 = vpop.f32.mrf.mxu0
          %v2242 = vadd.f32 0.0, %v2241
          %2243 = vdwg.mxu0
          %2244 = vmatpush.bf16.msra.mxu0 0
          %2245 = vmatpush.bf16.msra.mxu0 0
          %2246 = vmatpush.bf16.msra.mxu0 0
          %2247 = vmatpush.bf16.msra.mxu0 0
          %2248 = vmatpush.bf16.msra.mxu0 0
          %2249 = vmatpush.bf16.msra.mxu0 0
          %2250 = vmatpush.bf16.msra.mxu0 0
          %2251 = vmatpush.bf16.msra.mxu0 %v1981
          %2252 = vmatmul.bf16.gmra.mxu0 %v2004
          %v2253 = vpop.f32.mrf.mxu0
          %v2254 = vadd.f32 0.0, %v2253
          %v2255 = vpop.f32.mrf.mxu0
          %v2256 = vadd.f32 0.0, %v2255
          %2257 = vdwg.mxu0
          %2258 = vmatpush.bf16.msra.mxu0 0
          %2259 = vmatpush.bf16.msra.mxu0 0
          %2260 = vmatpush.bf16.msra.mxu0 0
          %2261 = vmatpush.bf16.msra.mxu0 0
          %2262 = vmatpush.bf16.msra.mxu0 0
          %2263 = vmatpush.bf16.msra.mxu0 0
          %2264 = vmatpush.bf16.msra.mxu0 0
          %2265 = vmatpush.bf16.msra.mxu0 %v1982
          %2266 = vmatmul.bf16.gmra.mxu0 %v2004
          %v2267 = vpop.f32.mrf.mxu0
          %v2268 = vadd.f32 0.0, %v2267
          %v2269 = vpop.f32.mrf.mxu0
          %v2270 = vadd.f32 0.0, %v2269
          %2271 = vdwg.mxu0
          %2272 = vmatpush.bf16.msra.mxu0 0
          %2273 = vmatpush.bf16.msra.mxu0 0
          %2274 = vmatpush.bf16.msra.mxu0 0
          %2275 = vmatpush.bf16.msra.mxu0 0
          %2276 = vmatpush.bf16.msra.mxu0 0
          %2277 = vmatpush.bf16.msra.mxu0 0
          %2278 = vmatpush.bf16.msra.mxu0 0
          %2279 = vmatpush.bf16.msra.mxu0 %v1983
          %2280 = vmatmul.bf16.gmra.mxu0 %v2004
          %v2281 = vpop.f32.mrf.mxu0
          %v2282 = vadd.f32 0.0, %v2281
          %v2283 = vpop.f32.mrf.mxu0
          %v2284 = vadd.f32 0.0, %v2283
          %2285 = vdwg.mxu0
          %2286 = vmatpush.bf16.msra.mxu0 0
          %2287 = vmatpush.bf16.msra.mxu0 0
          %2288 = vmatpush.bf16.msra.mxu0 0
          %2289 = vmatpush.bf16.msra.mxu0 0
          %2290 = vmatpush.bf16.msra.mxu0 0
          %2291 = vmatpush.bf16.msra.mxu0 0
          %2292 = vmatpush.bf16.msra.mxu0 0
          %2293 = vmatpush.bf16.msra.mxu0 %v1984
          %2294 = vmatmul.bf16.gmra.mxu0 %v2004
          %v2295 = vpop.f32.mrf.mxu0
          %v2296 = vadd.f32 0.0, %v2295
          %v2297 = vpop.f32.mrf.mxu0
          %v2298 = vadd.f32 0.0, %v2297
          %2299 = vdwg.mxu0
          %2300 = vmatpush.bf16.msra.mxu0 0
          %2301 = vmatpush.bf16.msra.mxu0 0
          %2302 = vmatpush.bf16.msra.mxu0 0
          %2303 = vmatpush.bf16.msra.mxu0 0
          %2304 = vmatpush.bf16.msra.mxu0 0
          %2305 = vmatpush.bf16.msra.mxu0 0
          %2306 = vmatpush.bf16.msra.mxu0 0
          %2307 = vmatpush.bf16.msra.mxu0 %v1985
          %2308 = vmatmul.bf16.gmra.mxu0 %v2004
          %v2309 = vpop.f32.mrf.mxu0
          %v2310 = vadd.f32 0.0, %v2309
          %v2311 = vpop.f32.mrf.mxu0
          %v2312 = vadd.f32 0.0, %v2311
          %2313 = vdwg.mxu0
          %2314 = vmatpush.bf16.msra.mxu0 0
          %2315 = vmatpush.bf16.msra.mxu0 0
          %2316 = vmatpush.bf16.msra.mxu0 0
          %2317 = vmatpush.bf16.msra.mxu0 0
          %2318 = vmatpush.bf16.msra.mxu0 0
          %2319 = vmatpush.bf16.msra.mxu0 0
          %2320 = vmatpush.bf16.msra.mxu0 0
          %2321 = vmatpush.bf16.msra.mxu0 %v1986
          %2322 = vmatmul.bf16.gmra.mxu0 %v2004
          %v2323 = vpop.f32.mrf.mxu0
          %v2324 = vadd.f32 0.0, %v2323
          %v2325 = vpop.f32.mrf.mxu0
          %v2326 = vadd.f32 0.0, %v2325
          %2327 = vdwg.mxu0
          %2328 = vmatpush.bf16.msra.mxu0 0
          %2329 = vmatpush.bf16.msra.mxu0 0
          %2330 = vmatpush.bf16.msra.mxu0 0
          %2331 = vmatpush.bf16.msra.mxu0 0
          %2332 = vmatpush.bf16.msra.mxu0 0
          %2333 = vmatpush.bf16.msra.mxu0 0
          %2334 = vmatpush.bf16.msra.mxu0 0
          %2335 = vmatpush.bf16.msra.mxu0 %v1987
          %2336 = vmatmul.bf16.gmra.mxu0 %v2004
          %v2337 = vpop.f32.mrf.mxu0
          %v2338 = vadd.f32 0.0, %v2337
          %v2339 = vpop.f32.mrf.mxu0
          %v2340 = vadd.f32 0.0, %v2339
          %2341 = vdwg.mxu0
          %v2342 = vpack.c.bf16 %v2030, %v2016
          %v2343 = vpack.c.bf16 %v2058, %v2044
          %v2344 = vpack.c.bf16 %v2086, %v2072
          %v2345 = vpack.c.bf16 %v2114, %v2100
          %v2346 = vpack.c.bf16 %v2142, %v2128
          %v2347 = vpack.c.bf16 %v2170, %v2156
          %v2348 = vpack.c.bf16 %v2198, %v2184
          %v2349 = vpack.c.bf16 %v2226, %v2212
          %v2350 = vpack.c.bf16 %v2254, %v2240
          %v2351 = vpack.c.bf16 %v2282, %v2268
          %v2352 = vpack.c.bf16 %v2310, %v2296
          %v2353 = vpack.c.bf16 %v2338, %v2324
          %v2354 = vpack.c.bf16 %v2032, %v2018
          %v2355 = vpack.c.bf16 %v2060, %v2046
          %v2356 = vpack.c.bf16 %v2088, %v2074
          %v2357 = vpack.c.bf16 %v2116, %v2102
          %v2358 = vpack.c.bf16 %v2144, %v2130
          %v2359 = vpack.c.bf16 %v2172, %v2158
          %v2360 = vpack.c.bf16 %v2200, %v2186
          %v2361 = vpack.c.bf16 %v2228, %v2214
          %v2362 = vpack.c.bf16 %v2256, %v2242
          %v2363 = vpack.c.bf16 %v2284, %v2270
          %v2364 = vpack.c.bf16 %v2312, %v2298
          %v2365 = vpack.c.bf16 %v2340, %v2326
          %2366 = vst [vmem:[#allocation2] sm:$0xff] %v2342
          %2367 = vst [vmem:[#allocation2 + $0x8] sm:$0xff] %v2343
          %2368 = vst [vmem:[#allocation2 + $0x10] sm:$0xff] %v2344
          %2369 = vst [vmem:[#allocation2 + $0x18] sm:$0xff] %v2345
          %2370 = vst [vmem:[#allocation2 + $0x20] sm:$0xff] %v2346
          %2371 = vst [vmem:[#allocation2 + $0x28] sm:$0xff] %v2347
          %2372 = vst [vmem:[#allocation2 + $0x30] sm:$0xff] %v2348
          %2373 = vst [vmem:[#allocation2 + $0x38] sm:$0xff] %v2349
          %2374 = vst [vmem:[#allocation2 + $0x40] sm:$0xff] %v2350
          %2375 = vst [vmem:[#allocation2 + $0x48] sm:$0xff] %v2351
          %2376 = vst [vmem:[#allocation2 + $0x50] sm:$0xff] %v2352
          %2377 = vst [vmem:[#allocation2 + $0x58] sm:$0xff] %v2353
          %2378 = vst [vmem:[#allocation2 + $0x60] sm:$0xff] %v2354
          %2379 = vst [vmem:[#allocation2 + $0x68] sm:$0xff] %v2355
          %2380 = vst [vmem:[#allocation2 + $0x70] sm:$0xff] %v2356
          %2381 = vst [vmem:[#allocation2 + $0x78] sm:$0xff] %v2357
          %2382 = vst [vmem:[#allocation2 + $0x80] sm:$0xff] %v2358
          %2383 = vst [vmem:[#allocation2 + $0x88] sm:$0xff] %v2359
          %2384 = vst [vmem:[#allocation2 + $0x90] sm:$0xff] %v2360
          %2385 = vst [vmem:[#allocation2 + $0x98] sm:$0xff] %v2361
          %2386 = vst [vmem:[#allocation2 + $0xa0] sm:$0xff] %v2362
          %2387 = vst [vmem:[#allocation2 + $0xa8] sm:$0xff] %v2363
          %2388 = vst [vmem:[#allocation2 + $0xb0] sm:$0xff] %v2364
          %2389 = vst [vmem:[#allocation2 + $0xb8] sm:$0xff] %v2365
          %v2390 = vld [vmem:[%s9] sm:$0xf]
          %v2391 = vld [vmem:[%s9 + $0x4] sm:$0xf]
          %v2392 = vld [vmem:[%s9 + $0x8] sm:$0xf]
          %v2393 = vld [vmem:[%s9 + $0xc] sm:$0xf]
          %v2394 = vld [vmem:[%s9 + $0x10] sm:$0xf]
          %v2395 = vld [vmem:[%s9 + $0x14] sm:$0xf]
          %v2396 = vld [vmem:[%s9 + $0x18] sm:$0xf]
          %v2397 = vld [vmem:[%s9 + $0x1c] sm:$0xf]
          %v2398 = vld [vmem:[%s9 + $0x20] sm:$0xf]
          %v2399 = vld [vmem:[%s9 + $0x24] sm:$0xf]
          %v2400 = vld [vmem:[%s9 + $0x28] sm:$0xf]
          %v2401 = vld [vmem:[%s9 + $0x2c] sm:$0xf]
          %v2402 = vld [vmem:[%s9 + $0x30] sm:$0xf]
          %v2403 = vld [vmem:[%s9 + $0x34] sm:$0xf]
          %v2404 = vld [vmem:[%s9 + $0x38] sm:$0xf]
          %v2405 = vld [vmem:[%s9 + $0x3c] sm:$0xf]
          %v2406 = vld [vmem:[%s9 + $0x40] sm:$0xf]
          %v2407 = vld [vmem:[%s9 + $0x44] sm:$0xf]
          %v2408 = vld [vmem:[%s9 + $0x48] sm:$0xf]
          %v2409 = vld [vmem:[%s9 + $0x4c] sm:$0xf]
          %v2410 = vld [vmem:[%s9 + $0x50] sm:$0xf]
          %v2411 = vld [vmem:[%s9 + $0x54] sm:$0xf]
          %v2412 = vld [vmem:[%s9 + $0x58] sm:$0xf]
          %v2413 = vld [vmem:[%s9 + $0x5c] sm:$0xf]
          %v2414 = vld [vmem:[%s9 + $0x60] sm:$0xf]
          %v2415 = vld [vmem:[%s9 + $0x64] sm:$0xf]
          %v2416 = vld [vmem:[%s9 + $0x68] sm:$0xf]
          %v2417 = vld [vmem:[%s9 + $0x6c] sm:$0xf]
          %v2418 = vld [vmem:[%s9 + $0x70] sm:$0xf]
          %v2419 = vld [vmem:[%s9 + $0x74] sm:$0xf]
          %v2420 = vld [vmem:[%s9 + $0x78] sm:$0xf]
          %v2421 = vld [vmem:[%s9 + $0x7c] sm:$0xf]
          %v2422 = vld [vmem:[%s9 + $0x80] sm:$0xf]
          %v2423 = vld [vmem:[%s9 + $0x84] sm:$0xf]
          %v2424 = vld [vmem:[%s9 + $0x88] sm:$0xf]
          %v2425 = vld [vmem:[%s9 + $0x8c] sm:$0xf]
          %v2426 = vld [vmem:[%s9 + $0x90] sm:$0xf]
          %v2427 = vld [vmem:[%s9 + $0x94] sm:$0xf]
          %v2428 = vld [vmem:[%s9 + $0x98] sm:$0xf]
          %v2429 = vld [vmem:[%s9 + $0x9c] sm:$0xf]
          %v2430 = vld [vmem:[%s9 + $0xa0] sm:$0xf]
          %v2431 = vld [vmem:[%s9 + $0xa4] sm:$0xf]
          %v2432 = vld [vmem:[%s9 + $0xa8] sm:$0xf]
          %v2433 = vld [vmem:[%s9 + $0xac] sm:$0xf]
          %v2434 = vld [vmem:[%s9 + $0xb0] sm:$0xf]
          %v2435 = vld [vmem:[%s9 + $0xb4] sm:$0xf]
          %v2436 = vld [vmem:[%s9 + $0xb8] sm:$0xf]
          %v2437 = vld [vmem:[%s9 + $0xbc] sm:$0xf]
          %v2438 = vld [vmem:[%s9 + $0xc0] sm:$0xf]
          %v2439 = vld [vmem:[%s9 + $0xc4] sm:$0xf]
          %v2440 = vld [vmem:[%s9 + $0xc8] sm:$0xf]
          %v2441 = vld [vmem:[%s9 + $0xcc] sm:$0xf]
          %v2442 = vld [vmem:[%s9 + $0xd0] sm:$0xf]
          %v2443 = vld [vmem:[%s9 + $0xd4] sm:$0xf]
          %v2444 = vld [vmem:[%s9 + $0xd8] sm:$0xf]
          %v2445 = vld [vmem:[%s9 + $0xdc] sm:$0xf]
          %v2446 = vld [vmem:[%s9 + $0xe0] sm:$0xf]
          %v2447 = vld [vmem:[%s9 + $0xe4] sm:$0xf]
          %v2448 = vld [vmem:[%s9 + $0xe8] sm:$0xf]
          %v2449 = vld [vmem:[%s9 + $0xec] sm:$0xf]
          %v2450 = vld [vmem:[%s9 + $0xf0] sm:$0xf]
          %v2451 = vld [vmem:[%s9 + $0xf4] sm:$0xf]
          %v2452 = vld [vmem:[%s9 + $0xf8] sm:$0xf]
          %v2453 = vld [vmem:[%s9 + $0xfc] sm:$0xf]
          %v2454 = vld [vmem:[%s9 + $0x100] sm:$0xf]
          %v2455 = vld [vmem:[%s9 + $0x104] sm:$0xf]
          %v2456 = vld [vmem:[%s9 + $0x108] sm:$0xf]
          %v2457 = vld [vmem:[%s9 + $0x10c] sm:$0xf]
          %v2458 = vld [vmem:[%s9 + $0x110] sm:$0xf]
          %v2459 = vld [vmem:[%s9 + $0x114] sm:$0xf]
          %v2460 = vld [vmem:[%s9 + $0x118] sm:$0xf]
          %v2461 = vld [vmem:[%s9 + $0x11c] sm:$0xf]
          %v2462 = vld [vmem:[%s9 + $0x120] sm:$0xf]
          %v2463 = vld [vmem:[%s9 + $0x124] sm:$0xf]
          %v2464 = vld [vmem:[%s9 + $0x128] sm:$0xf]
          %v2465 = vld [vmem:[%s9 + $0x12c] sm:$0xf]
          %v2466 = vld [vmem:[%s9 + $0x130] sm:$0xf]
          %v2467 = vld [vmem:[%s9 + $0x134] sm:$0xf]
          %v2468 = vld [vmem:[%s9 + $0x138] sm:$0xf]
          %v2469 = vld [vmem:[%s9 + $0x13c] sm:$0xf]
          %v2470 = vld [vmem:[%s9 + $0x140] sm:$0xf]
          %v2471 = vld [vmem:[%s9 + $0x144] sm:$0xf]
          %v2472 = vld [vmem:[%s9 + $0x148] sm:$0xf]
          %v2473 = vld [vmem:[%s9 + $0x14c] sm:$0xf]
          %v2474 = vld [vmem:[%s9 + $0x150] sm:$0xf]
          %v2475 = vld [vmem:[%s9 + $0x154] sm:$0xf]
          %v2476 = vld [vmem:[%s9 + $0x158] sm:$0xf]
          %v2477 = vld [vmem:[%s9 + $0x15c] sm:$0xf]
          %v2478 = vld [vmem:[%s9 + $0x160] sm:$0xf]
          %v2479 = vld [vmem:[%s9 + $0x164] sm:$0xf]
          %v2480 = vld [vmem:[%s9 + $0x168] sm:$0xf]
          %v2481 = vld [vmem:[%s9 + $0x16c] sm:$0xf]
          %v2482 = vld [vmem:[%s9 + $0x170] sm:$0xf]
          %v2483 = vld [vmem:[%s9 + $0x174] sm:$0xf]
          %v2484 = vld [vmem:[%s9 + $0x178] sm:$0xf]
          %v2485 = vld [vmem:[%s9 + $0x17c] sm:$0xf]
          %v2486 = vld [vmem:[%s9 + $0x180] sm:$0xf]
          %v2487 = vld [vmem:[%s9 + $0x184] sm:$0xf]
          %v2488 = vld [vmem:[%s9 + $0x188] sm:$0xf]
          %v2489 = vld [vmem:[%s9 + $0x18c] sm:$0xf]
          %v2490 = vld [vmem:[%s9 + $0x190] sm:$0xf]
          %v2491 = vld [vmem:[%s9 + $0x194] sm:$0xf]
          %v2492 = vld [vmem:[%s9 + $0x198] sm:$0xf]
          %v2493 = vld [vmem:[%s9 + $0x19c] sm:$0xf]
          %v2494 = vld [vmem:[%s9 + $0x1a0] sm:$0xf]
          %v2495 = vld [vmem:[%s9 + $0x1a4] sm:$0xf]
          %v2496 = vld [vmem:[%s9 + $0x1a8] sm:$0xf]
          %v2497 = vld [vmem:[%s9 + $0x1ac] sm:$0xf]
          %v2498 = vld [vmem:[%s9 + $0x1b0] sm:$0xf]
          %v2499 = vld [vmem:[%s9 + $0x1b4] sm:$0xf]
          %v2500 = vld [vmem:[%s9 + $0x1b8] sm:$0xf]
          %v2501 = vld [vmem:[%s9 + $0x1bc] sm:$0xf]
          %v2502 = vld [vmem:[%s9 + $0x1c0] sm:$0xf]
          %v2503 = vld [vmem:[%s9 + $0x1c4] sm:$0xf]
          %v2504 = vld [vmem:[%s9 + $0x1c8] sm:$0xf]
          %v2505 = vld [vmem:[%s9 + $0x1cc] sm:$0xf]
          %v2506 = vld [vmem:[%s9 + $0x1d0] sm:$0xf]
          %v2507 = vld [vmem:[%s9 + $0x1d4] sm:$0xf]
          %v2508 = vld [vmem:[%s9 + $0x1d8] sm:$0xf]
          %v2509 = vld [vmem:[%s9 + $0x1dc] sm:$0xf]
          %v2510 = vld [vmem:[%s9 + $0x1e0] sm:$0xf]
          %v2511 = vld [vmem:[%s9 + $0x1e4] sm:$0xf]
          %v2512 = vld [vmem:[%s9 + $0x1e8] sm:$0xf]
          %v2513 = vld [vmem:[%s9 + $0x1ec] sm:$0xf]
          %v2514 = vld [vmem:[%s9 + $0x1f0] sm:$0xf]
          %v2515 = vld [vmem:[%s9 + $0x1f4] sm:$0xf]
          %v2516 = vld [vmem:[%s9 + $0x1f8] sm:$0xf]
          %v2517 = vld [vmem:[%s9 + $0x1fc] sm:$0xf]
          %v2518 = vld [vmem:[#allocation17] sm:$0x1]
          %v2520 = vperm.slane %v2518, 0
          %v2530 = vunpack.c.l.b16 %v2342
          %v2531 = vunpack.c.h.b16 %v2342
          %v2532 = vunpack.c.l.b16 %v2343
          %v2533 = vunpack.c.h.b16 %v2343
          %v2534 = vunpack.c.l.b16 %v2344
          %v2535 = vunpack.c.h.b16 %v2344
          %v2536 = vunpack.c.l.b16 %v2345
          %v2537 = vunpack.c.h.b16 %v2345
          %v2538 = vunpack.c.l.b16 %v2354
          %v2539 = vunpack.c.h.b16 %v2354
          %v2540 = vunpack.c.l.b16 %v2355
          %v2541 = vunpack.c.h.b16 %v2355
          %v2542 = vunpack.c.l.b16 %v2356
          %v2543 = vunpack.c.h.b16 %v2356
          %v2544 = vunpack.c.l.b16 %v2357
          %v2545 = vunpack.c.h.b16 %v2357
          %v2546 = vpack.c.b16 %v2538, %v2530
          %v2547 = vpack.c.b16 %v2539, %v2531
          %v2548 = vpack.c.b16 %v2540, %v2532
          %v2549 = vpack.c.b16 %v2541, %v2533
          %v2550 = vpack.c.b16 %v2542, %v2534
          %v2551 = vpack.c.b16 %v2543, %v2535
          %v2552 = vpack.c.b16 %v2544, %v2536
          %v2553 = vpack.c.b16 %v2545, %v2537
          %v2690 = vunpack.c.l.b16 %v2390
          %v2691 = vunpack.c.l.b16 %v2391
          %v2692 = vunpack.c.l.b16 %v2392
          %v2693 = vunpack.c.l.b16 %v2393
          %v2694 = vunpack.c.l.b16 %v2394
          %v2695 = vunpack.c.l.b16 %v2395
          %v2696 = vunpack.c.l.b16 %v2396
          %v2697 = vunpack.c.l.b16 %v2397
          %v2698 = vunpack.c.l.b16 %v2398
          %v2699 = vunpack.c.l.b16 %v2399
          %v2700 = vunpack.c.l.b16 %v2400
          %v2701 = vunpack.c.l.b16 %v2401
          %v2702 = vunpack.c.l.b16 %v2402
          %v2703 = vunpack.c.l.b16 %v2403
          %v2704 = vunpack.c.l.b16 %v2404
          %v2705 = vunpack.c.l.b16 %v2405
          %v2706 = vunpack.c.l.b16 %v2406
          %v2707 = vunpack.c.l.b16 %v2407
          %v2708 = vunpack.c.l.b16 %v2408
          %v2709 = vunpack.c.l.b16 %v2409
          %v2710 = vunpack.c.l.b16 %v2410
          %v2711 = vunpack.c.l.b16 %v2411
          %v2712 = vunpack.c.l.b16 %v2412
          %v2713 = vunpack.c.l.b16 %v2413
          %v2714 = vunpack.c.l.b16 %v2414
          %v2715 = vunpack.c.l.b16 %v2415
          %v2716 = vunpack.c.l.b16 %v2416
          %v2717 = vunpack.c.l.b16 %v2417
          %v2718 = vunpack.c.l.b16 %v2418
          %v2719 = vunpack.c.l.b16 %v2419
          %v2720 = vunpack.c.l.b16 %v2420
          %v2721 = vunpack.c.l.b16 %v2421
          %v2722 = vunpack.c.l.b16 %v2422
          %v2723 = vunpack.c.l.b16 %v2423
          %v2724 = vunpack.c.l.b16 %v2424
          %v2725 = vunpack.c.l.b16 %v2425
          %v2726 = vunpack.c.l.b16 %v2426
          %v2727 = vunpack.c.l.b16 %v2427
          %v2728 = vunpack.c.l.b16 %v2428
          %v2729 = vunpack.c.l.b16 %v2429
          %v2730 = vunpack.c.l.b16 %v2430
          %v2731 = vunpack.c.l.b16 %v2431
          %v2732 = vunpack.c.l.b16 %v2432
          %v2733 = vunpack.c.l.b16 %v2433
          %v2734 = vunpack.c.l.b16 %v2434
          %v2735 = vunpack.c.l.b16 %v2435
          %v2736 = vunpack.c.l.b16 %v2436
          %v2737 = vunpack.c.l.b16 %v2437
          %v2738 = vunpack.c.l.b16 %v2438
          %v2739 = vunpack.c.l.b16 %v2439
          %v2740 = vunpack.c.l.b16 %v2440
          %v2741 = vunpack.c.l.b16 %v2441
          %v2742 = vunpack.c.l.b16 %v2442
          %v2743 = vunpack.c.l.b16 %v2443
          %v2744 = vunpack.c.l.b16 %v2444
          %v2745 = vunpack.c.l.b16 %v2445
          %v2746 = vunpack.c.l.b16 %v2446
          %v2747 = vunpack.c.l.b16 %v2447
          %v2748 = vunpack.c.l.b16 %v2448
          %v2749 = vunpack.c.l.b16 %v2449
          %v2750 = vunpack.c.l.b16 %v2450
          %v2751 = vunpack.c.l.b16 %v2451
          %v2752 = vunpack.c.l.b16 %v2452
          %v2753 = vunpack.c.l.b16 %v2453
          %v2754 = vunpack.c.l.b16 %v2454
          %v2755 = vunpack.c.l.b16 %v2455
          %v2756 = vunpack.c.l.b16 %v2456
          %v2757 = vunpack.c.l.b16 %v2457
          %v2758 = vunpack.c.l.b16 %v2458
          %v2759 = vunpack.c.l.b16 %v2459
          %v2760 = vunpack.c.l.b16 %v2460
          %v2761 = vunpack.c.l.b16 %v2461
          %v2762 = vunpack.c.l.b16 %v2462
          %v2763 = vunpack.c.l.b16 %v2463
          %v2764 = vunpack.c.l.b16 %v2464
          %v2765 = vunpack.c.l.b16 %v2465
          %v2766 = vunpack.c.l.b16 %v2466
          %v2767 = vunpack.c.l.b16 %v2467
          %v2768 = vunpack.c.l.b16 %v2468
          %v2769 = vunpack.c.l.b16 %v2469
          %v2770 = vunpack.c.l.b16 %v2470
          %v2771 = vunpack.c.l.b16 %v2471
          %v2772 = vunpack.c.l.b16 %v2472
          %v2773 = vunpack.c.l.b16 %v2473
          %v2774 = vunpack.c.l.b16 %v2474
          %v2775 = vunpack.c.l.b16 %v2475
          %v2776 = vunpack.c.l.b16 %v2476
          %v2777 = vunpack.c.l.b16 %v2477
          %v2778 = vunpack.c.l.b16 %v2478
          %v2779 = vunpack.c.l.b16 %v2479
          %v2780 = vunpack.c.l.b16 %v2480
          %v2781 = vunpack.c.l.b16 %v2481
          %v2782 = vunpack.c.l.b16 %v2482
          %v2783 = vunpack.c.l.b16 %v2483
          %v2784 = vunpack.c.l.b16 %v2484
          %v2785 = vunpack.c.l.b16 %v2485
          %v2786 = vunpack.c.l.b16 %v2486
          %v2787 = vunpack.c.l.b16 %v2487
          %v2788 = vunpack.c.l.b16 %v2488
          %v2789 = vunpack.c.l.b16 %v2489
          %v2790 = vunpack.c.l.b16 %v2490
          %v2791 = vunpack.c.l.b16 %v2491
          %v2792 = vunpack.c.l.b16 %v2492
          %v2793 = vunpack.c.l.b16 %v2493
          %v2794 = vunpack.c.l.b16 %v2494
          %v2795 = vunpack.c.l.b16 %v2495
          %v2796 = vunpack.c.l.b16 %v2496
          %v2797 = vunpack.c.l.b16 %v2497
          %v2798 = vunpack.c.l.b16 %v2498
          %v2799 = vunpack.c.l.b16 %v2499
          %v2800 = vunpack.c.l.b16 %v2500
          %v2801 = vunpack.c.l.b16 %v2501
          %v2802 = vunpack.c.l.b16 %v2502
          %v2803 = vunpack.c.l.b16 %v2503
          %v2804 = vunpack.c.l.b16 %v2504
          %v2805 = vunpack.c.l.b16 %v2505
          %v2806 = vunpack.c.l.b16 %v2506
          %v2807 = vunpack.c.l.b16 %v2507
          %v2808 = vunpack.c.l.b16 %v2508
          %v2809 = vunpack.c.l.b16 %v2509
          %v2810 = vunpack.c.l.b16 %v2510
          %v2811 = vunpack.c.l.b16 %v2511
          %v2812 = vunpack.c.l.b16 %v2512
          %v2813 = vunpack.c.l.b16 %v2513
          %v2814 = vunpack.c.l.b16 %v2514
          %v2815 = vunpack.c.l.b16 %v2515
          %v2816 = vunpack.c.l.b16 %v2516
          %v2817 = vunpack.c.l.b16 %v2517
          %v2818 = vpack.c.b16 %v2691, %v2690
          %v2819 = vpack.c.b16 %v2693, %v2692
          %v2820 = vpack.c.b16 %v2695, %v2694
          %v2821 = vpack.c.b16 %v2697, %v2696
          %v2822 = vpack.c.b16 %v2699, %v2698
          %v2823 = vpack.c.b16 %v2701, %v2700
          %v2824 = vpack.c.b16 %v2703, %v2702
          %v2825 = vpack.c.b16 %v2705, %v2704
          %v2826 = vpack.c.b16 %v2707, %v2706
          %v2827 = vpack.c.b16 %v2709, %v2708
          %v2828 = vpack.c.b16 %v2711, %v2710
          %v2829 = vpack.c.b16 %v2713, %v2712
          %v2830 = vpack.c.b16 %v2715, %v2714
          %v2831 = vpack.c.b16 %v2717, %v2716
          %v2832 = vpack.c.b16 %v2719, %v2718
          %v2833 = vpack.c.b16 %v2721, %v2720
          %v2834 = vpack.c.b16 %v2723, %v2722
          %v2835 = vpack.c.b16 %v2725, %v2724
          %v2836 = vpack.c.b16 %v2727, %v2726
          %v2837 = vpack.c.b16 %v2729, %v2728
          %v2838 = vpack.c.b16 %v2731, %v2730
          %v2839 = vpack.c.b16 %v2733, %v2732
          %v2840 = vpack.c.b16 %v2735, %v2734
          %v2841 = vpack.c.b16 %v2737, %v2736
          %v2842 = vpack.c.b16 %v2739, %v2738
          %v2843 = vpack.c.b16 %v2741, %v2740
          %v2844 = vpack.c.b16 %v2743, %v2742
          %v2845 = vpack.c.b16 %v2745, %v2744
          %v2846 = vpack.c.b16 %v2747, %v2746
          %v2847 = vpack.c.b16 %v2749, %v2748
          %v2848 = vpack.c.b16 %v2751, %v2750
          %v2849 = vpack.c.b16 %v2753, %v2752
          %v2850 = vpack.c.b16 %v2755, %v2754
          %v2851 = vpack.c.b16 %v2757, %v2756
          %v2852 = vpack.c.b16 %v2759, %v2758
          %v2853 = vpack.c.b16 %v2761, %v2760
          %v2854 = vpack.c.b16 %v2763, %v2762
          %v2855 = vpack.c.b16 %v2765, %v2764
          %v2856 = vpack.c.b16 %v2767, %v2766
          %v2857 = vpack.c.b16 %v2769, %v2768
          %v2858 = vpack.c.b16 %v2771, %v2770
          %v2859 = vpack.c.b16 %v2773, %v2772
          %v2860 = vpack.c.b16 %v2775, %v2774
          %v2861 = vpack.c.b16 %v2777, %v2776
          %v2862 = vpack.c.b16 %v2779, %v2778
          %v2863 = vpack.c.b16 %v2781, %v2780
          %v2864 = vpack.c.b16 %v2783, %v2782
          %v2865 = vpack.c.b16 %v2785, %v2784
          %v2866 = vpack.c.b16 %v2787, %v2786
          %v2867 = vpack.c.b16 %v2789, %v2788
          %v2868 = vpack.c.b16 %v2791, %v2790
          %v2869 = vpack.c.b16 %v2793, %v2792
          %v2870 = vpack.c.b16 %v2795, %v2794
          %v2871 = vpack.c.b16 %v2797, %v2796
          %v2872 = vpack.c.b16 %v2799, %v2798
          %v2873 = vpack.c.b16 %v2801, %v2800
          %v2874 = vpack.c.b16 %v2803, %v2802
          %v2875 = vpack.c.b16 %v2805, %v2804
          %v2876 = vpack.c.b16 %v2807, %v2806
          %v2877 = vpack.c.b16 %v2809, %v2808
          %v2878 = vpack.c.b16 %v2811, %v2810
          %v2879 = vpack.c.b16 %v2813, %v2812
          %v2880 = vpack.c.b16 %v2815, %v2814
          %v2881 = vpack.c.b16 %v2817, %v2816
          %2946 = vmatpush.bf16.msra.mxu0 %v2825
          %2947 = vmatpush.bf16.msra.mxu0 %v2824
          %2948 = vmatpush.bf16.msra.mxu0 %v2823
          %2949 = vmatpush.bf16.msra.mxu0 %v2822
          %2950 = vmatpush.bf16.msra.mxu0 %v2821
          %2951 = vmatpush.bf16.msra.mxu0 %v2820
          %2952 = vmatpush.bf16.msra.mxu0 %v2819
          %2953 = vmatpush.bf16.msra.mxu0 %v2818
          %2954 = vmatmul.bf16.gmra.mxu0 %v2546
          %v2955 = vpop.f32.mrf.mxu0
          %v2956 = vadd.f32 %v2520, %v2955
          %v2957 = vpop.f32.mrf.mxu0
          %v2958 = vadd.f32 %v2520, %v2957
          %2959 = vdwg.mxu0
          %2960 = vmatpush.bf16.msra.mxu0 %v2833
          %2961 = vmatpush.bf16.msra.mxu0 %v2832
          %2962 = vmatpush.bf16.msra.mxu0 %v2831
          %2963 = vmatpush.bf16.msra.mxu0 %v2830
          %2964 = vmatpush.bf16.msra.mxu0 %v2829
          %2965 = vmatpush.bf16.msra.mxu0 %v2828
          %2966 = vmatpush.bf16.msra.mxu0 %v2827
          %2967 = vmatpush.bf16.msra.mxu0 %v2826
          %2968 = vmatmul.bf16.gmra.mxu0 %v2547
          %v2969 = vpop.f32.mrf.mxu0
          %v2970 = vadd.f32 %v2956, %v2969
          %v2971 = vpop.f32.mrf.mxu0
          %v2972 = vadd.f32 %v2958, %v2971
          %2973 = vdwg.mxu0
          %2974 = vmatpush.bf16.msra.mxu0 %v2841
          %2975 = vmatpush.bf16.msra.mxu0 %v2840
          %2976 = vmatpush.bf16.msra.mxu0 %v2839
          %2977 = vmatpush.bf16.msra.mxu0 %v2838
          %2978 = vmatpush.bf16.msra.mxu0 %v2837
          %2979 = vmatpush.bf16.msra.mxu0 %v2836
          %2980 = vmatpush.bf16.msra.mxu0 %v2835
          %2981 = vmatpush.bf16.msra.mxu0 %v2834
          %2982 = vmatmul.bf16.gmra.mxu0 %v2548
          %v2983 = vpop.f32.mrf.mxu0
          %v2984 = vadd.f32 %v2970, %v2983
          %v2985 = vpop.f32.mrf.mxu0
          %v2986 = vadd.f32 %v2972, %v2985
          %2987 = vdwg.mxu0
          %2988 = vmatpush.bf16.msra.mxu0 %v2849
          %2989 = vmatpush.bf16.msra.mxu0 %v2848
          %2990 = vmatpush.bf16.msra.mxu0 %v2847
          %2991 = vmatpush.bf16.msra.mxu0 %v2846
          %2992 = vmatpush.bf16.msra.mxu0 %v2845
          %2993 = vmatpush.bf16.msra.mxu0 %v2844
          %2994 = vmatpush.bf16.msra.mxu0 %v2843
          %2995 = vmatpush.bf16.msra.mxu0 %v2842
          %2996 = vmatmul.bf16.gmra.mxu0 %v2549
          %v2997 = vpop.f32.mrf.mxu0
          %v2998 = vadd.f32 %v2984, %v2997
          %v2999 = vpop.f32.mrf.mxu0
          %v3000 = vadd.f32 %v2986, %v2999
          %3001 = vdwg.mxu0
          %3002 = vmatpush.bf16.msra.mxu0 %v2857
          %3003 = vmatpush.bf16.msra.mxu0 %v2856
          %3004 = vmatpush.bf16.msra.mxu0 %v2855
          %3005 = vmatpush.bf16.msra.mxu0 %v2854
          %3006 = vmatpush.bf16.msra.mxu0 %v2853
          %3007 = vmatpush.bf16.msra.mxu0 %v2852
          %3008 = vmatpush.bf16.msra.mxu0 %v2851
          %3009 = vmatpush.bf16.msra.mxu0 %v2850
          %3010 = vmatmul.bf16.gmra.mxu0 %v2550
          %v3011 = vpop.f32.mrf.mxu0
          %v3012 = vadd.f32 %v2998, %v3011
          %v3013 = vpop.f32.mrf.mxu0
          %v3014 = vadd.f32 %v3000, %v3013
          %3015 = vdwg.mxu0
          %3016 = vmatpush.bf16.msra.mxu0 %v2865
          %3017 = vmatpush.bf16.msra.mxu0 %v2864
          %3018 = vmatpush.bf16.msra.mxu0 %v2863
          %3019 = vmatpush.bf16.msra.mxu0 %v2862
          %3020 = vmatpush.bf16.msra.mxu0 %v2861
          %3021 = vmatpush.bf16.msra.mxu0 %v2860
          %3022 = vmatpush.bf16.msra.mxu0 %v2859
          %3023 = vmatpush.bf16.msra.mxu0 %v2858
          %3024 = vmatmul.bf16.gmra.mxu0 %v2551
          %v3025 = vpop.f32.mrf.mxu0
          %v3026 = vadd.f32 %v3012, %v3025
          %v3027 = vpop.f32.mrf.mxu0
          %v3028 = vadd.f32 %v3014, %v3027
          %3029 = vdwg.mxu0
          %3030 = vmatpush.bf16.msra.mxu0 %v2873
          %3031 = vmatpush.bf16.msra.mxu0 %v2872
          %3032 = vmatpush.bf16.msra.mxu0 %v2871
          %3033 = vmatpush.bf16.msra.mxu0 %v2870
          %3034 = vmatpush.bf16.msra.mxu0 %v2869
          %3035 = vmatpush.bf16.msra.mxu0 %v2868
          %3036 = vmatpush.bf16.msra.mxu0 %v2867
          %3037 = vmatpush.bf16.msra.mxu0 %v2866
          %3038 = vmatmul.bf16.gmra.mxu0 %v2552
          %v3039 = vpop.f32.mrf.mxu0
          %v3040 = vadd.f32 %v3026, %v3039
          %v3041 = vpop.f32.mrf.mxu0
          %v3042 = vadd.f32 %v3028, %v3041
          %3043 = vdwg.mxu0
          %3044 = vmatpush.bf16.msra.mxu0 %v2881
          %3045 = vmatpush.bf16.msra.mxu0 %v2880
          %3046 = vmatpush.bf16.msra.mxu0 %v2879
          %3047 = vmatpush.bf16.msra.mxu0 %v2878
          %3048 = vmatpush.bf16.msra.mxu0 %v2877
          %3049 = vmatpush.bf16.msra.mxu0 %v2876
          %3050 = vmatpush.bf16.msra.mxu0 %v2875
          %3051 = vmatpush.bf16.msra.mxu0 %v2874
          %3052 = vmatmul.bf16.gmra.mxu0 %v2553
          %v3053 = vpop.f32.mrf.mxu0
          %v3054 = vadd.f32 %v3040, %v3053
          %v3055 = vpop.f32.mrf.mxu0
          %v3056 = vadd.f32 %v3042, %v3055
          %3057 = vdwg.mxu0
          %vm3058 = vcmask 64512
          %3059 = vst.msk [vmem:[#allocation3] sm:$0xff] %vm3058, %v3054
          %3060 = vst.msk [vmem:[#allocation3 + $0x8] sm:$0xff] %vm3058, %v3056
        $region104: #{tpu_custom_call.1} parent=63 // pred_fallthru
          _
        %v3061 = vld [vmem:[#allocation2] sm:$0xff]
        %v3062 = vld [vmem:[#allocation2 + $0x8] sm:$0xff]
        %v3063 = vld [vmem:[#allocation2 + $0x10] sm:$0xff]
        %v3064 = vld [vmem:[#allocation2 + $0x18] sm:$0xff]
        %v3065 = vld [vmem:[#allocation2 + $0x20] sm:$0xff]
        %v3066 = vld [vmem:[#allocation2 + $0x28] sm:$0xff]
        %v3067 = vld [vmem:[#allocation2 + $0x30] sm:$0xff]
        %v3068 = vld [vmem:[#allocation2 + $0x38] sm:$0xff]
        %v3069 = vld [vmem:[#allocation2 + $0x40] sm:$0xff]
        %v3070 = vld [vmem:[#allocation2 + $0x48] sm:$0xff]
        %v3071 = vld [vmem:[#allocation2 + $0x50] sm:$0xff]
        %v3072 = vld [vmem:[#allocation2 + $0x58] sm:$0xff]
        %v3073 = vld [vmem:[#allocation2 + $0x60] sm:$0xff]
        %v3074 = vld [vmem:[#allocation2 + $0x68] sm:$0xff]
        %v3075 = vld [vmem:[#allocation2 + $0x70] sm:$0xff]
        %v3076 = vld [vmem:[#allocation2 + $0x78] sm:$0xff]
        %v3077 = vld [vmem:[#allocation2 + $0x80] sm:$0xff]
        %v3078 = vld [vmem:[#allocation2 + $0x88] sm:$0xff]
        %v3079 = vld [vmem:[#allocation2 + $0x90] sm:$0xff]
        %v3080 = vld [vmem:[#allocation2 + $0x98] sm:$0xff]
        %v3081 = vld [vmem:[#allocation2 + $0xa0] sm:$0xff]
        %v3082 = vld [vmem:[#allocation2 + $0xa8] sm:$0xff]
        %v3083 = vld [vmem:[#allocation2 + $0xb0] sm:$0xff]
        %v3084 = vld [vmem:[#allocation2 + $0xb8] sm:$0xff]
        %v3085 = vld [vmem:[%s496] sm:$0xff]
        %v3086 = vld [vmem:[%s496 + $0x8] sm:$0xff]
        %v3087 = vld [vmem:[%s496 + $0x10] sm:$0xff]
        %v3088 = vld [vmem:[%s496 + $0x18] sm:$0xff]
        %v3089 = vld [vmem:[%s496 + $0x20] sm:$0xff]
        %v3090 = vld [vmem:[%s496 + $0x28] sm:$0xff]
        %v3091 = vld [vmem:[%s496 + $0x30] sm:$0xff]
        %v3092 = vld [vmem:[%s496 + $0x38] sm:$0xff]
        %v3093 = vld [vmem:[%s496 + $0x40] sm:$0xff]
        %v3094 = vld [vmem:[%s496 + $0x48] sm:$0xff]
        %v3095 = vld [vmem:[%s496 + $0x50] sm:$0xff]
        %v3096 = vld [vmem:[%s496 + $0x58] sm:$0xff]
        %v3097 = vld [vmem:[%s496 + $0x60] sm:$0xff]
        %v3098 = vld [vmem:[%s496 + $0x68] sm:$0xff]
        %v3099 = vld [vmem:[%s496 + $0x70] sm:$0xff]
        %v3100 = vld [vmem:[%s496 + $0x78] sm:$0xff]
        %v3101 = vld [vmem:[%s496 + $0x80] sm:$0xff]
        %v3102 = vld [vmem:[%s496 + $0x88] sm:$0xff]
        %v3103 = vld [vmem:[%s496 + $0x90] sm:$0xff]
        %v3104 = vld [vmem:[%s496 + $0x98] sm:$0xff]
        %v3105 = vld [vmem:[%s496 + $0xa0] sm:$0xff]
        %v3106 = vld [vmem:[%s496 + $0xa8] sm:$0xff]
        %v3107 = vld [vmem:[%s496 + $0xb0] sm:$0xff]
        %v3108 = vld [vmem:[%s496 + $0xb8] sm:$0xff]
        %v3109 = vld [vmem:[%s496 + $0xc0] sm:$0xff]
        %v3110 = vld [vmem:[%s496 + $0xc8] sm:$0xff]
        %v3111 = vld [vmem:[%s496 + $0xd0] sm:$0xff]
        %v3112 = vld [vmem:[%s496 + $0xd8] sm:$0xff]
        %v3113 = vld [vmem:[%s496 + $0xe0] sm:$0xff]
        %v3114 = vld [vmem:[%s496 + $0xe8] sm:$0xff]
        %v3115 = vld [vmem:[%s496 + $0xf0] sm:$0xff]
        %v3116 = vld [vmem:[%s496 + $0xf8] sm:$0xff]
        %v3117 = vld [vmem:[%s496 + $0x100] sm:$0xff]
        %v3118 = vld [vmem:[%s496 + $0x108] sm:$0xff]
        %v3119 = vld [vmem:[%s496 + $0x110] sm:$0xff]
        %v3120 = vld [vmem:[%s496 + $0x118] sm:$0xff]
        %v3121 = vld [vmem:[%s496 + $0x120] sm:$0xff]
        %v3122 = vld [vmem:[%s496 + $0x128] sm:$0xff]
        %v3123 = vld [vmem:[%s496 + $0x130] sm:$0xff]
        %v3124 = vld [vmem:[%s496 + $0x138] sm:$0xff]
        %v3125 = vld [vmem:[%s496 + $0x140] sm:$0xff]
        %v3126 = vld [vmem:[%s496 + $0x148] sm:$0xff]
        %v3127 = vld [vmem:[%s496 + $0x150] sm:$0xff]
        %v3128 = vld [vmem:[%s496 + $0x158] sm:$0xff]
        %v3129 = vld [vmem:[%s496 + $0x160] sm:$0xff]
        %v3130 = vld [vmem:[%s496 + $0x168] sm:$0xff]
        %v3131 = vld [vmem:[%s496 + $0x170] sm:$0xff]
        %v3132 = vld [vmem:[%s496 + $0x178] sm:$0xff]
        %v3133 = vld [vmem:[%s496 + $0x180] sm:$0xff]
        %v3134 = vld [vmem:[%s496 + $0x188] sm:$0xff]
        %v3135 = vld [vmem:[%s496 + $0x190] sm:$0xff]
        %v3136 = vld [vmem:[%s496 + $0x198] sm:$0xff]
        %v3137 = vld [vmem:[%s496 + $0x1a0] sm:$0xff]
        %v3138 = vld [vmem:[%s496 + $0x1a8] sm:$0xff]
        %v3139 = vld [vmem:[%s496 + $0x1b0] sm:$0xff]
        %v3140 = vld [vmem:[%s496 + $0x1b8] sm:$0xff]
        %v3141 = vld [vmem:[%s496 + $0x1c0] sm:$0xff]
        %v3142 = vld [vmem:[%s496 + $0x1c8] sm:$0xff]
        %v3143 = vld [vmem:[%s496 + $0x1d0] sm:$0xff]
        %v3144 = vld [vmem:[%s496 + $0x1d8] sm:$0xff]
        %v3145 = vld [vmem:[%s496 + $0x1e0] sm:$0xff]
        %v3146 = vld [vmem:[%s496 + $0x1e8] sm:$0xff]
        %v3147 = vld [vmem:[%s496 + $0x1f0] sm:$0xff]
        %v3148 = vld [vmem:[%s496 + $0x1f8] sm:$0xff]
        %v3149 = vld [vmem:[%s496 + $0x200] sm:$0xff]
        %v3150 = vld [vmem:[%s496 + $0x208] sm:$0xff]
        %v3151 = vld [vmem:[%s496 + $0x210] sm:$0xff]
        %v3152 = vld [vmem:[%s496 + $0x218] sm:$0xff]
        %v3153 = vld [vmem:[%s496 + $0x220] sm:$0xff]
        %v3154 = vld [vmem:[%s496 + $0x228] sm:$0xff]
        %v3155 = vld [vmem:[%s496 + $0x230] sm:$0xff]
        %v3156 = vld [vmem:[%s496 + $0x238] sm:$0xff]
        %v3157 = vld [vmem:[%s496 + $0x240] sm:$0xff]
        %v3158 = vld [vmem:[%s496 + $0x248] sm:$0xff]
        %v3159 = vld [vmem:[%s496 + $0x250] sm:$0xff]
        %v3160 = vld [vmem:[%s496 + $0x258] sm:$0xff]
        %v3161 = vld [vmem:[%s496 + $0x260] sm:$0xff]
        %v3162 = vld [vmem:[%s496 + $0x268] sm:$0xff]
        %v3163 = vld [vmem:[%s496 + $0x270] sm:$0xff]
        %v3164 = vld [vmem:[%s496 + $0x278] sm:$0xff]
        %v3165 = vld [vmem:[%s496 + $0x280] sm:$0xff]
        %v3166 = vld [vmem:[%s496 + $0x288] sm:$0xff]
        %v3167 = vld [vmem:[%s496 + $0x290] sm:$0xff]
        %v3168 = vld [vmem:[%s496 + $0x298] sm:$0xff]
        %v3169 = vld [vmem:[%s496 + $0x2a0] sm:$0xff]
        %v3170 = vld [vmem:[%s496 + $0x2a8] sm:$0xff]
        %v3171 = vld [vmem:[%s496 + $0x2b0] sm:$0xff]
        %v3172 = vld [vmem:[%s496 + $0x2b8] sm:$0xff]
        %v3173 = vld [vmem:[%s496 + $0x2c0] sm:$0xff]
        %v3174 = vld [vmem:[%s496 + $0x2c8] sm:$0xff]
        %v3175 = vld [vmem:[%s496 + $0x2d0] sm:$0xff]
        %v3176 = vld [vmem:[%s496 + $0x2d8] sm:$0xff]
        %v3177 = vld [vmem:[%s496 + $0x2e0] sm:$0xff]
        %v3178 = vld [vmem:[%s496 + $0x2e8] sm:$0xff]
        %v3179 = vld [vmem:[%s496 + $0x2f0] sm:$0xff]
        %v3180 = vld [vmem:[%s496 + $0x2f8] sm:$0xff]
        %v3181 = vld [vmem:[%s496 + $0x300] sm:$0xff]
        %v3182 = vld [vmem:[%s496 + $0x308] sm:$0xff]
        %v3183 = vld [vmem:[%s496 + $0x310] sm:$0xff]
        %v3184 = vld [vmem:[%s496 + $0x318] sm:$0xff]
        %v3185 = vld [vmem:[%s496 + $0x320] sm:$0xff]
        %v3186 = vld [vmem:[%s496 + $0x328] sm:$0xff]
        %v3187 = vld [vmem:[%s496 + $0x330] sm:$0xff]
        %v3188 = vld [vmem:[%s496 + $0x338] sm:$0xff]
        %v3189 = vld [vmem:[%s496 + $0x340] sm:$0xff]
        %v3190 = vld [vmem:[%s496 + $0x348] sm:$0xff]
        %v3191 = vld [vmem:[%s496 + $0x350] sm:$0xff]
        %v3192 = vld [vmem:[%s496 + $0x358] sm:$0xff]
        %v3193 = vld [vmem:[%s496 + $0x360] sm:$0xff]
        %v3194 = vld [vmem:[%s496 + $0x368] sm:$0xff]
        %v3195 = vld [vmem:[%s496 + $0x370] sm:$0xff]
        %v3196 = vld [vmem:[%s496 + $0x378] sm:$0xff]
        %v3197 = vld [vmem:[%s496 + $0x380] sm:$0xff]
        %v3198 = vld [vmem:[%s496 + $0x388] sm:$0xff]
        %v3199 = vld [vmem:[%s496 + $0x390] sm:$0xff]
        %v3200 = vld [vmem:[%s496 + $0x398] sm:$0xff]
        %v3201 = vld [vmem:[%s496 + $0x3a0] sm:$0xff]
        %v3202 = vld [vmem:[%s496 + $0x3a8] sm:$0xff]
        %v3203 = vld [vmem:[%s496 + $0x3b0] sm:$0xff]
        %v3204 = vld [vmem:[%s496 + $0x3b8] sm:$0xff]
        %v3205 = vld [vmem:[%s496 + $0x3c0] sm:$0xff]
        %v3206 = vld [vmem:[%s496 + $0x3c8] sm:$0xff]
        %v3207 = vld [vmem:[%s496 + $0x3d0] sm:$0xff]
        %v3208 = vld [vmem:[%s496 + $0x3d8] sm:$0xff]
        %v3209 = vld [vmem:[%s496 + $0x3e0] sm:$0xff]
        %v3210 = vld [vmem:[%s496 + $0x3e8] sm:$0xff]
        %v3211 = vld [vmem:[%s496 + $0x3f0] sm:$0xff]
        %v3212 = vld [vmem:[%s496 + $0x3f8] sm:$0xff]
        %v3213 = vld [vmem:[%s496 + $0x400] sm:$0xff]
        %v3214 = vld [vmem:[%s496 + $0x408] sm:$0xff]
        %v3215 = vld [vmem:[%s496 + $0x410] sm:$0xff]
        %v3216 = vld [vmem:[%s496 + $0x418] sm:$0xff]
        %v3217 = vld [vmem:[%s496 + $0x420] sm:$0xff]
        %v3218 = vld [vmem:[%s496 + $0x428] sm:$0xff]
        %v3219 = vld [vmem:[%s496 + $0x430] sm:$0xff]
        %v3220 = vld [vmem:[%s496 + $0x438] sm:$0xff]
        %v3221 = vld [vmem:[%s496 + $0x440] sm:$0xff]
        %v3222 = vld [vmem:[%s496 + $0x448] sm:$0xff]
        %v3223 = vld [vmem:[%s496 + $0x450] sm:$0xff]
        %v3224 = vld [vmem:[%s496 + $0x458] sm:$0xff]
        %v3225 = vld [vmem:[%s496 + $0x460] sm:$0xff]
        %v3226 = vld [vmem:[%s496 + $0x468] sm:$0xff]
        %v3227 = vld [vmem:[%s496 + $0x470] sm:$0xff]
        %v3228 = vld [vmem:[%s496 + $0x478] sm:$0xff]
        %v3229 = vld [vmem:[%s496 + $0x480] sm:$0xff]
        %v3230 = vld [vmem:[%s496 + $0x488] sm:$0xff]
        %v3231 = vld [vmem:[%s496 + $0x490] sm:$0xff]
        %v3232 = vld [vmem:[%s496 + $0x498] sm:$0xff]
        %v3233 = vld [vmem:[%s496 + $0x4a0] sm:$0xff]
        %v3234 = vld [vmem:[%s496 + $0x4a8] sm:$0xff]
        %v3235 = vld [vmem:[%s496 + $0x4b0] sm:$0xff]
        %v3236 = vld [vmem:[%s496 + $0x4b8] sm:$0xff]
        %v3237 = vld [vmem:[%s496 + $0x4c0] sm:$0xff]
        %v3238 = vld [vmem:[%s496 + $0x4c8] sm:$0xff]
        %v3239 = vld [vmem:[%s496 + $0x4d0] sm:$0xff]
        %v3240 = vld [vmem:[%s496 + $0x4d8] sm:$0xff]
        %v3241 = vld [vmem:[%s496 + $0x4e0] sm:$0xff]
        %v3242 = vld [vmem:[%s496 + $0x4e8] sm:$0xff]
        %v3243 = vld [vmem:[%s496 + $0x4f0] sm:$0xff]
        %v3244 = vld [vmem:[%s496 + $0x4f8] sm:$0xff]
        %v3245 = vld [vmem:[%s496 + $0x500] sm:$0xff]
        %v3246 = vld [vmem:[%s496 + $0x508] sm:$0xff]
        %v3247 = vld [vmem:[%s496 + $0x510] sm:$0xff]
        %v3248 = vld [vmem:[%s496 + $0x518] sm:$0xff]
        %v3249 = vld [vmem:[%s496 + $0x520] sm:$0xff]
        %v3250 = vld [vmem:[%s496 + $0x528] sm:$0xff]
        %v3251 = vld [vmem:[%s496 + $0x530] sm:$0xff]
        %v3252 = vld [vmem:[%s496 + $0x538] sm:$0xff]
        %v3253 = vld [vmem:[%s496 + $0x540] sm:$0xff]
        %v3254 = vld [vmem:[%s496 + $0x548] sm:$0xff]
        %v3255 = vld [vmem:[%s496 + $0x550] sm:$0xff]
        %v3256 = vld [vmem:[%s496 + $0x558] sm:$0xff]
        %v3257 = vld [vmem:[%s496 + $0x560] sm:$0xff]
        %v3258 = vld [vmem:[%s496 + $0x568] sm:$0xff]
        %v3259 = vld [vmem:[%s496 + $0x570] sm:$0xff]
        %v3260 = vld [vmem:[%s496 + $0x578] sm:$0xff]
        %v3261 = vld [vmem:[%s496 + $0x580] sm:$0xff]
        %v3262 = vld [vmem:[%s496 + $0x588] sm:$0xff]
        %v3263 = vld [vmem:[%s496 + $0x590] sm:$0xff]
        %v3264 = vld [vmem:[%s496 + $0x598] sm:$0xff]
        %v3265 = vld [vmem:[%s496 + $0x5a0] sm:$0xff]
        %v3266 = vld [vmem:[%s496 + $0x5a8] sm:$0xff]
        %v3267 = vld [vmem:[%s496 + $0x5b0] sm:$0xff]
        %v3268 = vld [vmem:[%s496 + $0x5b8] sm:$0xff]
        %v3269 = vld [vmem:[%s496 + $0x5c0] sm:$0xff]
        %v3270 = vld [vmem:[%s496 + $0x5c8] sm:$0xff]
        %v3271 = vld [vmem:[%s496 + $0x5d0] sm:$0xff]
        %v3272 = vld [vmem:[%s496 + $0x5d8] sm:$0xff]
        %v3273 = vld [vmem:[%s496 + $0x5e0] sm:$0xff]
        %v3274 = vld [vmem:[%s496 + $0x5e8] sm:$0xff]
        %v3275 = vld [vmem:[%s496 + $0x5f0] sm:$0xff]
        %v3276 = vld [vmem:[%s496 + $0x5f8] sm:$0xff]
        %v3277 = vld [vmem:[%s496 + $0x600] sm:$0xff]
        %v3278 = vld [vmem:[%s496 + $0x608] sm:$0xff]
        %v3279 = vld [vmem:[%s496 + $0x610] sm:$0xff]
        %v3280 = vld [vmem:[%s496 + $0x618] sm:$0xff]
        %v3281 = vld [vmem:[%s496 + $0x620] sm:$0xff]
        %v3282 = vld [vmem:[%s496 + $0x628] sm:$0xff]
        %v3283 = vld [vmem:[%s496 + $0x630] sm:$0xff]
        %v3284 = vld [vmem:[%s496 + $0x638] sm:$0xff]
        %v3285 = vld [vmem:[%s496 + $0x640] sm:$0xff]
        %v3286 = vld [vmem:[%s496 + $0x648] sm:$0xff]
        %v3287 = vld [vmem:[%s496 + $0x650] sm:$0xff]
        %v3288 = vld [vmem:[%s496 + $0x658] sm:$0xff]
        %v3289 = vld [vmem:[%s496 + $0x660] sm:$0xff]
        %v3290 = vld [vmem:[%s496 + $0x668] sm:$0xff]
        %v3291 = vld [vmem:[%s496 + $0x670] sm:$0xff]
        %v3292 = vld [vmem:[%s496 + $0x678] sm:$0xff]
        %v3293 = vld [vmem:[%s496 + $0x680] sm:$0xff]
        %v3294 = vld [vmem:[%s496 + $0x688] sm:$0xff]
        %v3295 = vld [vmem:[%s496 + $0x690] sm:$0xff]
        %v3296 = vld [vmem:[%s496 + $0x698] sm:$0xff]
        %v3297 = vld [vmem:[%s496 + $0x6a0] sm:$0xff]
        %v3298 = vld [vmem:[%s496 + $0x6a8] sm:$0xff]
        %v3299 = vld [vmem:[%s496 + $0x6b0] sm:$0xff]
        %v3300 = vld [vmem:[%s496 + $0x6b8] sm:$0xff]
        %v3301 = vld [vmem:[%s496 + $0x6c0] sm:$0xff]
        %v3302 = vld [vmem:[%s496 + $0x6c8] sm:$0xff]
        %v3303 = vld [vmem:[%s496 + $0x6d0] sm:$0xff]
        %v3304 = vld [vmem:[%s496 + $0x6d8] sm:$0xff]
        %v3305 = vld [vmem:[%s496 + $0x6e0] sm:$0xff]
        %v3306 = vld [vmem:[%s496 + $0x6e8] sm:$0xff]
        %v3307 = vld [vmem:[%s496 + $0x6f0] sm:$0xff]
        %v3308 = vld [vmem:[%s496 + $0x6f8] sm:$0xff]
        %v3309 = vld [vmem:[%s496 + $0x700] sm:$0xff]
        %v3310 = vld [vmem:[%s496 + $0x708] sm:$0xff]
        %v3311 = vld [vmem:[%s496 + $0x710] sm:$0xff]
        %v3312 = vld [vmem:[%s496 + $0x718] sm:$0xff]
        %v3313 = vld [vmem:[%s496 + $0x720] sm:$0xff]
        %v3314 = vld [vmem:[%s496 + $0x728] sm:$0xff]
        %v3315 = vld [vmem:[%s496 + $0x730] sm:$0xff]
        %v3316 = vld [vmem:[%s496 + $0x738] sm:$0xff]
        %v3317 = vld [vmem:[%s496 + $0x740] sm:$0xff]
        %v3318 = vld [vmem:[%s496 + $0x748] sm:$0xff]
        %v3319 = vld [vmem:[%s496 + $0x750] sm:$0xff]
        %v3320 = vld [vmem:[%s496 + $0x758] sm:$0xff]
        %v3321 = vld [vmem:[%s496 + $0x760] sm:$0xff]
        %v3322 = vld [vmem:[%s496 + $0x768] sm:$0xff]
        %v3323 = vld [vmem:[%s496 + $0x770] sm:$0xff]
        %v3324 = vld [vmem:[%s496 + $0x778] sm:$0xff]
        %v3325 = vld [vmem:[%s496 + $0x780] sm:$0xff]
        %v3326 = vld [vmem:[%s496 + $0x788] sm:$0xff]
        %v3327 = vld [vmem:[%s496 + $0x790] sm:$0xff]
        %v3328 = vld [vmem:[%s496 + $0x798] sm:$0xff]
        %v3329 = vld [vmem:[%s496 + $0x7a0] sm:$0xff]
        %v3330 = vld [vmem:[%s496 + $0x7a8] sm:$0xff]
        %v3331 = vld [vmem:[%s496 + $0x7b0] sm:$0xff]
        %v3332 = vld [vmem:[%s496 + $0x7b8] sm:$0xff]
        %v3333 = vld [vmem:[%s496 + $0x7c0] sm:$0xff]
        %v3334 = vld [vmem:[%s496 + $0x7c8] sm:$0xff]
        %v3335 = vld [vmem:[%s496 + $0x7d0] sm:$0xff]
        %v3336 = vld [vmem:[%s496 + $0x7d8] sm:$0xff]
        %v3337 = vld [vmem:[%s496 + $0x7e0] sm:$0xff]
        %v3338 = vld [vmem:[%s496 + $0x7e8] sm:$0xff]
        %v3339 = vld [vmem:[%s496 + $0x7f0] sm:$0xff]
        %v3340 = vld [vmem:[%s496 + $0x7f8] sm:$0xff]
        %v3341 = vld [vmem:[%s496 + $0x800] sm:$0xff]
        %v3342 = vld [vmem:[%s496 + $0x808] sm:$0xff]
        %v3343 = vld [vmem:[%s496 + $0x810] sm:$0xff]
        %v3344 = vld [vmem:[%s496 + $0x818] sm:$0xff]
        %v3345 = vld [vmem:[%s496 + $0x820] sm:$0xff]
        %v3346 = vld [vmem:[%s496 + $0x828] sm:$0xff]
        %v3347 = vld [vmem:[%s496 + $0x830] sm:$0xff]
        %v3348 = vld [vmem:[%s496 + $0x838] sm:$0xff]
        %v3349 = vld [vmem:[%s496 + $0x840] sm:$0xff]
        %v3350 = vld [vmem:[%s496 + $0x848] sm:$0xff]
        %v3351 = vld [vmem:[%s496 + $0x850] sm:$0xff]
        %v3352 = vld [vmem:[%s496 + $0x858] sm:$0xff]
        %v3353 = vld [vmem:[%s496 + $0x860] sm:$0xff]
        %v3354 = vld [vmem:[%s496 + $0x868] sm:$0xff]
        %v3355 = vld [vmem:[%s496 + $0x870] sm:$0xff]
        %v3356 = vld [vmem:[%s496 + $0x878] sm:$0xff]
        %v3357 = vld [vmem:[%s496 + $0x880] sm:$0xff]
        %v3358 = vld [vmem:[%s496 + $0x888] sm:$0xff]
        %v3359 = vld [vmem:[%s496 + $0x890] sm:$0xff]
        %v3360 = vld [vmem:[%s496 + $0x898] sm:$0xff]
        %v3361 = vld [vmem:[%s496 + $0x8a0] sm:$0xff]
        %v3362 = vld [vmem:[%s496 + $0x8a8] sm:$0xff]
        %v3363 = vld [vmem:[%s496 + $0x8b0] sm:$0xff]
        %v3364 = vld [vmem:[%s496 + $0x8b8] sm:$0xff]
        %v3365 = vld [vmem:[%s496 + $0x8c0] sm:$0xff]
        %v3366 = vld [vmem:[%s496 + $0x8c8] sm:$0xff]
        %v3367 = vld [vmem:[%s496 + $0x8d0] sm:$0xff]
        %v3368 = vld [vmem:[%s496 + $0x8d8] sm:$0xff]
        %v3369 = vld [vmem:[%s496 + $0x8e0] sm:$0xff]
        %v3370 = vld [vmem:[%s496 + $0x8e8] sm:$0xff]
        %v3371 = vld [vmem:[%s496 + $0x8f0] sm:$0xff]
        %v3372 = vld [vmem:[%s496 + $0x8f8] sm:$0xff]
        %v3373 = vld [vmem:[%s496 + $0x900] sm:$0xff]
        %v3374 = vld [vmem:[%s496 + $0x908] sm:$0xff]
        %v3375 = vld [vmem:[%s496 + $0x910] sm:$0xff]
        %v3376 = vld [vmem:[%s496 + $0x918] sm:$0xff]
        %v3377 = vld [vmem:[%s496 + $0x920] sm:$0xff]
        %v3378 = vld [vmem:[%s496 + $0x928] sm:$0xff]
        %v3379 = vld [vmem:[%s496 + $0x930] sm:$0xff]
        %v3380 = vld [vmem:[%s496 + $0x938] sm:$0xff]
        %v3381 = vld [vmem:[%s496 + $0x940] sm:$0xff]
        %v3382 = vld [vmem:[%s496 + $0x948] sm:$0xff]
        %v3383 = vld [vmem:[%s496 + $0x950] sm:$0xff]
        %v3384 = vld [vmem:[%s496 + $0x958] sm:$0xff]
        %v3385 = vld [vmem:[%s496 + $0x960] sm:$0xff]
        %v3386 = vld [vmem:[%s496 + $0x968] sm:$0xff]
        %v3387 = vld [vmem:[%s496 + $0x970] sm:$0xff]
        %v3388 = vld [vmem:[%s496 + $0x978] sm:$0xff]
        %v3389 = vld [vmem:[%s496 + $0x980] sm:$0xff]
        %v3390 = vld [vmem:[%s496 + $0x988] sm:$0xff]
        %v3391 = vld [vmem:[%s496 + $0x990] sm:$0xff]
        %v3392 = vld [vmem:[%s496 + $0x998] sm:$0xff]
        %v3393 = vld [vmem:[%s496 + $0x9a0] sm:$0xff]
        %v3394 = vld [vmem:[%s496 + $0x9a8] sm:$0xff]
        %v3395 = vld [vmem:[%s496 + $0x9b0] sm:$0xff]
        %v3396 = vld [vmem:[%s496 + $0x9b8] sm:$0xff]
        %v3397 = vld [vmem:[%s496 + $0x9c0] sm:$0xff]
        %v3398 = vld [vmem:[%s496 + $0x9c8] sm:$0xff]
        %v3399 = vld [vmem:[%s496 + $0x9d0] sm:$0xff]
        %v3400 = vld [vmem:[%s496 + $0x9d8] sm:$0xff]
        %v3401 = vld [vmem:[%s496 + $0x9e0] sm:$0xff]
        %v3402 = vld [vmem:[%s496 + $0x9e8] sm:$0xff]
        %v3403 = vld [vmem:[%s496 + $0x9f0] sm:$0xff]
        %v3404 = vld [vmem:[%s496 + $0x9f8] sm:$0xff]
        %v3405 = vld [vmem:[%s496 + $0xa00] sm:$0xff]
        %v3406 = vld [vmem:[%s496 + $0xa08] sm:$0xff]
        %v3407 = vld [vmem:[%s496 + $0xa10] sm:$0xff]
        %v3408 = vld [vmem:[%s496 + $0xa18] sm:$0xff]
        %v3409 = vld [vmem:[%s496 + $0xa20] sm:$0xff]
        %v3410 = vld [vmem:[%s496 + $0xa28] sm:$0xff]
        %v3411 = vld [vmem:[%s496 + $0xa30] sm:$0xff]
        %v3412 = vld [vmem:[%s496 + $0xa38] sm:$0xff]
        %v3413 = vld [vmem:[%s496 + $0xa40] sm:$0xff]
        %v3414 = vld [vmem:[%s496 + $0xa48] sm:$0xff]
        %v3415 = vld [vmem:[%s496 + $0xa50] sm:$0xff]
        %v3416 = vld [vmem:[%s496 + $0xa58] sm:$0xff]
        %v3417 = vld [vmem:[%s496 + $0xa60] sm:$0xff]
        %v3418 = vld [vmem:[%s496 + $0xa68] sm:$0xff]
        %v3419 = vld [vmem:[%s496 + $0xa70] sm:$0xff]
        %v3420 = vld [vmem:[%s496 + $0xa78] sm:$0xff]
        %v3421 = vld [vmem:[%s496 + $0xa80] sm:$0xff]
        %v3422 = vld [vmem:[%s496 + $0xa88] sm:$0xff]
        %v3423 = vld [vmem:[%s496 + $0xa90] sm:$0xff]
        %v3424 = vld [vmem:[%s496 + $0xa98] sm:$0xff]
        %v3425 = vld [vmem:[%s496 + $0xaa0] sm:$0xff]
        %v3426 = vld [vmem:[%s496 + $0xaa8] sm:$0xff]
        %v3427 = vld [vmem:[%s496 + $0xab0] sm:$0xff]
        %v3428 = vld [vmem:[%s496 + $0xab8] sm:$0xff]
        %v3429 = vld [vmem:[%s496 + $0xac0] sm:$0xff]
        %v3430 = vld [vmem:[%s496 + $0xac8] sm:$0xff]
        %v3431 = vld [vmem:[%s496 + $0xad0] sm:$0xff]
        %v3432 = vld [vmem:[%s496 + $0xad8] sm:$0xff]
        %v3433 = vld [vmem:[%s496 + $0xae0] sm:$0xff]
        %v3434 = vld [vmem:[%s496 + $0xae8] sm:$0xff]
        %v3435 = vld [vmem:[%s496 + $0xaf0] sm:$0xff]
        %v3436 = vld [vmem:[%s496 + $0xaf8] sm:$0xff]
        %v3437 = vld [vmem:[%s496 + $0xb00] sm:$0xff]
        %v3438 = vld [vmem:[%s496 + $0xb08] sm:$0xff]
        %v3439 = vld [vmem:[%s496 + $0xb10] sm:$0xff]
        %v3440 = vld [vmem:[%s496 + $0xb18] sm:$0xff]
        %v3441 = vld [vmem:[%s496 + $0xb20] sm:$0xff]
        %v3442 = vld [vmem:[%s496 + $0xb28] sm:$0xff]
        %v3443 = vld [vmem:[%s496 + $0xb30] sm:$0xff]
        %v3444 = vld [vmem:[%s496 + $0xb38] sm:$0xff]
        %v3445 = vld [vmem:[%s496 + $0xb40] sm:$0xff]
        %v3446 = vld [vmem:[%s496 + $0xb48] sm:$0xff]
        %v3447 = vld [vmem:[%s496 + $0xb50] sm:$0xff]
        %v3448 = vld [vmem:[%s496 + $0xb58] sm:$0xff]
        %v3449 = vld [vmem:[%s496 + $0xb60] sm:$0xff]
        %v3450 = vld [vmem:[%s496 + $0xb68] sm:$0xff]
        %v3451 = vld [vmem:[%s496 + $0xb70] sm:$0xff]
        %v3452 = vld [vmem:[%s496 + $0xb78] sm:$0xff]
        %v3453 = vld [vmem:[%s496 + $0xb80] sm:$0xff]
        %v3454 = vld [vmem:[%s496 + $0xb88] sm:$0xff]
        %v3455 = vld [vmem:[%s496 + $0xb90] sm:$0xff]
        %v3456 = vld [vmem:[%s496 + $0xb98] sm:$0xff]
        %v3457 = vld [vmem:[%s496 + $0xba0] sm:$0xff]
        %v3458 = vld [vmem:[%s496 + $0xba8] sm:$0xff]
        %v3459 = vld [vmem:[%s496 + $0xbb0] sm:$0xff]
        %v3460 = vld [vmem:[%s496 + $0xbb8] sm:$0xff]
        %v3461 = vld [vmem:[%s496 + $0xbc0] sm:$0xff]
        %v3462 = vld [vmem:[%s496 + $0xbc8] sm:$0xff]
        %v3463 = vld [vmem:[%s496 + $0xbd0] sm:$0xff]
        %v3464 = vld [vmem:[%s496 + $0xbd8] sm:$0xff]
        %v3465 = vld [vmem:[%s496 + $0xbe0] sm:$0xff]
        %v3466 = vld [vmem:[%s496 + $0xbe8] sm:$0xff]
        %v3467 = vld [vmem:[%s496 + $0xbf0] sm:$0xff]
        %v3468 = vld [vmem:[%s496 + $0xbf8] sm:$0xff]
        %v3469 = vld [vmem:[%s506] sm:$0x3]
        %v3471 = vperm.slane %v3469, 0
        %v3472 = vperm.slane %v3469, 1
        %v3499 = vunpack.c.l.b16 %v3061
        %v3500 = vunpack.c.h.b16 %v3061
        %v3501 = vunpack.c.l.b16 %v3062
        %v3502 = vunpack.c.h.b16 %v3062
        %v3503 = vunpack.c.l.b16 %v3063
        %v3504 = vunpack.c.h.b16 %v3063
        %v3505 = vunpack.c.l.b16 %v3064
        %v3506 = vunpack.c.h.b16 %v3064
        %v3507 = vunpack.c.l.b16 %v3065
        %v3508 = vunpack.c.h.b16 %v3065
        %v3509 = vunpack.c.l.b16 %v3066
        %v3510 = vunpack.c.h.b16 %v3066
        %v3511 = vunpack.c.l.b16 %v3067
        %v3512 = vunpack.c.h.b16 %v3067
        %v3513 = vunpack.c.l.b16 %v3068
        %v3514 = vunpack.c.h.b16 %v3068
        %v3515 = vunpack.c.l.b16 %v3069
        %v3516 = vunpack.c.h.b16 %v3069
        %v3517 = vunpack.c.l.b16 %v3070
        %v3518 = vunpack.c.h.b16 %v3070
        %v3519 = vunpack.c.l.b16 %v3071
        %v3520 = vunpack.c.h.b16 %v3071
        %v3521 = vunpack.c.l.b16 %v3072
        %v3522 = vunpack.c.h.b16 %v3072
        %v3523 = vunpack.c.l.b16 %v3073
        %v3524 = vunpack.c.h.b16 %v3073
        %v3525 = vunpack.c.l.b16 %v3074
        %v3526 = vunpack.c.h.b16 %v3074
        %v3527 = vunpack.c.l.b16 %v3075
        %v3528 = vunpack.c.h.b16 %v3075
        %v3529 = vunpack.c.l.b16 %v3076
        %v3530 = vunpack.c.h.b16 %v3076
        %v3531 = vunpack.c.l.b16 %v3077
        %v3532 = vunpack.c.h.b16 %v3077
        %v3533 = vunpack.c.l.b16 %v3078
        %v3534 = vunpack.c.h.b16 %v3078
        %v3535 = vunpack.c.l.b16 %v3079
        %v3536 = vunpack.c.h.b16 %v3079
        %v3537 = vunpack.c.l.b16 %v3080
        %v3538 = vunpack.c.h.b16 %v3080
        %v3539 = vunpack.c.l.b16 %v3081
        %v3540 = vunpack.c.h.b16 %v3081
        %v3541 = vunpack.c.l.b16 %v3082
        %v3542 = vunpack.c.h.b16 %v3082
        %v3543 = vunpack.c.l.b16 %v3083
        %v3544 = vunpack.c.h.b16 %v3083
        %v3545 = vunpack.c.l.b16 %v3084
        %v3546 = vunpack.c.h.b16 %v3084
        %v3547 = vpack.c.b16 %v3523, %v3499
        %v3548 = vpack.c.b16 %v3524, %v3500
        %v3549 = vpack.c.b16 %v3525, %v3501
        %v3550 = vpack.c.b16 %v3526, %v3502
        %v3551 = vpack.c.b16 %v3527, %v3503
        %v3552 = vpack.c.b16 %v3528, %v3504
        %v3553 = vpack.c.b16 %v3529, %v3505
        %v3554 = vpack.c.b16 %v3530, %v3506
        %v3555 = vpack.c.b16 %v3531, %v3507
        %v3556 = vpack.c.b16 %v3532, %v3508
        %v3557 = vpack.c.b16 %v3533, %v3509
        %v3558 = vpack.c.b16 %v3534, %v3510
        %v3559 = vpack.c.b16 %v3535, %v3511
        %v3560 = vpack.c.b16 %v3536, %v3512
        %v3561 = vpack.c.b16 %v3537, %v3513
        %v3562 = vpack.c.b16 %v3538, %v3514
        %v3563 = vpack.c.b16 %v3539, %v3515
        %v3564 = vpack.c.b16 %v3540, %v3516
        %v3565 = vpack.c.b16 %v3541, %v3517
        %v3566 = vpack.c.b16 %v3542, %v3518
        %v3567 = vpack.c.b16 %v3543, %v3519
        %v3568 = vpack.c.b16 %v3544, %v3520
        %v3569 = vpack.c.b16 %v3545, %v3521
        %v3570 = vpack.c.b16 %v3546, %v3522
        %v3979 = vunpack.c.l.b16 %v3085
        %v3980 = vunpack.c.h.b16 %v3085
        %v3981 = vunpack.c.l.b16 %v3086
        %v3982 = vunpack.c.h.b16 %v3086
        %v3983 = vunpack.c.l.b16 %v3087
        %v3984 = vunpack.c.h.b16 %v3087
        %v3985 = vunpack.c.l.b16 %v3088
        %v3986 = vunpack.c.h.b16 %v3088
        %v3987 = vunpack.c.l.b16 %v3089
        %v3988 = vunpack.c.h.b16 %v3089
        %v3989 = vunpack.c.l.b16 %v3090
        %v3990 = vunpack.c.h.b16 %v3090
        %v3991 = vunpack.c.l.b16 %v3091
        %v3992 = vunpack.c.h.b16 %v3091
        %v3993 = vunpack.c.l.b16 %v3092
        %v3994 = vunpack.c.h.b16 %v3092
        %v3995 = vunpack.c.l.b16 %v3093
        %v3996 = vunpack.c.h.b16 %v3093
        %v3997 = vunpack.c.l.b16 %v3094
        %v3998 = vunpack.c.h.b16 %v3094
        %v3999 = vunpack.c.l.b16 %v3095
        %v4000 = vunpack.c.h.b16 %v3095
        %v4001 = vunpack.c.l.b16 %v3096
        %v4002 = vunpack.c.h.b16 %v3096
        %v4003 = vunpack.c.l.b16 %v3097
        %v4004 = vunpack.c.h.b16 %v3097
        %v4005 = vunpack.c.l.b16 %v3098
        %v4006 = vunpack.c.h.b16 %v3098
        %v4007 = vunpack.c.l.b16 %v3099
        %v4008 = vunpack.c.h.b16 %v3099
        %v4009 = vunpack.c.l.b16 %v3100
        %v4010 = vunpack.c.h.b16 %v3100
        %v4011 = vunpack.c.l.b16 %v3101
        %v4012 = vunpack.c.h.b16 %v3101
        %v4013 = vunpack.c.l.b16 %v3102
        %v4014 = vunpack.c.h.b16 %v3102
        %v4015 = vunpack.c.l.b16 %v3103
        %v4016 = vunpack.c.h.b16 %v3103
        %v4017 = vunpack.c.l.b16 %v3104
        %v4018 = vunpack.c.h.b16 %v3104
        %v4019 = vunpack.c.l.b16 %v3105
        %v4020 = vunpack.c.h.b16 %v3105
        %v4021 = vunpack.c.l.b16 %v3106
        %v4022 = vunpack.c.h.b16 %v3106
        %v4023 = vunpack.c.l.b16 %v3107
        %v4024 = vunpack.c.h.b16 %v3107
        %v4025 = vunpack.c.l.b16 %v3108
        %v4026 = vunpack.c.h.b16 %v3108
        %v4027 = vunpack.c.l.b16 %v3109
        %v4028 = vunpack.c.h.b16 %v3109
        %v4029 = vunpack.c.l.b16 %v3110
        %v4030 = vunpack.c.h.b16 %v3110
        %v4031 = vunpack.c.l.b16 %v3111
        %v4032 = vunpack.c.h.b16 %v3111
        %v4033 = vunpack.c.l.b16 %v3112
        %v4034 = vunpack.c.h.b16 %v3112
        %v4035 = vunpack.c.l.b16 %v3113
        %v4036 = vunpack.c.h.b16 %v3113
        %v4037 = vunpack.c.l.b16 %v3114
        %v4038 = vunpack.c.h.b16 %v3114
        %v4039 = vunpack.c.l.b16 %v3115
        %v4040 = vunpack.c.h.b16 %v3115
        %v4041 = vunpack.c.l.b16 %v3116
        %v4042 = vunpack.c.h.b16 %v3116
        %v4043 = vunpack.c.l.b16 %v3117
        %v4044 = vunpack.c.h.b16 %v3117
        %v4045 = vunpack.c.l.b16 %v3118
        %v4046 = vunpack.c.h.b16 %v3118
        %v4047 = vunpack.c.l.b16 %v3119
        %v4048 = vunpack.c.h.b16 %v3119
        %v4049 = vunpack.c.l.b16 %v3120
        %v4050 = vunpack.c.h.b16 %v3120
        %v4051 = vunpack.c.l.b16 %v3121
        %v4052 = vunpack.c.h.b16 %v3121
        %v4053 = vunpack.c.l.b16 %v3122
        %v4054 = vunpack.c.h.b16 %v3122
        %v4055 = vunpack.c.l.b16 %v3123
        %v4056 = vunpack.c.h.b16 %v3123
        %v4057 = vunpack.c.l.b16 %v3124
        %v4058 = vunpack.c.h.b16 %v3124
        %v4059 = vunpack.c.l.b16 %v3125
        %v4060 = vunpack.c.h.b16 %v3125
        %v4061 = vunpack.c.l.b16 %v3126
        %v4062 = vunpack.c.h.b16 %v3126
        %v4063 = vunpack.c.l.b16 %v3127
        %v4064 = vunpack.c.h.b16 %v3127
        %v4065 = vunpack.c.l.b16 %v3128
        %v4066 = vunpack.c.h.b16 %v3128
        %v4067 = vunpack.c.l.b16 %v3129
        %v4068 = vunpack.c.h.b16 %v3129
        %v4069 = vunpack.c.l.b16 %v3130
        %v4070 = vunpack.c.h.b16 %v3130
        %v4071 = vunpack.c.l.b16 %v3131
        %v4072 = vunpack.c.h.b16 %v3131
        %v4073 = vunpack.c.l.b16 %v3132
        %v4074 = vunpack.c.h.b16 %v3132
        %v4075 = vunpack.c.l.b16 %v3133
        %v4076 = vunpack.c.h.b16 %v3133
        %v4077 = vunpack.c.l.b16 %v3134
        %v4078 = vunpack.c.h.b16 %v3134
        %v4079 = vunpack.c.l.b16 %v3135
        %v4080 = vunpack.c.h.b16 %v3135
        %v4081 = vunpack.c.l.b16 %v3136
        %v4082 = vunpack.c.h.b16 %v3136
        %v4083 = vunpack.c.l.b16 %v3137
        %v4084 = vunpack.c.h.b16 %v3137
        %v4085 = vunpack.c.l.b16 %v3138
        %v4086 = vunpack.c.h.b16 %v3138
        %v4087 = vunpack.c.l.b16 %v3139
        %v4088 = vunpack.c.h.b16 %v3139
        %v4089 = vunpack.c.l.b16 %v3140
        %v4090 = vunpack.c.h.b16 %v3140
        %v4091 = vunpack.c.l.b16 %v3141
        %v4092 = vunpack.c.h.b16 %v3141
        %v4093 = vunpack.c.l.b16 %v3142
        %v4094 = vunpack.c.h.b16 %v3142
        %v4095 = vunpack.c.l.b16 %v3143
        %v4096 = vunpack.c.h.b16 %v3143
        %v4097 = vunpack.c.l.b16 %v3144
        %v4098 = vunpack.c.h.b16 %v3144
        %v4099 = vunpack.c.l.b16 %v3145
        %v4100 = vunpack.c.h.b16 %v3145
        %v4101 = vunpack.c.l.b16 %v3146
        %v4102 = vunpack.c.h.b16 %v3146
        %v4103 = vunpack.c.l.b16 %v3147
        %v4104 = vunpack.c.h.b16 %v3147
        %v4105 = vunpack.c.l.b16 %v3148
        %v4106 = vunpack.c.h.b16 %v3148
        %v4107 = vunpack.c.l.b16 %v3149
        %v4108 = vunpack.c.h.b16 %v3149
        %v4109 = vunpack.c.l.b16 %v3150
        %v4110 = vunpack.c.h.b16 %v3150
        %v4111 = vunpack.c.l.b16 %v3151
        %v4112 = vunpack.c.h.b16 %v3151
        %v4113 = vunpack.c.l.b16 %v3152
        %v4114 = vunpack.c.h.b16 %v3152
        %v4115 = vunpack.c.l.b16 %v3153
        %v4116 = vunpack.c.h.b16 %v3153
        %v4117 = vunpack.c.l.b16 %v3154
        %v4118 = vunpack.c.h.b16 %v3154
        %v4119 = vunpack.c.l.b16 %v3155
        %v4120 = vunpack.c.h.b16 %v3155
        %v4121 = vunpack.c.l.b16 %v3156
        %v4122 = vunpack.c.h.b16 %v3156
        %v4123 = vunpack.c.l.b16 %v3157
        %v4124 = vunpack.c.h.b16 %v3157
        %v4125 = vunpack.c.l.b16 %v3158
        %v4126 = vunpack.c.h.b16 %v3158
        %v4127 = vunpack.c.l.b16 %v3159
        %v4128 = vunpack.c.h.b16 %v3159
        %v4129 = vunpack.c.l.b16 %v3160
        %v4130 = vunpack.c.h.b16 %v3160
        %v4131 = vunpack.c.l.b16 %v3161
        %v4132 = vunpack.c.h.b16 %v3161
        %v4133 = vunpack.c.l.b16 %v3162
        %v4134 = vunpack.c.h.b16 %v3162
        %v4135 = vunpack.c.l.b16 %v3163
        %v4136 = vunpack.c.h.b16 %v3163
        %v4137 = vunpack.c.l.b16 %v3164
        %v4138 = vunpack.c.h.b16 %v3164
        %v4139 = vunpack.c.l.b16 %v3165
        %v4140 = vunpack.c.h.b16 %v3165
        %v4141 = vunpack.c.l.b16 %v3166
        %v4142 = vunpack.c.h.b16 %v3166
        %v4143 = vunpack.c.l.b16 %v3167
        %v4144 = vunpack.c.h.b16 %v3167
        %v4145 = vunpack.c.l.b16 %v3168
        %v4146 = vunpack.c.h.b16 %v3168
        %v4147 = vunpack.c.l.b16 %v3169
        %v4148 = vunpack.c.h.b16 %v3169
        %v4149 = vunpack.c.l.b16 %v3170
        %v4150 = vunpack.c.h.b16 %v3170
        %v4151 = vunpack.c.l.b16 %v3171
        %v4152 = vunpack.c.h.b16 %v3171
        %v4153 = vunpack.c.l.b16 %v3172
        %v4154 = vunpack.c.h.b16 %v3172
        %v4155 = vunpack.c.l.b16 %v3173
        %v4156 = vunpack.c.h.b16 %v3173
        %v4157 = vunpack.c.l.b16 %v3174
        %v4158 = vunpack.c.h.b16 %v3174
        %v4159 = vunpack.c.l.b16 %v3175
        %v4160 = vunpack.c.h.b16 %v3175
        %v4161 = vunpack.c.l.b16 %v3176
        %v4162 = vunpack.c.h.b16 %v3176
        %v4163 = vunpack.c.l.b16 %v3177
        %v4164 = vunpack.c.h.b16 %v3177
        %v4165 = vunpack.c.l.b16 %v3178
        %v4166 = vunpack.c.h.b16 %v3178
        %v4167 = vunpack.c.l.b16 %v3179
        %v4168 = vunpack.c.h.b16 %v3179
        %v4169 = vunpack.c.l.b16 %v3180
        %v4170 = vunpack.c.h.b16 %v3180
        %v4171 = vunpack.c.l.b16 %v3181
        %v4172 = vunpack.c.h.b16 %v3181
        %v4173 = vunpack.c.l.b16 %v3182
        %v4174 = vunpack.c.h.b16 %v3182
        %v4175 = vunpack.c.l.b16 %v3183
        %v4176 = vunpack.c.h.b16 %v3183
        %v4177 = vunpack.c.l.b16 %v3184
        %v4178 = vunpack.c.h.b16 %v3184
        %v4179 = vunpack.c.l.b16 %v3185
        %v4180 = vunpack.c.h.b16 %v3185
        %v4181 = vunpack.c.l.b16 %v3186
        %v4182 = vunpack.c.h.b16 %v3186
        %v4183 = vunpack.c.l.b16 %v3187
        %v4184 = vunpack.c.h.b16 %v3187
        %v4185 = vunpack.c.l.b16 %v3188
        %v4186 = vunpack.c.h.b16 %v3188
        %v4187 = vunpack.c.l.b16 %v3189
        %v4188 = vunpack.c.h.b16 %v3189
        %v4189 = vunpack.c.l.b16 %v3190
        %v4190 = vunpack.c.h.b16 %v3190
        %v4191 = vunpack.c.l.b16 %v3191
        %v4192 = vunpack.c.h.b16 %v3191
        %v4193 = vunpack.c.l.b16 %v3192
        %v4194 = vunpack.c.h.b16 %v3192
        %v4195 = vunpack.c.l.b16 %v3193
        %v4196 = vunpack.c.h.b16 %v3193
        %v4197 = vunpack.c.l.b16 %v3194
        %v4198 = vunpack.c.h.b16 %v3194
        %v4199 = vunpack.c.l.b16 %v3195
        %v4200 = vunpack.c.h.b16 %v3195
        %v4201 = vunpack.c.l.b16 %v3196
        %v4202 = vunpack.c.h.b16 %v3196
        %v4203 = vunpack.c.l.b16 %v3197
        %v4204 = vunpack.c.h.b16 %v3197
        %v4205 = vunpack.c.l.b16 %v3198
        %v4206 = vunpack.c.h.b16 %v3198
        %v4207 = vunpack.c.l.b16 %v3199
        %v4208 = vunpack.c.h.b16 %v3199
        %v4209 = vunpack.c.l.b16 %v3200
        %v4210 = vunpack.c.h.b16 %v3200
        %v4211 = vunpack.c.l.b16 %v3201
        %v4212 = vunpack.c.h.b16 %v3201
        %v4213 = vunpack.c.l.b16 %v3202
        %v4214 = vunpack.c.h.b16 %v3202
        %v4215 = vunpack.c.l.b16 %v3203
        %v4216 = vunpack.c.h.b16 %v3203
        %v4217 = vunpack.c.l.b16 %v3204
        %v4218 = vunpack.c.h.b16 %v3204
        %v4219 = vunpack.c.l.b16 %v3205
        %v4220 = vunpack.c.h.b16 %v3205
        %v4221 = vunpack.c.l.b16 %v3206
        %v4222 = vunpack.c.h.b16 %v3206
        %v4223 = vunpack.c.l.b16 %v3207
        %v4224 = vunpack.c.h.b16 %v3207
        %v4225 = vunpack.c.l.b16 %v3208
        %v4226 = vunpack.c.h.b16 %v3208
        %v4227 = vunpack.c.l.b16 %v3209
        %v4228 = vunpack.c.h.b16 %v3209
        %v4229 = vunpack.c.l.b16 %v3210
        %v4230 = vunpack.c.h.b16 %v3210
        %v4231 = vunpack.c.l.b16 %v3211
        %v4232 = vunpack.c.h.b16 %v3211
        %v4233 = vunpack.c.l.b16 %v3212
        %v4234 = vunpack.c.h.b16 %v3212
        %v4235 = vunpack.c.l.b16 %v3213
        %v4236 = vunpack.c.h.b16 %v3213
        %v4237 = vunpack.c.l.b16 %v3214
        %v4238 = vunpack.c.h.b16 %v3214
        %v4239 = vunpack.c.l.b16 %v3215
        %v4240 = vunpack.c.h.b16 %v3215
        %v4241 = vunpack.c.l.b16 %v3216
        %v4242 = vunpack.c.h.b16 %v3216
        %v4243 = vunpack.c.l.b16 %v3217
        %v4244 = vunpack.c.h.b16 %v3217
        %v4245 = vunpack.c.l.b16 %v3218
        %v4246 = vunpack.c.h.b16 %v3218
        %v4247 = vunpack.c.l.b16 %v3219
        %v4248 = vunpack.c.h.b16 %v3219
        %v4249 = vunpack.c.l.b16 %v3220
        %v4250 = vunpack.c.h.b16 %v3220
        %v4251 = vunpack.c.l.b16 %v3221
        %v4252 = vunpack.c.h.b16 %v3221
        %v4253 = vunpack.c.l.b16 %v3222
        %v4254 = vunpack.c.h.b16 %v3222
        %v4255 = vunpack.c.l.b16 %v3223
        %v4256 = vunpack.c.h.b16 %v3223
        %v4257 = vunpack.c.l.b16 %v3224
        %v4258 = vunpack.c.h.b16 %v3224
        %v4259 = vunpack.c.l.b16 %v3225
        %v4260 = vunpack.c.h.b16 %v3225
        %v4261 = vunpack.c.l.b16 %v3226
        %v4262 = vunpack.c.h.b16 %v3226
        %v4263 = vunpack.c.l.b16 %v3227
        %v4264 = vunpack.c.h.b16 %v3227
        %v4265 = vunpack.c.l.b16 %v3228
        %v4266 = vunpack.c.h.b16 %v3228
        %v4267 = vunpack.c.l.b16 %v3229
        %v4268 = vunpack.c.h.b16 %v3229
        %v4269 = vunpack.c.l.b16 %v3230
        %v4270 = vunpack.c.h.b16 %v3230
        %v4271 = vunpack.c.l.b16 %v3231
        %v4272 = vunpack.c.h.b16 %v3231
        %v4273 = vunpack.c.l.b16 %v3232
        %v4274 = vunpack.c.h.b16 %v3232
        %v4275 = vunpack.c.l.b16 %v3233
        %v4276 = vunpack.c.h.b16 %v3233
        %v4277 = vunpack.c.l.b16 %v3234
        %v4278 = vunpack.c.h.b16 %v3234
        %v4279 = vunpack.c.l.b16 %v3235
        %v4280 = vunpack.c.h.b16 %v3235
        %v4281 = vunpack.c.l.b16 %v3236
        %v4282 = vunpack.c.h.b16 %v3236
        %v4283 = vunpack.c.l.b16 %v3237
        %v4284 = vunpack.c.h.b16 %v3237
        %v4285 = vunpack.c.l.b16 %v3238
        %v4286 = vunpack.c.h.b16 %v3238
        %v4287 = vunpack.c.l.b16 %v3239
        %v4288 = vunpack.c.h.b16 %v3239
        %v4289 = vunpack.c.l.b16 %v3240
        %v4290 = vunpack.c.h.b16 %v3240
        %v4291 = vunpack.c.l.b16 %v3241
        %v4292 = vunpack.c.h.b16 %v3241
        %v4293 = vunpack.c.l.b16 %v3242
        %v4294 = vunpack.c.h.b16 %v3242
        %v4295 = vunpack.c.l.b16 %v3243
        %v4296 = vunpack.c.h.b16 %v3243
        %v4297 = vunpack.c.l.b16 %v3244
        %v4298 = vunpack.c.h.b16 %v3244
        %v4299 = vunpack.c.l.b16 %v3245
        %v4300 = vunpack.c.h.b16 %v3245
        %v4301 = vunpack.c.l.b16 %v3246
        %v4302 = vunpack.c.h.b16 %v3246
        %v4303 = vunpack.c.l.b16 %v3247
        %v4304 = vunpack.c.h.b16 %v3247
        %v4305 = vunpack.c.l.b16 %v3248
        %v4306 = vunpack.c.h.b16 %v3248
        %v4307 = vunpack.c.l.b16 %v3249
        %v4308 = vunpack.c.h.b16 %v3249
        %v4309 = vunpack.c.l.b16 %v3250
        %v4310 = vunpack.c.h.b16 %v3250
        %v4311 = vunpack.c.l.b16 %v3251
        %v4312 = vunpack.c.h.b16 %v3251
        %v4313 = vunpack.c.l.b16 %v3252
        %v4314 = vunpack.c.h.b16 %v3252
        %v4315 = vunpack.c.l.b16 %v3253
        %v4316 = vunpack.c.h.b16 %v3253
        %v4317 = vunpack.c.l.b16 %v3254
        %v4318 = vunpack.c.h.b16 %v3254
        %v4319 = vunpack.c.l.b16 %v3255
        %v4320 = vunpack.c.h.b16 %v3255
        %v4321 = vunpack.c.l.b16 %v3256
        %v4322 = vunpack.c.h.b16 %v3256
        %v4323 = vunpack.c.l.b16 %v3257
        %v4324 = vunpack.c.h.b16 %v3257
        %v4325 = vunpack.c.l.b16 %v3258
        %v4326 = vunpack.c.h.b16 %v3258
        %v4327 = vunpack.c.l.b16 %v3259
        %v4328 = vunpack.c.h.b16 %v3259
        %v4329 = vunpack.c.l.b16 %v3260
        %v4330 = vunpack.c.h.b16 %v3260
        %v4331 = vunpack.c.l.b16 %v3261
        %v4332 = vunpack.c.h.b16 %v3261
        %v4333 = vunpack.c.l.b16 %v3262
        %v4334 = vunpack.c.h.b16 %v3262
        %v4335 = vunpack.c.l.b16 %v3263
        %v4336 = vunpack.c.h.b16 %v3263
        %v4337 = vunpack.c.l.b16 %v3264
        %v4338 = vunpack.c.h.b16 %v3264
        %v4339 = vunpack.c.l.b16 %v3265
        %v4340 = vunpack.c.h.b16 %v3265
        %v4341 = vunpack.c.l.b16 %v3266
        %v4342 = vunpack.c.h.b16 %v3266
        %v4343 = vunpack.c.l.b16 %v3267
        %v4344 = vunpack.c.h.b16 %v3267
        %v4345 = vunpack.c.l.b16 %v3268
        %v4346 = vunpack.c.h.b16 %v3268
        %v4347 = vunpack.c.l.b16 %v3269
        %v4348 = vunpack.c.h.b16 %v3269
        %v4349 = vunpack.c.l.b16 %v3270
        %v4350 = vunpack.c.h.b16 %v3270
        %v4351 = vunpack.c.l.b16 %v3271
        %v4352 = vunpack.c.h.b16 %v3271
        %v4353 = vunpack.c.l.b16 %v3272
        %v4354 = vunpack.c.h.b16 %v3272
        %v4355 = vunpack.c.l.b16 %v3273
        %v4356 = vunpack.c.h.b16 %v3273
        %v4357 = vunpack.c.l.b16 %v3274
        %v4358 = vunpack.c.h.b16 %v3274
        %v4359 = vunpack.c.l.b16 %v3275
        %v4360 = vunpack.c.h.b16 %v3275
        %v4361 = vunpack.c.l.b16 %v3276
        %v4362 = vunpack.c.h.b16 %v3276
        %v4363 = vunpack.c.l.b16 %v3277
        %v4364 = vunpack.c.h.b16 %v3277
        %v4365 = vunpack.c.l.b16 %v3278
        %v4366 = vunpack.c.h.b16 %v3278
        %v4367 = vunpack.c.l.b16 %v3279
        %v4368 = vunpack.c.h.b16 %v3279
        %v4369 = vunpack.c.l.b16 %v3280
        %v4370 = vunpack.c.h.b16 %v3280
        %v4371 = vunpack.c.l.b16 %v3281
        %v4372 = vunpack.c.h.b16 %v3281
        %v4373 = vunpack.c.l.b16 %v3282
        %v4374 = vunpack.c.h.b16 %v3282
        %v4375 = vunpack.c.l.b16 %v3283
        %v4376 = vunpack.c.h.b16 %v3283
        %v4377 = vunpack.c.l.b16 %v3284
        %v4378 = vunpack.c.h.b16 %v3284
        %v4379 = vunpack.c.l.b16 %v3285
        %v4380 = vunpack.c.h.b16 %v3285
        %v4381 = vunpack.c.l.b16 %v3286
        %v4382 = vunpack.c.h.b16 %v3286
        %v4383 = vunpack.c.l.b16 %v3287
        %v4384 = vunpack.c.h.b16 %v3287
        %v4385 = vunpack.c.l.b16 %v3288
        %v4386 = vunpack.c.h.b16 %v3288
        %v4387 = vunpack.c.l.b16 %v3289
        %v4388 = vunpack.c.h.b16 %v3289
        %v4389 = vunpack.c.l.b16 %v3290
        %v4390 = vunpack.c.h.b16 %v3290
        %v4391 = vunpack.c.l.b16 %v3291
        %v4392 = vunpack.c.h.b16 %v3291
        %v4393 = vunpack.c.l.b16 %v3292
        %v4394 = vunpack.c.h.b16 %v3292
        %v4395 = vunpack.c.l.b16 %v3293
        %v4396 = vunpack.c.h.b16 %v3293
        %v4397 = vunpack.c.l.b16 %v3294
        %v4398 = vunpack.c.h.b16 %v3294
        %v4399 = vunpack.c.l.b16 %v3295
        %v4400 = vunpack.c.h.b16 %v3295
        %v4401 = vunpack.c.l.b16 %v3296
        %v4402 = vunpack.c.h.b16 %v3296
        %v4403 = vunpack.c.l.b16 %v3297
        %v4404 = vunpack.c.h.b16 %v3297
        %v4405 = vunpack.c.l.b16 %v3298
        %v4406 = vunpack.c.h.b16 %v3298
        %v4407 = vunpack.c.l.b16 %v3299
        %v4408 = vunpack.c.h.b16 %v3299
        %v4409 = vunpack.c.l.b16 %v3300
        %v4410 = vunpack.c.h.b16 %v3300
        %v4411 = vunpack.c.l.b16 %v3301
        %v4412 = vunpack.c.h.b16 %v3301
        %v4413 = vunpack.c.l.b16 %v3302
        %v4414 = vunpack.c.h.b16 %v3302
        %v4415 = vunpack.c.l.b16 %v3303
        %v4416 = vunpack.c.h.b16 %v3303
        %v4417 = vunpack.c.l.b16 %v3304
        %v4418 = vunpack.c.h.b16 %v3304
        %v4419 = vunpack.c.l.b16 %v3305
        %v4420 = vunpack.c.h.b16 %v3305
        %v4421 = vunpack.c.l.b16 %v3306
        %v4422 = vunpack.c.h.b16 %v3306
        %v4423 = vunpack.c.l.b16 %v3307
        %v4424 = vunpack.c.h.b16 %v3307
        %v4425 = vunpack.c.l.b16 %v3308
        %v4426 = vunpack.c.h.b16 %v3308
        %v4427 = vunpack.c.l.b16 %v3309
        %v4428 = vunpack.c.h.b16 %v3309
        %v4429 = vunpack.c.l.b16 %v3310
        %v4430 = vunpack.c.h.b16 %v3310
        %v4431 = vunpack.c.l.b16 %v3311
        %v4432 = vunpack.c.h.b16 %v3311
        %v4433 = vunpack.c.l.b16 %v3312
        %v4434 = vunpack.c.h.b16 %v3312
        %v4435 = vunpack.c.l.b16 %v3313
        %v4436 = vunpack.c.h.b16 %v3313
        %v4437 = vunpack.c.l.b16 %v3314
        %v4438 = vunpack.c.h.b16 %v3314
        %v4439 = vunpack.c.l.b16 %v3315
        %v4440 = vunpack.c.h.b16 %v3315
        %v4441 = vunpack.c.l.b16 %v3316
        %v4442 = vunpack.c.h.b16 %v3316
        %v4443 = vunpack.c.l.b16 %v3317
        %v4444 = vunpack.c.h.b16 %v3317
        %v4445 = vunpack.c.l.b16 %v3318
        %v4446 = vunpack.c.h.b16 %v3318
        %v4447 = vunpack.c.l.b16 %v3319
        %v4448 = vunpack.c.h.b16 %v3319
        %v4449 = vunpack.c.l.b16 %v3320
        %v4450 = vunpack.c.h.b16 %v3320
        %v4451 = vunpack.c.l.b16 %v3321
        %v4452 = vunpack.c.h.b16 %v3321
        %v4453 = vunpack.c.l.b16 %v3322
        %v4454 = vunpack.c.h.b16 %v3322
        %v4455 = vunpack.c.l.b16 %v3323
        %v4456 = vunpack.c.h.b16 %v3323
        %v4457 = vunpack.c.l.b16 %v3324
        %v4458 = vunpack.c.h.b16 %v3324
        %v4459 = vunpack.c.l.b16 %v3325
        %v4460 = vunpack.c.h.b16 %v3325
        %v4461 = vunpack.c.l.b16 %v3326
        %v4462 = vunpack.c.h.b16 %v3326
        %v4463 = vunpack.c.l.b16 %v3327
        %v4464 = vunpack.c.h.b16 %v3327
        %v4465 = vunpack.c.l.b16 %v3328
        %v4466 = vunpack.c.h.b16 %v3328
        %v4467 = vunpack.c.l.b16 %v3329
        %v4468 = vunpack.c.h.b16 %v3329
        %v4469 = vunpack.c.l.b16 %v3330
        %v4470 = vunpack.c.h.b16 %v3330
        %v4471 = vunpack.c.l.b16 %v3331
        %v4472 = vunpack.c.h.b16 %v3331
        %v4473 = vunpack.c.l.b16 %v3332
        %v4474 = vunpack.c.h.b16 %v3332
        %v4475 = vunpack.c.l.b16 %v3333
        %v4476 = vunpack.c.h.b16 %v3333
        %v4477 = vunpack.c.l.b16 %v3334
        %v4478 = vunpack.c.h.b16 %v3334
        %v4479 = vunpack.c.l.b16 %v3335
        %v4480 = vunpack.c.h.b16 %v3335
        %v4481 = vunpack.c.l.b16 %v3336
        %v4482 = vunpack.c.h.b16 %v3336
        %v4483 = vunpack.c.l.b16 %v3337
        %v4484 = vunpack.c.h.b16 %v3337
        %v4485 = vunpack.c.l.b16 %v3338
        %v4486 = vunpack.c.h.b16 %v3338
        %v4487 = vunpack.c.l.b16 %v3339
        %v4488 = vunpack.c.h.b16 %v3339
        %v4489 = vunpack.c.l.b16 %v3340
        %v4490 = vunpack.c.h.b16 %v3340
        %v4491 = vunpack.c.l.b16 %v3341
        %v4492 = vunpack.c.h.b16 %v3341
        %v4493 = vunpack.c.l.b16 %v3342
        %v4494 = vunpack.c.h.b16 %v3342
        %v4495 = vunpack.c.l.b16 %v3343
        %v4496 = vunpack.c.h.b16 %v3343
        %v4497 = vunpack.c.l.b16 %v3344
        %v4498 = vunpack.c.h.b16 %v3344
        %v4499 = vunpack.c.l.b16 %v3345
        %v4500 = vunpack.c.h.b16 %v3345
        %v4501 = vunpack.c.l.b16 %v3346
        %v4502 = vunpack.c.h.b16 %v3346
        %v4503 = vunpack.c.l.b16 %v3347
        %v4504 = vunpack.c.h.b16 %v3347
        %v4505 = vunpack.c.l.b16 %v3348
        %v4506 = vunpack.c.h.b16 %v3348
        %v4507 = vunpack.c.l.b16 %v3349
        %v4508 = vunpack.c.h.b16 %v3349
        %v4509 = vunpack.c.l.b16 %v3350
        %v4510 = vunpack.c.h.b16 %v3350
        %v4511 = vunpack.c.l.b16 %v3351
        %v4512 = vunpack.c.h.b16 %v3351
        %v4513 = vunpack.c.l.b16 %v3352
        %v4514 = vunpack.c.h.b16 %v3352
        %v4515 = vunpack.c.l.b16 %v3353
        %v4516 = vunpack.c.h.b16 %v3353
        %v4517 = vunpack.c.l.b16 %v3354
        %v4518 = vunpack.c.h.b16 %v3354
        %v4519 = vunpack.c.l.b16 %v3355
        %v4520 = vunpack.c.h.b16 %v3355
        %v4521 = vunpack.c.l.b16 %v3356
        %v4522 = vunpack.c.h.b16 %v3356
        %v4523 = vunpack.c.l.b16 %v3357
        %v4524 = vunpack.c.h.b16 %v3357
        %v4525 = vunpack.c.l.b16 %v3358
        %v4526 = vunpack.c.h.b16 %v3358
        %v4527 = vunpack.c.l.b16 %v3359
        %v4528 = vunpack.c.h.b16 %v3359
        %v4529 = vunpack.c.l.b16 %v3360
        %v4530 = vunpack.c.h.b16 %v3360
        %v4531 = vunpack.c.l.b16 %v3361
        %v4532 = vunpack.c.h.b16 %v3361
        %v4533 = vunpack.c.l.b16 %v3362
        %v4534 = vunpack.c.h.b16 %v3362
        %v4535 = vunpack.c.l.b16 %v3363
        %v4536 = vunpack.c.h.b16 %v3363
        %v4537 = vunpack.c.l.b16 %v3364
        %v4538 = vunpack.c.h.b16 %v3364
        %v4539 = vunpack.c.l.b16 %v3365
        %v4540 = vunpack.c.h.b16 %v3365
        %v4541 = vunpack.c.l.b16 %v3366
        %v4542 = vunpack.c.h.b16 %v3366
        %v4543 = vunpack.c.l.b16 %v3367
        %v4544 = vunpack.c.h.b16 %v3367
        %v4545 = vunpack.c.l.b16 %v3368
        %v4546 = vunpack.c.h.b16 %v3368
        %v4547 = vunpack.c.l.b16 %v3369
        %v4548 = vunpack.c.h.b16 %v3369
        %v4549 = vunpack.c.l.b16 %v3370
        %v4550 = vunpack.c.h.b16 %v3370
        %v4551 = vunpack.c.l.b16 %v3371
        %v4552 = vunpack.c.h.b16 %v3371
        %v4553 = vunpack.c.l.b16 %v3372
        %v4554 = vunpack.c.h.b16 %v3372
        %v4555 = vunpack.c.l.b16 %v3373
        %v4556 = vunpack.c.h.b16 %v3373
        %v4557 = vunpack.c.l.b16 %v3374
        %v4558 = vunpack.c.h.b16 %v3374
        %v4559 = vunpack.c.l.b16 %v3375
        %v4560 = vunpack.c.h.b16 %v3375
        %v4561 = vunpack.c.l.b16 %v3376
        %v4562 = vunpack.c.h.b16 %v3376
        %v4563 = vunpack.c.l.b16 %v3377
        %v4564 = vunpack.c.h.b16 %v3377
        %v4565 = vunpack.c.l.b16 %v3378
        %v4566 = vunpack.c.h.b16 %v3378
        %v4567 = vunpack.c.l.b16 %v3379
        %v4568 = vunpack.c.h.b16 %v3379
        %v4569 = vunpack.c.l.b16 %v3380
        %v4570 = vunpack.c.h.b16 %v3380
        %v4571 = vunpack.c.l.b16 %v3381
        %v4572 = vunpack.c.h.b16 %v3381
        %v4573 = vunpack.c.l.b16 %v3382
        %v4574 = vunpack.c.h.b16 %v3382
        %v4575 = vunpack.c.l.b16 %v3383
        %v4576 = vunpack.c.h.b16 %v3383
        %v4577 = vunpack.c.l.b16 %v3384
        %v4578 = vunpack.c.h.b16 %v3384
        %v4579 = vunpack.c.l.b16 %v3385
        %v4580 = vunpack.c.h.b16 %v3385
        %v4581 = vunpack.c.l.b16 %v3386
        %v4582 = vunpack.c.h.b16 %v3386
        %v4583 = vunpack.c.l.b16 %v3387
        %v4584 = vunpack.c.h.b16 %v3387
        %v4585 = vunpack.c.l.b16 %v3388
        %v4586 = vunpack.c.h.b16 %v3388
        %v4587 = vunpack.c.l.b16 %v3389
        %v4588 = vunpack.c.h.b16 %v3389
        %v4589 = vunpack.c.l.b16 %v3390
        %v4590 = vunpack.c.h.b16 %v3390
        %v4591 = vunpack.c.l.b16 %v3391
        %v4592 = vunpack.c.h.b16 %v3391
        %v4593 = vunpack.c.l.b16 %v3392
        %v4594 = vunpack.c.h.b16 %v3392
        %v4595 = vunpack.c.l.b16 %v3393
        %v4596 = vunpack.c.h.b16 %v3393
        %v4597 = vunpack.c.l.b16 %v3394
        %v4598 = vunpack.c.h.b16 %v3394
        %v4599 = vunpack.c.l.b16 %v3395
        %v4600 = vunpack.c.h.b16 %v3395
        %v4601 = vunpack.c.l.b16 %v3396
        %v4602 = vunpack.c.h.b16 %v3396
        %v4603 = vunpack.c.l.b16 %v3397
        %v4604 = vunpack.c.h.b16 %v3397
        %v4605 = vunpack.c.l.b16 %v3398
        %v4606 = vunpack.c.h.b16 %v3398
        %v4607 = vunpack.c.l.b16 %v3399
        %v4608 = vunpack.c.h.b16 %v3399
        %v4609 = vunpack.c.l.b16 %v3400
        %v4610 = vunpack.c.h.b16 %v3400
        %v4611 = vunpack.c.l.b16 %v3401
        %v4612 = vunpack.c.h.b16 %v3401
        %v4613 = vunpack.c.l.b16 %v3402
        %v4614 = vunpack.c.h.b16 %v3402
        %v4615 = vunpack.c.l.b16 %v3403
        %v4616 = vunpack.c.h.b16 %v3403
        %v4617 = vunpack.c.l.b16 %v3404
        %v4618 = vunpack.c.h.b16 %v3404
        %v4619 = vunpack.c.l.b16 %v3405
        %v4620 = vunpack.c.h.b16 %v3405
        %v4621 = vunpack.c.l.b16 %v3406
        %v4622 = vunpack.c.h.b16 %v3406
        %v4623 = vunpack.c.l.b16 %v3407
        %v4624 = vunpack.c.h.b16 %v3407
        %v4625 = vunpack.c.l.b16 %v3408
        %v4626 = vunpack.c.h.b16 %v3408
        %v4627 = vunpack.c.l.b16 %v3409
        %v4628 = vunpack.c.h.b16 %v3409
        %v4629 = vunpack.c.l.b16 %v3410
        %v4630 = vunpack.c.h.b16 %v3410
        %v4631 = vunpack.c.l.b16 %v3411
        %v4632 = vunpack.c.h.b16 %v3411
        %v4633 = vunpack.c.l.b16 %v3412
        %v4634 = vunpack.c.h.b16 %v3412
        %v4635 = vunpack.c.l.b16 %v3413
        %v4636 = vunpack.c.h.b16 %v3413
        %v4637 = vunpack.c.l.b16 %v3414
        %v4638 = vunpack.c.h.b16 %v3414
        %v4639 = vunpack.c.l.b16 %v3415
        %v4640 = vunpack.c.h.b16 %v3415
        %v4641 = vunpack.c.l.b16 %v3416
        %v4642 = vunpack.c.h.b16 %v3416
        %v4643 = vunpack.c.l.b16 %v3417
        %v4644 = vunpack.c.h.b16 %v3417
        %v4645 = vunpack.c.l.b16 %v3418
        %v4646 = vunpack.c.h.b16 %v3418
        %v4647 = vunpack.c.l.b16 %v3419
        %v4648 = vunpack.c.h.b16 %v3419
        %v4649 = vunpack.c.l.b16 %v3420
        %v4650 = vunpack.c.h.b16 %v3420
        %v4651 = vunpack.c.l.b16 %v3421
        %v4652 = vunpack.c.h.b16 %v3421
        %v4653 = vunpack.c.l.b16 %v3422
        %v4654 = vunpack.c.h.b16 %v3422
        %v4655 = vunpack.c.l.b16 %v3423
        %v4656 = vunpack.c.h.b16 %v3423
        %v4657 = vunpack.c.l.b16 %v3424
        %v4658 = vunpack.c.h.b16 %v3424
        %v4659 = vunpack.c.l.b16 %v3425
        %v4660 = vunpack.c.h.b16 %v3425
        %v4661 = vunpack.c.l.b16 %v3426
        %v4662 = vunpack.c.h.b16 %v3426
        %v4663 = vunpack.c.l.b16 %v3427
        %v4664 = vunpack.c.h.b16 %v3427
        %v4665 = vunpack.c.l.b16 %v3428
        %v4666 = vunpack.c.h.b16 %v3428
        %v4667 = vunpack.c.l.b16 %v3429
        %v4668 = vunpack.c.h.b16 %v3429
        %v4669 = vunpack.c.l.b16 %v3430
        %v4670 = vunpack.c.h.b16 %v3430
        %v4671 = vunpack.c.l.b16 %v3431
        %v4672 = vunpack.c.h.b16 %v3431
        %v4673 = vunpack.c.l.b16 %v3432
        %v4674 = vunpack.c.h.b16 %v3432
        %v4675 = vunpack.c.l.b16 %v3433
        %v4676 = vunpack.c.h.b16 %v3433
        %v4677 = vunpack.c.l.b16 %v3434
        %v4678 = vunpack.c.h.b16 %v3434
        %v4679 = vunpack.c.l.b16 %v3435
        %v4680 = vunpack.c.h.b16 %v3435
        %v4681 = vunpack.c.l.b16 %v3436
        %v4682 = vunpack.c.h.b16 %v3436
        %v4683 = vunpack.c.l.b16 %v3437
        %v4684 = vunpack.c.h.b16 %v3437
        %v4685 = vunpack.c.l.b16 %v3438
        %v4686 = vunpack.c.h.b16 %v3438
        %v4687 = vunpack.c.l.b16 %v3439
        %v4688 = vunpack.c.h.b16 %v3439
        %v4689 = vunpack.c.l.b16 %v3440
        %v4690 = vunpack.c.h.b16 %v3440
        %v4691 = vunpack.c.l.b16 %v3441
        %v4692 = vunpack.c.h.b16 %v3441
        %v4693 = vunpack.c.l.b16 %v3442
        %v4694 = vunpack.c.h.b16 %v3442
        %v4695 = vunpack.c.l.b16 %v3443
        %v4696 = vunpack.c.h.b16 %v3443
        %v4697 = vunpack.c.l.b16 %v3444
        %v4698 = vunpack.c.h.b16 %v3444
        %v4699 = vunpack.c.l.b16 %v3445
        %v4700 = vunpack.c.h.b16 %v3445
        %v4701 = vunpack.c.l.b16 %v3446
        %v4702 = vunpack.c.h.b16 %v3446
        %v4703 = vunpack.c.l.b16 %v3447
        %v4704 = vunpack.c.h.b16 %v3447
        %v4705 = vunpack.c.l.b16 %v3448
        %v4706 = vunpack.c.h.b16 %v3448
        %v4707 = vunpack.c.l.b16 %v3449
        %v4708 = vunpack.c.h.b16 %v3449
        %v4709 = vunpack.c.l.b16 %v3450
        %v4710 = vunpack.c.h.b16 %v3450
        %v4711 = vunpack.c.l.b16 %v3451
        %v4712 = vunpack.c.h.b16 %v3451
        %v4713 = vunpack.c.l.b16 %v3452
        %v4714 = vunpack.c.h.b16 %v3452
        %v4715 = vunpack.c.l.b16 %v3453
        %v4716 = vunpack.c.h.b16 %v3453
        %v4717 = vunpack.c.l.b16 %v3454
        %v4718 = vunpack.c.h.b16 %v3454
        %v4719 = vunpack.c.l.b16 %v3455
        %v4720 = vunpack.c.h.b16 %v3455
        %v4721 = vunpack.c.l.b16 %v3456
        %v4722 = vunpack.c.h.b16 %v3456
        %v4723 = vunpack.c.l.b16 %v3457
        %v4724 = vunpack.c.h.b16 %v3457
        %v4725 = vunpack.c.l.b16 %v3458
        %v4726 = vunpack.c.h.b16 %v3458
        %v4727 = vunpack.c.l.b16 %v3459
        %v4728 = vunpack.c.h.b16 %v3459
        %v4729 = vunpack.c.l.b16 %v3460
        %v4730 = vunpack.c.h.b16 %v3460
        %v4731 = vunpack.c.l.b16 %v3461
        %v4732 = vunpack.c.h.b16 %v3461
        %v4733 = vunpack.c.l.b16 %v3462
        %v4734 = vunpack.c.h.b16 %v3462
        %v4735 = vunpack.c.l.b16 %v3463
        %v4736 = vunpack.c.h.b16 %v3463
        %v4737 = vunpack.c.l.b16 %v3464
        %v4738 = vunpack.c.h.b16 %v3464
        %v4739 = vunpack.c.l.b16 %v3465
        %v4740 = vunpack.c.h.b16 %v3465
        %v4741 = vunpack.c.l.b16 %v3466
        %v4742 = vunpack.c.h.b16 %v3466
        %v4743 = vunpack.c.l.b16 %v3467
        %v4744 = vunpack.c.h.b16 %v3467
        %v4745 = vunpack.c.l.b16 %v3468
        %v4746 = vunpack.c.h.b16 %v3468
        %v4747 = vpack.c.b16 %v3981, %v3979
        %v4748 = vpack.c.b16 %v3982, %v3980
        %v4749 = vpack.c.b16 %v3985, %v3983
        %v4750 = vpack.c.b16 %v3986, %v3984
        %v4751 = vpack.c.b16 %v3989, %v3987
        %v4752 = vpack.c.b16 %v3990, %v3988
        %v4753 = vpack.c.b16 %v3993, %v3991
        %v4754 = vpack.c.b16 %v3994, %v3992
        %v4755 = vpack.c.b16 %v3997, %v3995
        %v4756 = vpack.c.b16 %v3998, %v3996
        %v4757 = vpack.c.b16 %v4001, %v3999
        %v4758 = vpack.c.b16 %v4002, %v4000
        %v4759 = vpack.c.b16 %v4005, %v4003
        %v4760 = vpack.c.b16 %v4006, %v4004
        %v4761 = vpack.c.b16 %v4009, %v4007
        %v4762 = vpack.c.b16 %v4010, %v4008
        %v4763 = vpack.c.b16 %v4013, %v4011
        %v4764 = vpack.c.b16 %v4014, %v4012
        %v4765 = vpack.c.b16 %v4017, %v4015
        %v4766 = vpack.c.b16 %v4018, %v4016
        %v4767 = vpack.c.b16 %v4021, %v4019
        %v4768 = vpack.c.b16 %v4022, %v4020
        %v4769 = vpack.c.b16 %v4025, %v4023
        %v4770 = vpack.c.b16 %v4026, %v4024
        %v4771 = vpack.c.b16 %v4029, %v4027
        %v4772 = vpack.c.b16 %v4030, %v4028
        %v4773 = vpack.c.b16 %v4033, %v4031
        %v4774 = vpack.c.b16 %v4034, %v4032
        %v4775 = vpack.c.b16 %v4037, %v4035
        %v4776 = vpack.c.b16 %v4038, %v4036
        %v4777 = vpack.c.b16 %v4041, %v4039
        %v4778 = vpack.c.b16 %v4042, %v4040
        %v4779 = vpack.c.b16 %v4045, %v4043
        %v4780 = vpack.c.b16 %v4046, %v4044
        %v4781 = vpack.c.b16 %v4049, %v4047
        %v4782 = vpack.c.b16 %v4050, %v4048
        %v4783 = vpack.c.b16 %v4053, %v4051
        %v4784 = vpack.c.b16 %v4054, %v4052
        %v4785 = vpack.c.b16 %v4057, %v4055
        %v4786 = vpack.c.b16 %v4058, %v4056
        %v4787 = vpack.c.b16 %v4061, %v4059
        %v4788 = vpack.c.b16 %v4062, %v4060
        %v4789 = vpack.c.b16 %v4065, %v4063
        %v4790 = vpack.c.b16 %v4066, %v4064
        %v4791 = vpack.c.b16 %v4069, %v4067
        %v4792 = vpack.c.b16 %v4070, %v4068
        %v4793 = vpack.c.b16 %v4073, %v4071
        %v4794 = vpack.c.b16 %v4074, %v4072
        %v4795 = vpack.c.b16 %v4077, %v4075
        %v4796 = vpack.c.b16 %v4078, %v4076
        %v4797 = vpack.c.b16 %v4081, %v4079
        %v4798 = vpack.c.b16 %v4082, %v4080
        %v4799 = vpack.c.b16 %v4085, %v4083
        %v4800 = vpack.c.b16 %v4086, %v4084
        %v4801 = vpack.c.b16 %v4089, %v4087
        %v4802 = vpack.c.b16 %v4090, %v4088
        %v4803 = vpack.c.b16 %v4093, %v4091
        %v4804 = vpack.c.b16 %v4094, %v4092
        %v4805 = vpack.c.b16 %v4097, %v4095
        %v4806 = vpack.c.b16 %v4098, %v4096
        %v4807 = vpack.c.b16 %v4101, %v4099
        %v4808 = vpack.c.b16 %v4102, %v4100
        %v4809 = vpack.c.b16 %v4105, %v4103
        %v4810 = vpack.c.b16 %v4106, %v4104
        %v4811 = vpack.c.b16 %v4109, %v4107
        %v4812 = vpack.c.b16 %v4110, %v4108
        %v4813 = vpack.c.b16 %v4113, %v4111
        %v4814 = vpack.c.b16 %v4114, %v4112
        %v4815 = vpack.c.b16 %v4117, %v4115
        %v4816 = vpack.c.b16 %v4118, %v4116
        %v4817 = vpack.c.b16 %v4121, %v4119
        %v4818 = vpack.c.b16 %v4122, %v4120
        %v4819 = vpack.c.b16 %v4125, %v4123
        %v4820 = vpack.c.b16 %v4126, %v4124
        %v4821 = vpack.c.b16 %v4129, %v4127
        %v4822 = vpack.c.b16 %v4130, %v4128
        %v4823 = vpack.c.b16 %v4133, %v4131
        %v4824 = vpack.c.b16 %v4134, %v4132
        %v4825 = vpack.c.b16 %v4137, %v4135
        %v4826 = vpack.c.b16 %v4138, %v4136
        %v4827 = vpack.c.b16 %v4141, %v4139
        %v4828 = vpack.c.b16 %v4142, %v4140
        %v4829 = vpack.c.b16 %v4145, %v4143
        %v4830 = vpack.c.b16 %v4146, %v4144
        %v4831 = vpack.c.b16 %v4149, %v4147
        %v4832 = vpack.c.b16 %v4150, %v4148
        %v4833 = vpack.c.b16 %v4153, %v4151
        %v4834 = vpack.c.b16 %v4154, %v4152
        %v4835 = vpack.c.b16 %v4157, %v4155
        %v4836 = vpack.c.b16 %v4158, %v4156
        %v4837 = vpack.c.b16 %v4161, %v4159
        %v4838 = vpack.c.b16 %v4162, %v4160
        %v4839 = vpack.c.b16 %v4165, %v4163
        %v4840 = vpack.c.b16 %v4166, %v4164
        %v4841 = vpack.c.b16 %v4169, %v4167
        %v4842 = vpack.c.b16 %v4170, %v4168
        %v4843 = vpack.c.b16 %v4173, %v4171
        %v4844 = vpack.c.b16 %v4174, %v4172
        %v4845 = vpack.c.b16 %v4177, %v4175
        %v4846 = vpack.c.b16 %v4178, %v4176
        %v4847 = vpack.c.b16 %v4181, %v4179
        %v4848 = vpack.c.b16 %v4182, %v4180
        %v4849 = vpack.c.b16 %v4185, %v4183
        %v4850 = vpack.c.b16 %v4186, %v4184
        %v4851 = vpack.c.b16 %v4189, %v4187
        %v4852 = vpack.c.b16 %v4190, %v4188
        %v4853 = vpack.c.b16 %v4193, %v4191
        %v4854 = vpack.c.b16 %v4194, %v4192
        %v4855 = vpack.c.b16 %v4197, %v4195
        %v4856 = vpack.c.b16 %v4198, %v4196
        %v4857 = vpack.c.b16 %v4201, %v4199
        %v4858 = vpack.c.b16 %v4202, %v4200
        %v4859 = vpack.c.b16 %v4205, %v4203
        %v4860 = vpack.c.b16 %v4206, %v4204
        %v4861 = vpack.c.b16 %v4209, %v4207
        %v4862 = vpack.c.b16 %v4210, %v4208
        %v4863 = vpack.c.b16 %v4213, %v4211
        %v4864 = vpack.c.b16 %v4214, %v4212
        %v4865 = vpack.c.b16 %v4217, %v4215
        %v4866 = vpack.c.b16 %v4218, %v4216
        %v4867 = vpack.c.b16 %v4221, %v4219
        %v4868 = vpack.c.b16 %v4222, %v4220
        %v4869 = vpack.c.b16 %v4225, %v4223
        %v4870 = vpack.c.b16 %v4226, %v4224
        %v4871 = vpack.c.b16 %v4229, %v4227
        %v4872 = vpack.c.b16 %v4230, %v4228
        %v4873 = vpack.c.b16 %v4233, %v4231
        %v4874 = vpack.c.b16 %v4234, %v4232
        %v4875 = vpack.c.b16 %v4237, %v4235
        %v4876 = vpack.c.b16 %v4238, %v4236
        %v4877 = vpack.c.b16 %v4241, %v4239
        %v4878 = vpack.c.b16 %v4242, %v4240
        %v4879 = vpack.c.b16 %v4245, %v4243
        %v4880 = vpack.c.b16 %v4246, %v4244
        %v4881 = vpack.c.b16 %v4249, %v4247
        %v4882 = vpack.c.b16 %v4250, %v4248
        %v4883 = vpack.c.b16 %v4253, %v4251
        %v4884 = vpack.c.b16 %v4254, %v4252
        %v4885 = vpack.c.b16 %v4257, %v4255
        %v4886 = vpack.c.b16 %v4258, %v4256
        %v4887 = vpack.c.b16 %v4261, %v4259
        %v4888 = vpack.c.b16 %v4262, %v4260
        %v4889 = vpack.c.b16 %v4265, %v4263
        %v4890 = vpack.c.b16 %v4266, %v4264
        %v4891 = vpack.c.b16 %v4269, %v4267
        %v4892 = vpack.c.b16 %v4270, %v4268
        %v4893 = vpack.c.b16 %v4273, %v4271
        %v4894 = vpack.c.b16 %v4274, %v4272
        %v4895 = vpack.c.b16 %v4277, %v4275
        %v4896 = vpack.c.b16 %v4278, %v4276
        %v4897 = vpack.c.b16 %v4281, %v4279
        %v4898 = vpack.c.b16 %v4282, %v4280
        %v4899 = vpack.c.b16 %v4285, %v4283
        %v4900 = vpack.c.b16 %v4286, %v4284
        %v4901 = vpack.c.b16 %v4289, %v4287
        %v4902 = vpack.c.b16 %v4290, %v4288
        %v4903 = vpack.c.b16 %v4293, %v4291
        %v4904 = vpack.c.b16 %v4294, %v4292
        %v4905 = vpack.c.b16 %v4297, %v4295
        %v4906 = vpack.c.b16 %v4298, %v4296
        %v4907 = vpack.c.b16 %v4301, %v4299
        %v4908 = vpack.c.b16 %v4302, %v4300
        %v4909 = vpack.c.b16 %v4305, %v4303
        %v4910 = vpack.c.b16 %v4306, %v4304
        %v4911 = vpack.c.b16 %v4309, %v4307
        %v4912 = vpack.c.b16 %v4310, %v4308
        %v4913 = vpack.c.b16 %v4313, %v4311
        %v4914 = vpack.c.b16 %v4314, %v4312
        %v4915 = vpack.c.b16 %v4317, %v4315
        %v4916 = vpack.c.b16 %v4318, %v4316
        %v4917 = vpack.c.b16 %v4321, %v4319
        %v4918 = vpack.c.b16 %v4322, %v4320
        %v4919 = vpack.c.b16 %v4325, %v4323
        %v4920 = vpack.c.b16 %v4326, %v4324
        %v4921 = vpack.c.b16 %v4329, %v4327
        %v4922 = vpack.c.b16 %v4330, %v4328
        %v4923 = vpack.c.b16 %v4333, %v4331
        %v4924 = vpack.c.b16 %v4334, %v4332
        %v4925 = vpack.c.b16 %v4337, %v4335
        %v4926 = vpack.c.b16 %v4338, %v4336
        %v4927 = vpack.c.b16 %v4341, %v4339
        %v4928 = vpack.c.b16 %v4342, %v4340
        %v4929 = vpack.c.b16 %v4345, %v4343
        %v4930 = vpack.c.b16 %v4346, %v4344
        %v4931 = vpack.c.b16 %v4349, %v4347
        %v4932 = vpack.c.b16 %v4350, %v4348
        %v4933 = vpack.c.b16 %v4353, %v4351
        %v4934 = vpack.c.b16 %v4354, %v4352
        %v4935 = vpack.c.b16 %v4357, %v4355
        %v4936 = vpack.c.b16 %v4358, %v4356
        %v4937 = vpack.c.b16 %v4361, %v4359
        %v4938 = vpack.c.b16 %v4362, %v4360
        %v4939 = vpack.c.b16 %v4365, %v4363
        %v4940 = vpack.c.b16 %v4366, %v4364
        %v4941 = vpack.c.b16 %v4369, %v4367
        %v4942 = vpack.c.b16 %v4370, %v4368
        %v4943 = vpack.c.b16 %v4373, %v4371
        %v4944 = vpack.c.b16 %v4374, %v4372
        %v4945 = vpack.c.b16 %v4377, %v4375
        %v4946 = vpack.c.b16 %v4378, %v4376
        %v4947 = vpack.c.b16 %v4381, %v4379
        %v4948 = vpack.c.b16 %v4382, %v4380
        %v4949 = vpack.c.b16 %v4385, %v4383
        %v4950 = vpack.c.b16 %v4386, %v4384
        %v4951 = vpack.c.b16 %v4389, %v4387
        %v4952 = vpack.c.b16 %v4390, %v4388
        %v4953 = vpack.c.b16 %v4393, %v4391
        %v4954 = vpack.c.b16 %v4394, %v4392
        %v4955 = vpack.c.b16 %v4397, %v4395
        %v4956 = vpack.c.b16 %v4398, %v4396
        %v4957 = vpack.c.b16 %v4401, %v4399
        %v4958 = vpack.c.b16 %v4402, %v4400
        %v4959 = vpack.c.b16 %v4405, %v4403
        %v4960 = vpack.c.b16 %v4406, %v4404
        %v4961 = vpack.c.b16 %v4409, %v4407
        %v4962 = vpack.c.b16 %v4410, %v4408
        %v4963 = vpack.c.b16 %v4413, %v4411
        %v4964 = vpack.c.b16 %v4414, %v4412
        %v4965 = vpack.c.b16 %v4417, %v4415
        %v4966 = vpack.c.b16 %v4418, %v4416
        %v4967 = vpack.c.b16 %v4421, %v4419
        %v4968 = vpack.c.b16 %v4422, %v4420
        %v4969 = vpack.c.b16 %v4425, %v4423
        %v4970 = vpack.c.b16 %v4426, %v4424
        %v4971 = vpack.c.b16 %v4429, %v4427
        %v4972 = vpack.c.b16 %v4430, %v4428
        %v4973 = vpack.c.b16 %v4433, %v4431
        %v4974 = vpack.c.b16 %v4434, %v4432
        %v4975 = vpack.c.b16 %v4437, %v4435
        %v4976 = vpack.c.b16 %v4438, %v4436
        %v4977 = vpack.c.b16 %v4441, %v4439
        %v4978 = vpack.c.b16 %v4442, %v4440
        %v4979 = vpack.c.b16 %v4445, %v4443
        %v4980 = vpack.c.b16 %v4446, %v4444
        %v4981 = vpack.c.b16 %v4449, %v4447
        %v4982 = vpack.c.b16 %v4450, %v4448
        %v4983 = vpack.c.b16 %v4453, %v4451
        %v4984 = vpack.c.b16 %v4454, %v4452
        %v4985 = vpack.c.b16 %v4457, %v4455
        %v4986 = vpack.c.b16 %v4458, %v4456
        %v4987 = vpack.c.b16 %v4461, %v4459
        %v4988 = vpack.c.b16 %v4462, %v4460
        %v4989 = vpack.c.b16 %v4465, %v4463
        %v4990 = vpack.c.b16 %v4466, %v4464
        %v4991 = vpack.c.b16 %v4469, %v4467
        %v4992 = vpack.c.b16 %v4470, %v4468
        %v4993 = vpack.c.b16 %v4473, %v4471
        %v4994 = vpack.c.b16 %v4474, %v4472
        %v4995 = vpack.c.b16 %v4477, %v4475
        %v4996 = vpack.c.b16 %v4478, %v4476
        %v4997 = vpack.c.b16 %v4481, %v4479
        %v4998 = vpack.c.b16 %v4482, %v4480
        %v4999 = vpack.c.b16 %v4485, %v4483
        %v5000 = vpack.c.b16 %v4486, %v4484
        %v5001 = vpack.c.b16 %v4489, %v4487
        %v5002 = vpack.c.b16 %v4490, %v4488
        %v5003 = vpack.c.b16 %v4493, %v4491
        %v5004 = vpack.c.b16 %v4494, %v4492
        %v5005 = vpack.c.b16 %v4497, %v4495
        %v5006 = vpack.c.b16 %v4498, %v4496
        %v5007 = vpack.c.b16 %v4501, %v4499
        %v5008 = vpack.c.b16 %v4502, %v4500
        %v5009 = vpack.c.b16 %v4505, %v4503
        %v5010 = vpack.c.b16 %v4506, %v4504
        %v5011 = vpack.c.b16 %v4509, %v4507
        %v5012 = vpack.c.b16 %v4510, %v4508
        %v5013 = vpack.c.b16 %v4513, %v4511
        %v5014 = vpack.c.b16 %v4514, %v4512
        %v5015 = vpack.c.b16 %v4517, %v4515
        %v5016 = vpack.c.b16 %v4518, %v4516
        %v5017 = vpack.c.b16 %v4521, %v4519
        %v5018 = vpack.c.b16 %v4522, %v4520
        %v5019 = vpack.c.b16 %v4525, %v4523
        %v5020 = vpack.c.b16 %v4526, %v4524
        %v5021 = vpack.c.b16 %v4529, %v4527
        %v5022 = vpack.c.b16 %v4530, %v4528
        %v5023 = vpack.c.b16 %v4533, %v4531
        %v5024 = vpack.c.b16 %v4534, %v4532
        %v5025 = vpack.c.b16 %v4537, %v4535
        %v5026 = vpack.c.b16 %v4538, %v4536
        %v5027 = vpack.c.b16 %v4541, %v4539
        %v5028 = vpack.c.b16 %v4542, %v4540
        %v5029 = vpack.c.b16 %v4545, %v4543
        %v5030 = vpack.c.b16 %v4546, %v4544
        %v5031 = vpack.c.b16 %v4549, %v4547
        %v5032 = vpack.c.b16 %v4550, %v4548
        %v5033 = vpack.c.b16 %v4553, %v4551
        %v5034 = vpack.c.b16 %v4554, %v4552
        %v5035 = vpack.c.b16 %v4557, %v4555
        %v5036 = vpack.c.b16 %v4558, %v4556
        %v5037 = vpack.c.b16 %v4561, %v4559
        %v5038 = vpack.c.b16 %v4562, %v4560
        %v5039 = vpack.c.b16 %v4565, %v4563
        %v5040 = vpack.c.b16 %v4566, %v4564
        %v5041 = vpack.c.b16 %v4569, %v4567
        %v5042 = vpack.c.b16 %v4570, %v4568
        %v5043 = vpack.c.b16 %v4573, %v4571
        %v5044 = vpack.c.b16 %v4574, %v4572
        %v5045 = vpack.c.b16 %v4577, %v4575
        %v5046 = vpack.c.b16 %v4578, %v4576
        %v5047 = vpack.c.b16 %v4581, %v4579
        %v5048 = vpack.c.b16 %v4582, %v4580
        %v5049 = vpack.c.b16 %v4585, %v4583
        %v5050 = vpack.c.b16 %v4586, %v4584
        %v5051 = vpack.c.b16 %v4589, %v4587
        %v5052 = vpack.c.b16 %v4590, %v4588
        %v5053 = vpack.c.b16 %v4593, %v4591
        %v5054 = vpack.c.b16 %v4594, %v4592
        %v5055 = vpack.c.b16 %v4597, %v4595
        %v5056 = vpack.c.b16 %v4598, %v4596
        %v5057 = vpack.c.b16 %v4601, %v4599
        %v5058 = vpack.c.b16 %v4602, %v4600
        %v5059 = vpack.c.b16 %v4605, %v4603
        %v5060 = vpack.c.b16 %v4606, %v4604
        %v5061 = vpack.c.b16 %v4609, %v4607
        %v5062 = vpack.c.b16 %v4610, %v4608
        %v5063 = vpack.c.b16 %v4613, %v4611
        %v5064 = vpack.c.b16 %v4614, %v4612
        %v5065 = vpack.c.b16 %v4617, %v4615
        %v5066 = vpack.c.b16 %v4618, %v4616
        %v5067 = vpack.c.b16 %v4621, %v4619
        %v5068 = vpack.c.b16 %v4622, %v4620
        %v5069 = vpack.c.b16 %v4625, %v4623
        %v5070 = vpack.c.b16 %v4626, %v4624
        %v5071 = vpack.c.b16 %v4629, %v4627
        %v5072 = vpack.c.b16 %v4630, %v4628
        %v5073 = vpack.c.b16 %v4633, %v4631
        %v5074 = vpack.c.b16 %v4634, %v4632
        %v5075 = vpack.c.b16 %v4637, %v4635
        %v5076 = vpack.c.b16 %v4638, %v4636
        %v5077 = vpack.c.b16 %v4641, %v4639
        %v5078 = vpack.c.b16 %v4642, %v4640
        %v5079 = vpack.c.b16 %v4645, %v4643
        %v5080 = vpack.c.b16 %v4646, %v4644
        %v5081 = vpack.c.b16 %v4649, %v4647
        %v5082 = vpack.c.b16 %v4650, %v4648
        %v5083 = vpack.c.b16 %v4653, %v4651
        %v5084 = vpack.c.b16 %v4654, %v4652
        %v5085 = vpack.c.b16 %v4657, %v4655
        %v5086 = vpack.c.b16 %v4658, %v4656
        %v5087 = vpack.c.b16 %v4661, %v4659
        %v5088 = vpack.c.b16 %v4662, %v4660
        %v5089 = vpack.c.b16 %v4665, %v4663
        %v5090 = vpack.c.b16 %v4666, %v4664
        %v5091 = vpack.c.b16 %v4669, %v4667
        %v5092 = vpack.c.b16 %v4670, %v4668
        %v5093 = vpack.c.b16 %v4673, %v4671
        %v5094 = vpack.c.b16 %v4674, %v4672
        %v5095 = vpack.c.b16 %v4677, %v4675
        %v5096 = vpack.c.b16 %v4678, %v4676
        %v5097 = vpack.c.b16 %v4681, %v4679
        %v5098 = vpack.c.b16 %v4682, %v4680
        %v5099 = vpack.c.b16 %v4685, %v4683
        %v5100 = vpack.c.b16 %v4686, %v4684
        %v5101 = vpack.c.b16 %v4689, %v4687
        %v5102 = vpack.c.b16 %v4690, %v4688
        %v5103 = vpack.c.b16 %v4693, %v4691
        %v5104 = vpack.c.b16 %v4694, %v4692
        %v5105 = vpack.c.b16 %v4697, %v4695
        %v5106 = vpack.c.b16 %v4698, %v4696
        %v5107 = vpack.c.b16 %v4701, %v4699
        %v5108 = vpack.c.b16 %v4702, %v4700
        %v5109 = vpack.c.b16 %v4705, %v4703
        %v5110 = vpack.c.b16 %v4706, %v4704
        %v5111 = vpack.c.b16 %v4709, %v4707
        %v5112 = vpack.c.b16 %v4710, %v4708
        %v5113 = vpack.c.b16 %v4713, %v4711
        %v5114 = vpack.c.b16 %v4714, %v4712
        %v5115 = vpack.c.b16 %v4717, %v4715
        %v5116 = vpack.c.b16 %v4718, %v4716
        %v5117 = vpack.c.b16 %v4721, %v4719
        %v5118 = vpack.c.b16 %v4722, %v4720
        %v5119 = vpack.c.b16 %v4725, %v4723
        %v5120 = vpack.c.b16 %v4726, %v4724
        %v5121 = vpack.c.b16 %v4729, %v4727
        %v5122 = vpack.c.b16 %v4730, %v4728
        %v5123 = vpack.c.b16 %v4733, %v4731
        %v5124 = vpack.c.b16 %v4734, %v4732
        %v5125 = vpack.c.b16 %v4737, %v4735
        %v5126 = vpack.c.b16 %v4738, %v4736
        %v5127 = vpack.c.b16 %v4741, %v4739
        %v5128 = vpack.c.b16 %v4742, %v4740
        %v5129 = vpack.c.b16 %v4745, %v4743
        %v5130 = vpack.c.b16 %v4746, %v4744
        %5515 = vmatpush.bf16.msra.mxu0 %v4761
        %5516 = vmatpush.bf16.msra.mxu0 %v4759
        %5517 = vmatpush.bf16.msra.mxu0 %v4757
        %5518 = vmatpush.bf16.msra.mxu0 %v4755
        %5519 = vmatpush.bf16.msra.mxu0 %v4753
        %5520 = vmatpush.bf16.msra.mxu0 %v4751
        %5521 = vmatpush.bf16.msra.mxu0 %v4749
        %5522 = vmatpush.bf16.msra.mxu0 %v4747
        %5523 = vmatmul.bf16.gmra.mxu0 %v3547
        %v5524 = vpop.f32.mrf.mxu0
        %v5525 = vadd.f32 %v3471, %v5524
        %v5526 = vpop.f32.mrf.mxu0
        %v5527 = vadd.f32 %v3471, %v5526
        %5528 = vdwg.mxu0
        %5529 = vmatpush.bf16.msra.mxu0 %v4777
        %5530 = vmatpush.bf16.msra.mxu0 %v4775
        %5531 = vmatpush.bf16.msra.mxu0 %v4773
        %5532 = vmatpush.bf16.msra.mxu0 %v4771
        %5533 = vmatpush.bf16.msra.mxu0 %v4769
        %5534 = vmatpush.bf16.msra.mxu0 %v4767
        %5535 = vmatpush.bf16.msra.mxu0 %v4765
        %5536 = vmatpush.bf16.msra.mxu0 %v4763
        %5537 = vmatmul.bf16.gmra.mxu0 %v3548
        %v5538 = vpop.f32.mrf.mxu0
        %v5539 = vadd.f32 %v5525, %v5538
        %v5540 = vpop.f32.mrf.mxu0
        %v5541 = vadd.f32 %v5527, %v5540
        %5542 = vdwg.mxu0
        %5543 = vmatpush.bf16.msra.mxu0 %v4793
        %5544 = vmatpush.bf16.msra.mxu0 %v4791
        %5545 = vmatpush.bf16.msra.mxu0 %v4789
        %5546 = vmatpush.bf16.msra.mxu0 %v4787
        %5547 = vmatpush.bf16.msra.mxu0 %v4785
        %5548 = vmatpush.bf16.msra.mxu0 %v4783
        %5549 = vmatpush.bf16.msra.mxu0 %v4781
        %5550 = vmatpush.bf16.msra.mxu0 %v4779
        %5551 = vmatmul.bf16.gmra.mxu0 %v3549
        %v5552 = vpop.f32.mrf.mxu0
        %v5553 = vadd.f32 %v5539, %v5552
        %v5554 = vpop.f32.mrf.mxu0
        %v5555 = vadd.f32 %v5541, %v5554
        %5556 = vdwg.mxu0
        %5557 = vmatpush.bf16.msra.mxu0 %v4809
        %5558 = vmatpush.bf16.msra.mxu0 %v4807
        %5559 = vmatpush.bf16.msra.mxu0 %v4805
        %5560 = vmatpush.bf16.msra.mxu0 %v4803
        %5561 = vmatpush.bf16.msra.mxu0 %v4801
        %5562 = vmatpush.bf16.msra.mxu0 %v4799
        %5563 = vmatpush.bf16.msra.mxu0 %v4797
        %5564 = vmatpush.bf16.msra.mxu0 %v4795
        %5565 = vmatmul.bf16.gmra.mxu0 %v3550
        %v5566 = vpop.f32.mrf.mxu0
        %v5567 = vadd.f32 %v5553, %v5566
        %v5568 = vpop.f32.mrf.mxu0
        %v5569 = vadd.f32 %v5555, %v5568
        %5570 = vdwg.mxu0
        %5571 = vmatpush.bf16.msra.mxu0 %v4825
        %5572 = vmatpush.bf16.msra.mxu0 %v4823
        %5573 = vmatpush.bf16.msra.mxu0 %v4821
        %5574 = vmatpush.bf16.msra.mxu0 %v4819
        %5575 = vmatpush.bf16.msra.mxu0 %v4817
        %5576 = vmatpush.bf16.msra.mxu0 %v4815
        %5577 = vmatpush.bf16.msra.mxu0 %v4813
        %5578 = vmatpush.bf16.msra.mxu0 %v4811
        %5579 = vmatmul.bf16.gmra.mxu0 %v3551
        %v5580 = vpop.f32.mrf.mxu0
        %v5581 = vadd.f32 %v5567, %v5580
        %v5582 = vpop.f32.mrf.mxu0
        %v5583 = vadd.f32 %v5569, %v5582
        %5584 = vdwg.mxu0
        %5585 = vmatpush.bf16.msra.mxu0 %v4841
        %5586 = vmatpush.bf16.msra.mxu0 %v4839
        %5587 = vmatpush.bf16.msra.mxu0 %v4837
        %5588 = vmatpush.bf16.msra.mxu0 %v4835
        %5589 = vmatpush.bf16.msra.mxu0 %v4833
        %5590 = vmatpush.bf16.msra.mxu0 %v4831
        %5591 = vmatpush.bf16.msra.mxu0 %v4829
        %5592 = vmatpush.bf16.msra.mxu0 %v4827
        %5593 = vmatmul.bf16.gmra.mxu0 %v3552
        %v5594 = vpop.f32.mrf.mxu0
        %v5595 = vadd.f32 %v5581, %v5594
        %v5596 = vpop.f32.mrf.mxu0
        %v5597 = vadd.f32 %v5583, %v5596
        %5598 = vdwg.mxu0
        %5599 = vmatpush.bf16.msra.mxu0 %v4857
        %5600 = vmatpush.bf16.msra.mxu0 %v4855
        %5601 = vmatpush.bf16.msra.mxu0 %v4853
        %5602 = vmatpush.bf16.msra.mxu0 %v4851
        %5603 = vmatpush.bf16.msra.mxu0 %v4849
        %5604 = vmatpush.bf16.msra.mxu0 %v4847
        %5605 = vmatpush.bf16.msra.mxu0 %v4845
        %5606 = vmatpush.bf16.msra.mxu0 %v4843
        %5607 = vmatmul.bf16.gmra.mxu0 %v3553
        %v5608 = vpop.f32.mrf.mxu0
        %v5609 = vadd.f32 %v5595, %v5608
        %v5610 = vpop.f32.mrf.mxu0
        %v5611 = vadd.f32 %v5597, %v5610
        %5612 = vdwg.mxu0
        %5613 = vmatpush.bf16.msra.mxu0 %v4873
        %5614 = vmatpush.bf16.msra.mxu0 %v4871
        %5615 = vmatpush.bf16.msra.mxu0 %v4869
        %5616 = vmatpush.bf16.msra.mxu0 %v4867
        %5617 = vmatpush.bf16.msra.mxu0 %v4865
        %5618 = vmatpush.bf16.msra.mxu0 %v4863
        %5619 = vmatpush.bf16.msra.mxu0 %v4861
        %5620 = vmatpush.bf16.msra.mxu0 %v4859
        %5621 = vmatmul.bf16.gmra.mxu0 %v3554
        %v5622 = vpop.f32.mrf.mxu0
        %v5623 = vadd.f32 %v5609, %v5622
        %v5624 = vpop.f32.mrf.mxu0
        %v5625 = vadd.f32 %v5611, %v5624
        %5626 = vdwg.mxu0
        %5627 = vmatpush.bf16.msra.mxu0 %v4889
        %5628 = vmatpush.bf16.msra.mxu0 %v4887
        %5629 = vmatpush.bf16.msra.mxu0 %v4885
        %5630 = vmatpush.bf16.msra.mxu0 %v4883
        %5631 = vmatpush.bf16.msra.mxu0 %v4881
        %5632 = vmatpush.bf16.msra.mxu0 %v4879
        %5633 = vmatpush.bf16.msra.mxu0 %v4877
        %5634 = vmatpush.bf16.msra.mxu0 %v4875
        %5635 = vmatmul.bf16.gmra.mxu0 %v3555
        %v5636 = vpop.f32.mrf.mxu0
        %v5637 = vadd.f32 %v5623, %v5636
        %v5638 = vpop.f32.mrf.mxu0
        %v5639 = vadd.f32 %v5625, %v5638
        %5640 = vdwg.mxu0
        %5641 = vmatpush.bf16.msra.mxu0 %v4905
        %5642 = vmatpush.bf16.msra.mxu0 %v4903
        %5643 = vmatpush.bf16.msra.mxu0 %v4901
        %5644 = vmatpush.bf16.msra.mxu0 %v4899
        %5645 = vmatpush.bf16.msra.mxu0 %v4897
        %5646 = vmatpush.bf16.msra.mxu0 %v4895
        %5647 = vmatpush.bf16.msra.mxu0 %v4893
        %5648 = vmatpush.bf16.msra.mxu0 %v4891
        %5649 = vmatmul.bf16.gmra.mxu0 %v3556
        %v5650 = vpop.f32.mrf.mxu0
        %v5651 = vadd.f32 %v5637, %v5650
        %v5652 = vpop.f32.mrf.mxu0
        %v5653 = vadd.f32 %v5639, %v5652
        %5654 = vdwg.mxu0
        %5655 = vmatpush.bf16.msra.mxu0 %v4921
        %5656 = vmatpush.bf16.msra.mxu0 %v4919
        %5657 = vmatpush.bf16.msra.mxu0 %v4917
        %5658 = vmatpush.bf16.msra.mxu0 %v4915
        %5659 = vmatpush.bf16.msra.mxu0 %v4913
        %5660 = vmatpush.bf16.msra.mxu0 %v4911
        %5661 = vmatpush.bf16.msra.mxu0 %v4909
        %5662 = vmatpush.bf16.msra.mxu0 %v4907
        %5663 = vmatmul.bf16.gmra.mxu0 %v3557
        %v5664 = vpop.f32.mrf.mxu0
        %v5665 = vadd.f32 %v5651, %v5664
        %v5666 = vpop.f32.mrf.mxu0
        %v5667 = vadd.f32 %v5653, %v5666
        %5668 = vdwg.mxu0
        %5669 = vmatpush.bf16.msra.mxu0 %v4937
        %5670 = vmatpush.bf16.msra.mxu0 %v4935
        %5671 = vmatpush.bf16.msra.mxu0 %v4933
        %5672 = vmatpush.bf16.msra.mxu0 %v4931
        %5673 = vmatpush.bf16.msra.mxu0 %v4929
        %5674 = vmatpush.bf16.msra.mxu0 %v4927
        %5675 = vmatpush.bf16.msra.mxu0 %v4925
        %5676 = vmatpush.bf16.msra.mxu0 %v4923
        %5677 = vmatmul.bf16.gmra.mxu0 %v3558
        %v5678 = vpop.f32.mrf.mxu0
        %v5679 = vadd.f32 %v5665, %v5678
        %v5680 = vpop.f32.mrf.mxu0
        %v5681 = vadd.f32 %v5667, %v5680
        %5682 = vdwg.mxu0
        %5683 = vmatpush.bf16.msra.mxu0 %v4953
        %5684 = vmatpush.bf16.msra.mxu0 %v4951
        %5685 = vmatpush.bf16.msra.mxu0 %v4949
        %5686 = vmatpush.bf16.msra.mxu0 %v4947
        %5687 = vmatpush.bf16.msra.mxu0 %v4945
        %5688 = vmatpush.bf16.msra.mxu0 %v4943
        %5689 = vmatpush.bf16.msra.mxu0 %v4941
        %5690 = vmatpush.bf16.msra.mxu0 %v4939
        %5691 = vmatmul.bf16.gmra.mxu0 %v3559
        %v5692 = vpop.f32.mrf.mxu0
        %v5693 = vadd.f32 %v5679, %v5692
        %v5694 = vpop.f32.mrf.mxu0
        %v5695 = vadd.f32 %v5681, %v5694
        %5696 = vdwg.mxu0
        %5697 = vmatpush.bf16.msra.mxu0 %v4969
        %5698 = vmatpush.bf16.msra.mxu0 %v4967
        %5699 = vmatpush.bf16.msra.mxu0 %v4965
        %5700 = vmatpush.bf16.msra.mxu0 %v4963
        %5701 = vmatpush.bf16.msra.mxu0 %v4961
        %5702 = vmatpush.bf16.msra.mxu0 %v4959
        %5703 = vmatpush.bf16.msra.mxu0 %v4957
        %5704 = vmatpush.bf16.msra.mxu0 %v4955
        %5705 = vmatmul.bf16.gmra.mxu0 %v3560
        %v5706 = vpop.f32.mrf.mxu0
        %v5707 = vadd.f32 %v5693, %v5706
        %v5708 = vpop.f32.mrf.mxu0
        %v5709 = vadd.f32 %v5695, %v5708
        %5710 = vdwg.mxu0
        %5711 = vmatpush.bf16.msra.mxu0 %v4985
        %5712 = vmatpush.bf16.msra.mxu0 %v4983
        %5713 = vmatpush.bf16.msra.mxu0 %v4981
        %5714 = vmatpush.bf16.msra.mxu0 %v4979
        %5715 = vmatpush.bf16.msra.mxu0 %v4977
        %5716 = vmatpush.bf16.msra.mxu0 %v4975
        %5717 = vmatpush.bf16.msra.mxu0 %v4973
        %5718 = vmatpush.bf16.msra.mxu0 %v4971
        %5719 = vmatmul.bf16.gmra.mxu0 %v3561
        %v5720 = vpop.f32.mrf.mxu0
        %v5721 = vadd.f32 %v5707, %v5720
        %v5722 = vpop.f32.mrf.mxu0
        %v5723 = vadd.f32 %v5709, %v5722
        %5724 = vdwg.mxu0
        %5725 = vmatpush.bf16.msra.mxu0 %v5001
        %5726 = vmatpush.bf16.msra.mxu0 %v4999
        %5727 = vmatpush.bf16.msra.mxu0 %v4997
        %5728 = vmatpush.bf16.msra.mxu0 %v4995
        %5729 = vmatpush.bf16.msra.mxu0 %v4993
        %5730 = vmatpush.bf16.msra.mxu0 %v4991
        %5731 = vmatpush.bf16.msra.mxu0 %v4989
        %5732 = vmatpush.bf16.msra.mxu0 %v4987
        %5733 = vmatmul.bf16.gmra.mxu0 %v3562
        %v5734 = vpop.f32.mrf.mxu0
        %v5735 = vadd.f32 %v5721, %v5734
        %v5736 = vpop.f32.mrf.mxu0
        %v5737 = vadd.f32 %v5723, %v5736
        %5738 = vdwg.mxu0
        %5739 = vmatpush.bf16.msra.mxu0 %v5017
        %5740 = vmatpush.bf16.msra.mxu0 %v5015
        %5741 = vmatpush.bf16.msra.mxu0 %v5013
        %5742 = vmatpush.bf16.msra.mxu0 %v5011
        %5743 = vmatpush.bf16.msra.mxu0 %v5009
        %5744 = vmatpush.bf16.msra.mxu0 %v5007
        %5745 = vmatpush.bf16.msra.mxu0 %v5005
        %5746 = vmatpush.bf16.msra.mxu0 %v5003
        %5747 = vmatmul.bf16.gmra.mxu0 %v3563
        %v5748 = vpop.f32.mrf.mxu0
        %v5749 = vadd.f32 %v5735, %v5748
        %v5750 = vpop.f32.mrf.mxu0
        %v5751 = vadd.f32 %v5737, %v5750
        %5752 = vdwg.mxu0
        %5753 = vmatpush.bf16.msra.mxu0 %v5033
        %5754 = vmatpush.bf16.msra.mxu0 %v5031
        %5755 = vmatpush.bf16.msra.mxu0 %v5029
        %5756 = vmatpush.bf16.msra.mxu0 %v5027
        %5757 = vmatpush.bf16.msra.mxu0 %v5025
        %5758 = vmatpush.bf16.msra.mxu0 %v5023
        %5759 = vmatpush.bf16.msra.mxu0 %v5021
        %5760 = vmatpush.bf16.msra.mxu0 %v5019
        %5761 = vmatmul.bf16.gmra.mxu0 %v3564
        %v5762 = vpop.f32.mrf.mxu0
        %v5763 = vadd.f32 %v5749, %v5762
        %v5764 = vpop.f32.mrf.mxu0
        %v5765 = vadd.f32 %v5751, %v5764
        %5766 = vdwg.mxu0
        %5767 = vmatpush.bf16.msra.mxu0 %v5049
        %5768 = vmatpush.bf16.msra.mxu0 %v5047
        %5769 = vmatpush.bf16.msra.mxu0 %v5045
        %5770 = vmatpush.bf16.msra.mxu0 %v5043
        %5771 = vmatpush.bf16.msra.mxu0 %v5041
        %5772 = vmatpush.bf16.msra.mxu0 %v5039
        %5773 = vmatpush.bf16.msra.mxu0 %v5037
        %5774 = vmatpush.bf16.msra.mxu0 %v5035
        %5775 = vmatmul.bf16.gmra.mxu0 %v3565
        %v5776 = vpop.f32.mrf.mxu0
        %v5777 = vadd.f32 %v5763, %v5776
        %v5778 = vpop.f32.mrf.mxu0
        %v5779 = vadd.f32 %v5765, %v5778
        %5780 = vdwg.mxu0
        %5781 = vmatpush.bf16.msra.mxu0 %v5065
        %5782 = vmatpush.bf16.msra.mxu0 %v5063
        %5783 = vmatpush.bf16.msra.mxu0 %v5061
        %5784 = vmatpush.bf16.msra.mxu0 %v5059
        %5785 = vmatpush.bf16.msra.mxu0 %v5057
        %5786 = vmatpush.bf16.msra.mxu0 %v5055
        %5787 = vmatpush.bf16.msra.mxu0 %v5053
        %5788 = vmatpush.bf16.msra.mxu0 %v5051
        %5789 = vmatmul.bf16.gmra.mxu0 %v3566
        %v5790 = vpop.f32.mrf.mxu0
        %v5791 = vadd.f32 %v5777, %v5790
        %v5792 = vpop.f32.mrf.mxu0
        %v5793 = vadd.f32 %v5779, %v5792
        %5794 = vdwg.mxu0
        %5795 = vmatpush.bf16.msra.mxu0 %v5081
        %5796 = vmatpush.bf16.msra.mxu0 %v5079
        %5797 = vmatpush.bf16.msra.mxu0 %v5077
        %5798 = vmatpush.bf16.msra.mxu0 %v5075
        %5799 = vmatpush.bf16.msra.mxu0 %v5073
        %5800 = vmatpush.bf16.msra.mxu0 %v5071
        %5801 = vmatpush.bf16.msra.mxu0 %v5069
        %5802 = vmatpush.bf16.msra.mxu0 %v5067
        %5803 = vmatmul.bf16.gmra.mxu0 %v3567
        %v5804 = vpop.f32.mrf.mxu0
        %v5805 = vadd.f32 %v5791, %v5804
        %v5806 = vpop.f32.mrf.mxu0
        %v5807 = vadd.f32 %v5793, %v5806
        %5808 = vdwg.mxu0
        %5809 = vmatpush.bf16.msra.mxu0 %v5097
        %5810 = vmatpush.bf16.msra.mxu0 %v5095
        %5811 = vmatpush.bf16.msra.mxu0 %v5093
        %5812 = vmatpush.bf16.msra.mxu0 %v5091
        %5813 = vmatpush.bf16.msra.mxu0 %v5089
        %5814 = vmatpush.bf16.msra.mxu0 %v5087
        %5815 = vmatpush.bf16.msra.mxu0 %v5085
        %5816 = vmatpush.bf16.msra.mxu0 %v5083
        %5817 = vmatmul.bf16.gmra.mxu0 %v3568
        %v5818 = vpop.f32.mrf.mxu0
        %v5819 = vadd.f32 %v5805, %v5818
        %v5820 = vpop.f32.mrf.mxu0
        %v5821 = vadd.f32 %v5807, %v5820
        %5822 = vdwg.mxu0
        %5823 = vmatpush.bf16.msra.mxu0 %v5113
        %5824 = vmatpush.bf16.msra.mxu0 %v5111
        %5825 = vmatpush.bf16.msra.mxu0 %v5109
        %5826 = vmatpush.bf16.msra.mxu0 %v5107
        %5827 = vmatpush.bf16.msra.mxu0 %v5105
        %5828 = vmatpush.bf16.msra.mxu0 %v5103
        %5829 = vmatpush.bf16.msra.mxu0 %v5101
        %5830 = vmatpush.bf16.msra.mxu0 %v5099
        %5831 = vmatmul.bf16.gmra.mxu0 %v3569
        %v5832 = vpop.f32.mrf.mxu0
        %v5833 = vadd.f32 %v5819, %v5832
        %v5834 = vpop.f32.mrf.mxu0
        %v5835 = vadd.f32 %v5821, %v5834
        %5836 = vdwg.mxu0
        %5837 = vmatpush.bf16.msra.mxu0 %v5129
        %5838 = vmatpush.bf16.msra.mxu0 %v5127
        %5839 = vmatpush.bf16.msra.mxu0 %v5125
        %5840 = vmatpush.bf16.msra.mxu0 %v5123
        %5841 = vmatpush.bf16.msra.mxu0 %v5121
        %5842 = vmatpush.bf16.msra.mxu0 %v5119
        %5843 = vmatpush.bf16.msra.mxu0 %v5117
        %5844 = vmatpush.bf16.msra.mxu0 %v5115
        %5845 = vmatmul.bf16.gmra.mxu0 %v3570
        %v5846 = vpop.f32.mrf.mxu0
        %v5847 = vadd.f32 %v5833, %v5846
        %v5848 = vpop.f32.mrf.mxu0
        %v5849 = vadd.f32 %v5835, %v5848
        %5850 = vdwg.mxu0
        %5851 = vmatpush.bf16.msra.mxu0 %v4762
        %5852 = vmatpush.bf16.msra.mxu0 %v4760
        %5853 = vmatpush.bf16.msra.mxu0 %v4758
        %5854 = vmatpush.bf16.msra.mxu0 %v4756
        %5855 = vmatpush.bf16.msra.mxu0 %v4754
        %5856 = vmatpush.bf16.msra.mxu0 %v4752
        %5857 = vmatpush.bf16.msra.mxu0 %v4750
        %5858 = vmatpush.bf16.msra.mxu0 %v4748
        %5859 = vmatmul.bf16.gmra.mxu0 %v3547
        %v5860 = vpop.f32.mrf.mxu0
        %v5861 = vadd.f32 %v3472, %v5860
        %v5862 = vpop.f32.mrf.mxu0
        %v5863 = vadd.f32 %v3472, %v5862
        %5864 = vdwg.mxu0
        %5865 = vmatpush.bf16.msra.mxu0 %v4778
        %5866 = vmatpush.bf16.msra.mxu0 %v4776
        %5867 = vmatpush.bf16.msra.mxu0 %v4774
        %5868 = vmatpush.bf16.msra.mxu0 %v4772
        %5869 = vmatpush.bf16.msra.mxu0 %v4770
        %5870 = vmatpush.bf16.msra.mxu0 %v4768
        %5871 = vmatpush.bf16.msra.mxu0 %v4766
        %5872 = vmatpush.bf16.msra.mxu0 %v4764
        %5873 = vmatmul.bf16.gmra.mxu0 %v3548
        %v5874 = vpop.f32.mrf.mxu0
        %v5875 = vadd.f32 %v5861, %v5874
        %v5876 = vpop.f32.mrf.mxu0
        %v5877 = vadd.f32 %v5863, %v5876
        %5878 = vdwg.mxu0
        %5879 = vmatpush.bf16.msra.mxu0 %v4794
        %5880 = vmatpush.bf16.msra.mxu0 %v4792
        %5881 = vmatpush.bf16.msra.mxu0 %v4790
        %5882 = vmatpush.bf16.msra.mxu0 %v4788
        %5883 = vmatpush.bf16.msra.mxu0 %v4786
        %5884 = vmatpush.bf16.msra.mxu0 %v4784
        %5885 = vmatpush.bf16.msra.mxu0 %v4782
        %5886 = vmatpush.bf16.msra.mxu0 %v4780
        %5887 = vmatmul.bf16.gmra.mxu0 %v3549
        %v5888 = vpop.f32.mrf.mxu0
        %v5889 = vadd.f32 %v5875, %v5888
        %v5890 = vpop.f32.mrf.mxu0
        %v5891 = vadd.f32 %v5877, %v5890
        %5892 = vdwg.mxu0
        %5893 = vmatpush.bf16.msra.mxu0 %v4810
        %5894 = vmatpush.bf16.msra.mxu0 %v4808
        %5895 = vmatpush.bf16.msra.mxu0 %v4806
        %5896 = vmatpush.bf16.msra.mxu0 %v4804
        %5897 = vmatpush.bf16.msra.mxu0 %v4802
        %5898 = vmatpush.bf16.msra.mxu0 %v4800
        %5899 = vmatpush.bf16.msra.mxu0 %v4798
        %5900 = vmatpush.bf16.msra.mxu0 %v4796
        %5901 = vmatmul.bf16.gmra.mxu0 %v3550
        %v5902 = vpop.f32.mrf.mxu0
        %v5903 = vadd.f32 %v5889, %v5902
        %v5904 = vpop.f32.mrf.mxu0
        %v5905 = vadd.f32 %v5891, %v5904
        %5906 = vdwg.mxu0
        %5907 = vmatpush.bf16.msra.mxu0 %v4826
        %5908 = vmatpush.bf16.msra.mxu0 %v4824
        %5909 = vmatpush.bf16.msra.mxu0 %v4822
        %5910 = vmatpush.bf16.msra.mxu0 %v4820
        %5911 = vmatpush.bf16.msra.mxu0 %v4818
        %5912 = vmatpush.bf16.msra.mxu0 %v4816
        %5913 = vmatpush.bf16.msra.mxu0 %v4814
        %5914 = vmatpush.bf16.msra.mxu0 %v4812
        %5915 = vmatmul.bf16.gmra.mxu0 %v3551
        %v5916 = vpop.f32.mrf.mxu0
        %v5917 = vadd.f32 %v5903, %v5916
        %v5918 = vpop.f32.mrf.mxu0
        %v5919 = vadd.f32 %v5905, %v5918
        %5920 = vdwg.mxu0
        %5921 = vmatpush.bf16.msra.mxu0 %v4842
        %5922 = vmatpush.bf16.msra.mxu0 %v4840
        %5923 = vmatpush.bf16.msra.mxu0 %v4838
        %5924 = vmatpush.bf16.msra.mxu0 %v4836
        %5925 = vmatpush.bf16.msra.mxu0 %v4834
        %5926 = vmatpush.bf16.msra.mxu0 %v4832
        %5927 = vmatpush.bf16.msra.mxu0 %v4830
        %5928 = vmatpush.bf16.msra.mxu0 %v4828
        %5929 = vmatmul.bf16.gmra.mxu0 %v3552
        %v5930 = vpop.f32.mrf.mxu0
        %v5931 = vadd.f32 %v5917, %v5930
        %v5932 = vpop.f32.mrf.mxu0
        %v5933 = vadd.f32 %v5919, %v5932
        %5934 = vdwg.mxu0
        %5935 = vmatpush.bf16.msra.mxu0 %v4858
        %5936 = vmatpush.bf16.msra.mxu0 %v4856
        %5937 = vmatpush.bf16.msra.mxu0 %v4854
        %5938 = vmatpush.bf16.msra.mxu0 %v4852
        %5939 = vmatpush.bf16.msra.mxu0 %v4850
        %5940 = vmatpush.bf16.msra.mxu0 %v4848
        %5941 = vmatpush.bf16.msra.mxu0 %v4846
        %5942 = vmatpush.bf16.msra.mxu0 %v4844
        %5943 = vmatmul.bf16.gmra.mxu0 %v3553
        %v5944 = vpop.f32.mrf.mxu0
        %v5945 = vadd.f32 %v5931, %v5944
        %v5946 = vpop.f32.mrf.mxu0
        %v5947 = vadd.f32 %v5933, %v5946
        %5948 = vdwg.mxu0
        %5949 = vmatpush.bf16.msra.mxu0 %v4874
        %5950 = vmatpush.bf16.msra.mxu0 %v4872
        %5951 = vmatpush.bf16.msra.mxu0 %v4870
        %5952 = vmatpush.bf16.msra.mxu0 %v4868
        %5953 = vmatpush.bf16.msra.mxu0 %v4866
        %5954 = vmatpush.bf16.msra.mxu0 %v4864
        %5955 = vmatpush.bf16.msra.mxu0 %v4862
        %5956 = vmatpush.bf16.msra.mxu0 %v4860
        %5957 = vmatmul.bf16.gmra.mxu0 %v3554
        %v5958 = vpop.f32.mrf.mxu0
        %v5959 = vadd.f32 %v5945, %v5958
        %v5960 = vpop.f32.mrf.mxu0
        %v5961 = vadd.f32 %v5947, %v5960
        %5962 = vdwg.mxu0
        %5963 = vmatpush.bf16.msra.mxu0 %v4890
        %5964 = vmatpush.bf16.msra.mxu0 %v4888
        %5965 = vmatpush.bf16.msra.mxu0 %v4886
        %5966 = vmatpush.bf16.msra.mxu0 %v4884
        %5967 = vmatpush.bf16.msra.mxu0 %v4882
        %5968 = vmatpush.bf16.msra.mxu0 %v4880
        %5969 = vmatpush.bf16.msra.mxu0 %v4878
        %5970 = vmatpush.bf16.msra.mxu0 %v4876
        %5971 = vmatmul.bf16.gmra.mxu0 %v3555
        %v5972 = vpop.f32.mrf.mxu0
        %v5973 = vadd.f32 %v5959, %v5972
        %v5974 = vpop.f32.mrf.mxu0
        %v5975 = vadd.f32 %v5961, %v5974
        %5976 = vdwg.mxu0
        %5977 = vmatpush.bf16.msra.mxu0 %v4906
        %5978 = vmatpush.bf16.msra.mxu0 %v4904
        %5979 = vmatpush.bf16.msra.mxu0 %v4902
        %5980 = vmatpush.bf16.msra.mxu0 %v4900
        %5981 = vmatpush.bf16.msra.mxu0 %v4898
        %5982 = vmatpush.bf16.msra.mxu0 %v4896
        %5983 = vmatpush.bf16.msra.mxu0 %v4894
        %5984 = vmatpush.bf16.msra.mxu0 %v4892
        %5985 = vmatmul.bf16.gmra.mxu0 %v3556
        %v5986 = vpop.f32.mrf.mxu0
        %v5987 = vadd.f32 %v5973, %v5986
        %v5988 = vpop.f32.mrf.mxu0
        %v5989 = vadd.f32 %v5975, %v5988
        %5990 = vdwg.mxu0
        %5991 = vmatpush.bf16.msra.mxu0 %v4922
        %5992 = vmatpush.bf16.msra.mxu0 %v4920
        %5993 = vmatpush.bf16.msra.mxu0 %v4918
        %5994 = vmatpush.bf16.msra.mxu0 %v4916
        %5995 = vmatpush.bf16.msra.mxu0 %v4914
        %5996 = vmatpush.bf16.msra.mxu0 %v4912
        %5997 = vmatpush.bf16.msra.mxu0 %v4910
        %5998 = vmatpush.bf16.msra.mxu0 %v4908
        %5999 = vmatmul.bf16.gmra.mxu0 %v3557
        %v6000 = vpop.f32.mrf.mxu0
        %v6001 = vadd.f32 %v5987, %v6000
        %v6002 = vpop.f32.mrf.mxu0
        %v6003 = vadd.f32 %v5989, %v6002
        %6004 = vdwg.mxu0
        %6005 = vmatpush.bf16.msra.mxu0 %v4938
        %6006 = vmatpush.bf16.msra.mxu0 %v4936
        %6007 = vmatpush.bf16.msra.mxu0 %v4934
        %6008 = vmatpush.bf16.msra.mxu0 %v4932
        %6009 = vmatpush.bf16.msra.mxu0 %v4930
        %6010 = vmatpush.bf16.msra.mxu0 %v4928
        %6011 = vmatpush.bf16.msra.mxu0 %v4926
        %6012 = vmatpush.bf16.msra.mxu0 %v4924
        %6013 = vmatmul.bf16.gmra.mxu0 %v3558
        %v6014 = vpop.f32.mrf.mxu0
        %v6015 = vadd.f32 %v6001, %v6014
        %v6016 = vpop.f32.mrf.mxu0
        %v6017 = vadd.f32 %v6003, %v6016
        %6018 = vdwg.mxu0
        %6019 = vmatpush.bf16.msra.mxu0 %v4954
        %6020 = vmatpush.bf16.msra.mxu0 %v4952
        %6021 = vmatpush.bf16.msra.mxu0 %v4950
        %6022 = vmatpush.bf16.msra.mxu0 %v4948
        %6023 = vmatpush.bf16.msra.mxu0 %v4946
        %6024 = vmatpush.bf16.msra.mxu0 %v4944
        %6025 = vmatpush.bf16.msra.mxu0 %v4942
        %6026 = vmatpush.bf16.msra.mxu0 %v4940
        %6027 = vmatmul.bf16.gmra.mxu0 %v3559
        %v6028 = vpop.f32.mrf.mxu0
        %v6029 = vadd.f32 %v6015, %v6028
        %v6030 = vpop.f32.mrf.mxu0
        %v6031 = vadd.f32 %v6017, %v6030
        %6032 = vdwg.mxu0
        %6033 = vmatpush.bf16.msra.mxu0 %v4970
        %6034 = vmatpush.bf16.msra.mxu0 %v4968
        %6035 = vmatpush.bf16.msra.mxu0 %v4966
        %6036 = vmatpush.bf16.msra.mxu0 %v4964
        %6037 = vmatpush.bf16.msra.mxu0 %v4962
        %6038 = vmatpush.bf16.msra.mxu0 %v4960
        %6039 = vmatpush.bf16.msra.mxu0 %v4958
        %6040 = vmatpush.bf16.msra.mxu0 %v4956
        %6041 = vmatmul.bf16.gmra.mxu0 %v3560
        %v6042 = vpop.f32.mrf.mxu0
        %v6043 = vadd.f32 %v6029, %v6042
        %v6044 = vpop.f32.mrf.mxu0
        %v6045 = vadd.f32 %v6031, %v6044
        %6046 = vdwg.mxu0
        %6047 = vmatpush.bf16.msra.mxu0 %v4986
        %6048 = vmatpush.bf16.msra.mxu0 %v4984
        %6049 = vmatpush.bf16.msra.mxu0 %v4982
        %6050 = vmatpush.bf16.msra.mxu0 %v4980
        %6051 = vmatpush.bf16.msra.mxu0 %v4978
        %6052 = vmatpush.bf16.msra.mxu0 %v4976
        %6053 = vmatpush.bf16.msra.mxu0 %v4974
        %6054 = vmatpush.bf16.msra.mxu0 %v4972
        %6055 = vmatmul.bf16.gmra.mxu0 %v3561
        %v6056 = vpop.f32.mrf.mxu0
        %v6057 = vadd.f32 %v6043, %v6056
        %v6058 = vpop.f32.mrf.mxu0
        %v6059 = vadd.f32 %v6045, %v6058
        %6060 = vdwg.mxu0
        %6061 = vmatpush.bf16.msra.mxu0 %v5002
        %6062 = vmatpush.bf16.msra.mxu0 %v5000
        %6063 = vmatpush.bf16.msra.mxu0 %v4998
        %6064 = vmatpush.bf16.msra.mxu0 %v4996
        %6065 = vmatpush.bf16.msra.mxu0 %v4994
        %6066 = vmatpush.bf16.msra.mxu0 %v4992
        %6067 = vmatpush.bf16.msra.mxu0 %v4990
        %6068 = vmatpush.bf16.msra.mxu0 %v4988
        %6069 = vmatmul.bf16.gmra.mxu0 %v3562
        %v6070 = vpop.f32.mrf.mxu0
        %v6071 = vadd.f32 %v6057, %v6070
        %v6072 = vpop.f32.mrf.mxu0
        %v6073 = vadd.f32 %v6059, %v6072
        %6074 = vdwg.mxu0
        %6075 = vmatpush.bf16.msra.mxu0 %v5018
        %6076 = vmatpush.bf16.msra.mxu0 %v5016
        %6077 = vmatpush.bf16.msra.mxu0 %v5014
        %6078 = vmatpush.bf16.msra.mxu0 %v5012
        %6079 = vmatpush.bf16.msra.mxu0 %v5010
        %6080 = vmatpush.bf16.msra.mxu0 %v5008
        %6081 = vmatpush.bf16.msra.mxu0 %v5006
        %6082 = vmatpush.bf16.msra.mxu0 %v5004
        %6083 = vmatmul.bf16.gmra.mxu0 %v3563
        %v6084 = vpop.f32.mrf.mxu0
        %v6085 = vadd.f32 %v6071, %v6084
        %v6086 = vpop.f32.mrf.mxu0
        %v6087 = vadd.f32 %v6073, %v6086
        %6088 = vdwg.mxu0
        %6089 = vmatpush.bf16.msra.mxu0 %v5034
        %6090 = vmatpush.bf16.msra.mxu0 %v5032
        %6091 = vmatpush.bf16.msra.mxu0 %v5030
        %6092 = vmatpush.bf16.msra.mxu0 %v5028
        %6093 = vmatpush.bf16.msra.mxu0 %v5026
        %6094 = vmatpush.bf16.msra.mxu0 %v5024
        %6095 = vmatpush.bf16.msra.mxu0 %v5022
        %6096 = vmatpush.bf16.msra.mxu0 %v5020
        %6097 = vmatmul.bf16.gmra.mxu0 %v3564
        %v6098 = vpop.f32.mrf.mxu0
        %v6099 = vadd.f32 %v6085, %v6098
        %v6100 = vpop.f32.mrf.mxu0
        %v6101 = vadd.f32 %v6087, %v6100
        %6102 = vdwg.mxu0
        %6103 = vmatpush.bf16.msra.mxu0 %v5050
        %6104 = vmatpush.bf16.msra.mxu0 %v5048
        %6105 = vmatpush.bf16.msra.mxu0 %v5046
        %6106 = vmatpush.bf16.msra.mxu0 %v5044
        %6107 = vmatpush.bf16.msra.mxu0 %v5042
        %6108 = vmatpush.bf16.msra.mxu0 %v5040
        %6109 = vmatpush.bf16.msra.mxu0 %v5038
        %6110 = vmatpush.bf16.msra.mxu0 %v5036
        %6111 = vmatmul.bf16.gmra.mxu0 %v3565
        %v6112 = vpop.f32.mrf.mxu0
        %v6113 = vadd.f32 %v6099, %v6112
        %v6114 = vpop.f32.mrf.mxu0
        %v6115 = vadd.f32 %v6101, %v6114
        %6116 = vdwg.mxu0
        %6117 = vmatpush.bf16.msra.mxu0 %v5066
        %6118 = vmatpush.bf16.msra.mxu0 %v5064
        %6119 = vmatpush.bf16.msra.mxu0 %v5062
        %6120 = vmatpush.bf16.msra.mxu0 %v5060
        %6121 = vmatpush.bf16.msra.mxu0 %v5058
        %6122 = vmatpush.bf16.msra.mxu0 %v5056
        %6123 = vmatpush.bf16.msra.mxu0 %v5054
        %6124 = vmatpush.bf16.msra.mxu0 %v5052
        %6125 = vmatmul.bf16.gmra.mxu0 %v3566
        %v6126 = vpop.f32.mrf.mxu0
        %v6127 = vadd.f32 %v6113, %v6126
        %v6128 = vpop.f32.mrf.mxu0
        %v6129 = vadd.f32 %v6115, %v6128
        %6130 = vdwg.mxu0
        %6131 = vmatpush.bf16.msra.mxu0 %v5082
        %6132 = vmatpush.bf16.msra.mxu0 %v5080
        %6133 = vmatpush.bf16.msra.mxu0 %v5078
        %6134 = vmatpush.bf16.msra.mxu0 %v5076
        %6135 = vmatpush.bf16.msra.mxu0 %v5074
        %6136 = vmatpush.bf16.msra.mxu0 %v5072
        %6137 = vmatpush.bf16.msra.mxu0 %v5070
        %6138 = vmatpush.bf16.msra.mxu0 %v5068
        %6139 = vmatmul.bf16.gmra.mxu0 %v3567
        %v6140 = vpop.f32.mrf.mxu0
        %v6141 = vadd.f32 %v6127, %v6140
        %v6142 = vpop.f32.mrf.mxu0
        %v6143 = vadd.f32 %v6129, %v6142
        %6144 = vdwg.mxu0
        %6145 = vmatpush.bf16.msra.mxu0 %v5098
        %6146 = vmatpush.bf16.msra.mxu0 %v5096
        %6147 = vmatpush.bf16.msra.mxu0 %v5094
        %6148 = vmatpush.bf16.msra.mxu0 %v5092
        %6149 = vmatpush.bf16.msra.mxu0 %v5090
        %6150 = vmatpush.bf16.msra.mxu0 %v5088
        %6151 = vmatpush.bf16.msra.mxu0 %v5086
        %6152 = vmatpush.bf16.msra.mxu0 %v5084
        %6153 = vmatmul.bf16.gmra.mxu0 %v3568
        %v6154 = vpop.f32.mrf.mxu0
        %v6155 = vadd.f32 %v6141, %v6154
        %v6156 = vpop.f32.mrf.mxu0
        %v6157 = vadd.f32 %v6143, %v6156
        %6158 = vdwg.mxu0
        %6159 = vmatpush.bf16.msra.mxu0 %v5114
        %6160 = vmatpush.bf16.msra.mxu0 %v5112
        %6161 = vmatpush.bf16.msra.mxu0 %v5110
        %6162 = vmatpush.bf16.msra.mxu0 %v5108
        %6163 = vmatpush.bf16.msra.mxu0 %v5106
        %6164 = vmatpush.bf16.msra.mxu0 %v5104
        %6165 = vmatpush.bf16.msra.mxu0 %v5102
        %6166 = vmatpush.bf16.msra.mxu0 %v5100
        %6167 = vmatmul.bf16.gmra.mxu0 %v3569
        %v6168 = vpop.f32.mrf.mxu0
        %v6169 = vadd.f32 %v6155, %v6168
        %v6170 = vpop.f32.mrf.mxu0
        %v6171 = vadd.f32 %v6157, %v6170
        %6172 = vdwg.mxu0
        %6173 = vmatpush.bf16.msra.mxu0 %v5130
        %6174 = vmatpush.bf16.msra.mxu0 %v5128
        %6175 = vmatpush.bf16.msra.mxu0 %v5126
        %6176 = vmatpush.bf16.msra.mxu0 %v5124
        %6177 = vmatpush.bf16.msra.mxu0 %v5122
        %6178 = vmatpush.bf16.msra.mxu0 %v5120
        %6179 = vmatpush.bf16.msra.mxu0 %v5118
        %6180 = vmatpush.bf16.msra.mxu0 %v5116
        %6181 = vmatmul.bf16.gmra.mxu0 %v3570
        %v6182 = vpop.f32.mrf.mxu0
        %v6183 = vadd.f32 %v6169, %v6182
        %v6184 = vpop.f32.mrf.mxu0
        %v6185 = vadd.f32 %v6171, %v6184
        %6186 = vdwg.mxu0
        %v6187 = vld [vmem:[#allocation3] sm:$0xff]
        %v6188 = vld [vmem:[#allocation3 + $0x8] sm:$0xff]
        %v6189 = vpack.c.bf16 %v5849, %v5847
        %v6190 = vpack.c.bf16 %v6185, %v6183
        %v6191 = vld [vmem:[%s562] sm:$0xf]
        %v6192 = vld [vmem:[%s562 + $0x4] sm:$0xf]
        %v6193 = vld [vmem:[%s562 + $0x8] sm:$0xf]
        %v6194 = vld [vmem:[%s562 + $0xc] sm:$0xf]
        %v6195 = vld [vmem:[%s562 + $0x10] sm:$0xf]
        %v6196 = vld [vmem:[%s562 + $0x14] sm:$0xf]
        %v6197 = vld [vmem:[%s562 + $0x18] sm:$0xf]
        %v6198 = vld [vmem:[%s562 + $0x1c] sm:$0xf]
        %v6199 = vld [vmem:[%s562 + $0x20] sm:$0xf]
        %v6200 = vld [vmem:[%s562 + $0x24] sm:$0xf]
        %v6201 = vld [vmem:[%s562 + $0x28] sm:$0xf]
        %v6202 = vld [vmem:[%s562 + $0x2c] sm:$0xf]
        %v6203 = vld [vmem:[%s562 + $0x30] sm:$0xf]
        %v6204 = vld [vmem:[%s562 + $0x34] sm:$0xf]
        %v6205 = vld [vmem:[%s562 + $0x38] sm:$0xf]
        %v6206 = vld [vmem:[%s562 + $0x3c] sm:$0xf]
        %v6207 = vld [vmem:[%s562 + $0x40] sm:$0xf]
        %v6208 = vld [vmem:[%s562 + $0x44] sm:$0xf]
        %v6209 = vld [vmem:[%s562 + $0x48] sm:$0xf]
        %v6210 = vld [vmem:[%s562 + $0x4c] sm:$0xf]
        %v6211 = vld [vmem:[%s562 + $0x50] sm:$0xf]
        %v6212 = vld [vmem:[%s562 + $0x54] sm:$0xf]
        %v6213 = vld [vmem:[%s562 + $0x58] sm:$0xf]
        %v6214 = vld [vmem:[%s562 + $0x5c] sm:$0xf]
        %v6215 = vld [vmem:[%s562 + $0x60] sm:$0xf]
        %v6216 = vld [vmem:[%s562 + $0x64] sm:$0xf]
        %v6217 = vld [vmem:[%s562 + $0x68] sm:$0xf]
        %v6218 = vld [vmem:[%s562 + $0x6c] sm:$0xf]
        %v6219 = vld [vmem:[%s562 + $0x70] sm:$0xf]
        %v6220 = vld [vmem:[%s562 + $0x74] sm:$0xf]
        %v6221 = vld [vmem:[%s562 + $0x78] sm:$0xf]
        %v6222 = vld [vmem:[%s562 + $0x7c] sm:$0xf]
        %v6255 = vunpack.c.l.b16 %v6191
        %v6256 = vunpack.c.l.b16 %v6192
        %v6257 = vunpack.c.l.b16 %v6193
        %v6258 = vunpack.c.l.b16 %v6194
        %v6259 = vunpack.c.l.b16 %v6195
        %v6260 = vunpack.c.l.b16 %v6196
        %v6261 = vunpack.c.l.b16 %v6197
        %v6262 = vunpack.c.l.b16 %v6198
        %v6263 = vunpack.c.l.b16 %v6199
        %v6264 = vunpack.c.l.b16 %v6200
        %v6265 = vunpack.c.l.b16 %v6201
        %v6266 = vunpack.c.l.b16 %v6202
        %v6267 = vunpack.c.l.b16 %v6203
        %v6268 = vunpack.c.l.b16 %v6204
        %v6269 = vunpack.c.l.b16 %v6205
        %v6270 = vunpack.c.l.b16 %v6206
        %v6271 = vunpack.c.l.b16 %v6207
        %v6272 = vunpack.c.l.b16 %v6208
        %v6273 = vunpack.c.l.b16 %v6209
        %v6274 = vunpack.c.l.b16 %v6210
        %v6275 = vunpack.c.l.b16 %v6211
        %v6276 = vunpack.c.l.b16 %v6212
        %v6277 = vunpack.c.l.b16 %v6213
        %v6278 = vunpack.c.l.b16 %v6214
        %v6279 = vunpack.c.l.b16 %v6215
        %v6280 = vunpack.c.l.b16 %v6216
        %v6281 = vunpack.c.l.b16 %v6217
        %v6282 = vunpack.c.l.b16 %v6218
        %v6283 = vunpack.c.l.b16 %v6219
        %v6284 = vunpack.c.l.b16 %v6220
        %v6285 = vunpack.c.l.b16 %v6221
        %v6286 = vunpack.c.l.b16 %v6222
        %v6287 = vpack.c.b16 %v6256, %v6255
        %v6288 = vpack.c.b16 %v6258, %v6257
        %v6289 = vpack.c.b16 %v6260, %v6259
        %v6290 = vpack.c.b16 %v6262, %v6261
        %v6291 = vpack.c.b16 %v6264, %v6263
        %v6292 = vpack.c.b16 %v6266, %v6265
        %v6293 = vpack.c.b16 %v6268, %v6267
        %v6294 = vpack.c.b16 %v6270, %v6269
        %v6295 = vpack.c.b16 %v6272, %v6271
        %v6296 = vpack.c.b16 %v6274, %v6273
        %v6297 = vpack.c.b16 %v6276, %v6275
        %v6298 = vpack.c.b16 %v6278, %v6277
        %v6299 = vpack.c.b16 %v6280, %v6279
        %v6300 = vpack.c.b16 %v6282, %v6281
        %v6301 = vpack.c.b16 %v6284, %v6283
        %v6302 = vpack.c.b16 %v6286, %v6285
        %6319 = vmatpush.bf16.msra.mxu0 %v6294
        %6320 = vmatpush.bf16.msra.mxu0 %v6293
        %6321 = vmatpush.bf16.msra.mxu0 %v6292
        %6322 = vmatpush.bf16.msra.mxu0 %v6291
        %6323 = vmatpush.bf16.msra.mxu0 %v6290
        %6324 = vmatpush.bf16.msra.mxu0 %v6289
        %6325 = vmatpush.bf16.msra.mxu0 %v6288
        %6326 = vmatpush.bf16.msra.mxu0 %v6287
        %6327 = vmatmul.bf16.gmra.mxu0 %v6189
        %v6328 = vpop.f32.mrf.mxu0
        %v6329 = vadd.f32 0.0, %v6328
        %v6330 = vpop.f32.mrf.mxu0
        %v6331 = vadd.f32 0.0, %v6330
        %6332 = vdwg.mxu0
        %6333 = vmatpush.bf16.msra.mxu0 %v6302
        %6334 = vmatpush.bf16.msra.mxu0 %v6301
        %6335 = vmatpush.bf16.msra.mxu0 %v6300
        %6336 = vmatpush.bf16.msra.mxu0 %v6299
        %6337 = vmatpush.bf16.msra.mxu0 %v6298
        %6338 = vmatpush.bf16.msra.mxu0 %v6297
        %6339 = vmatpush.bf16.msra.mxu0 %v6296
        %6340 = vmatpush.bf16.msra.mxu0 %v6295
        %6341 = vmatmul.bf16.gmra.mxu0 %v6190
        %v6342 = vpop.f32.mrf.mxu0
        %v6343 = vadd.f32 %v6329, %v6342
        %v6344 = vpop.f32.mrf.mxu0
        %v6345 = vadd.f32 %v6331, %v6344
        %6346 = vdwg.mxu0
        %v6347 = vadd.f32 %v6187, %v6343
        %v6348 = vadd.f32 %v6188, %v6345
        %vm6349 = vcmask 64512
        %6350 = vst.msk [vmem:[#allocation3] sm:$0xff] %vm6349, %v6347
        %6351 = vst.msk [vmem:[#allocation3 + $0x8] sm:$0xff] %vm6349, %v6348
        %p6352 = scmp.eq.s32.totalorder %s27, 3
        // Predicated region
        $region105: #{tpu_custom_call.1} parent=63 // pred_check
          %p6353 = pneg %p6352
        $region106: #{tpu_custom_call.1} parent=63 // pred_check_branch
          %6355 = sbr.rel (%p6353) target = $region108
        $region107: #{tpu_custom_call.1} parent=63 // pred_region
          %v6356 = vld [vmem:[#allocation3] sm:$0xff]
          %v6357 = vld [vmem:[#allocation3 + $0x8] sm:$0xff]
          %6360 = vrot.lane.b32.xlu0 %v6356, 127
          %v6361 = vpop.permute.xlu0 %6360
          %6362 = vrot.lane.b32.xlu0 %v6357, 127
          %v6363 = vpop.permute.xlu0 %6362
          %v6366 = vmax.f32 %v6356, %v6361
          %v6367 = vmax.f32 %v6357, %v6363
          %v6368 = vsub.f32 %v6356, %v6366
          %v6369 = vsub.f32 %v6357, %v6367
          %v6370 = vmul.f32 %v6368, 1.442695
          %v6371 = vpow.pop %v6370
          %v6372 = vmul.f32 %v6369, 1.442695
          %v6373 = vpow.pop %v6372
          %6376 = vrot.lane.b32.xlu0 %v6366, 1
          %v6377 = vpop.permute.xlu0 %6376
          %6378 = vrot.lane.b32.xlu0 %v6367, 1
          %v6379 = vpop.permute.xlu0 %6378
          %v6382 = vsub.f32 %v6356, %v6377
          %v6383 = vsub.f32 %v6357, %v6379
          %v6384 = vmul.f32 %v6382, 1.442695
          %v6385 = vpow.pop %v6384
          %v6386 = vmul.f32 %v6383, 1.442695
          %v6387 = vpow.pop %v6386
          %6390 = vrot.lane.b32.xlu0 %v6385, 127
          %v6391 = vpop.permute.xlu0 %6390
          %6392 = vrot.lane.b32.xlu0 %v6387, 127
          %v6393 = vpop.permute.xlu0 %6392
          %v6396 = vadd.f32 %v6371, %v6391
          %v6397 = vadd.f32 %v6373, %v6393
          %v6398 = vlog2.pop %v6396
          %v6399 = vmul.f32 %v6398, 0.6931472
          %v6400 = vlog2.pop %v6397
          %v6401 = vmul.f32 %v6400, 0.6931472
          %v6402 = vadd.f32 %v6366, %v6399
          %v6403 = vadd.f32 %v6367, %v6401
          %6406 = vrot.lane.b32.xlu0 %v6402, 1
          %v6407 = vpop.permute.xlu0 %6406
          %6408 = vrot.lane.b32.xlu0 %v6403, 1
          %v6409 = vpop.permute.xlu0 %6408
          %v6412 = vsub.f32 %v6356, %v6407
          %v6413 = vsub.f32 %v6357, %v6409
          %v6414 = vlaneseq
          %v6415 = vand.u32 %v6414, 127
          %vm6416 = vcmp.eq.s32.totalorder %v6415, 0
          %vm6417 = vcmp.eq.s32.totalorder %v6415, 1
          %6419 = vset.pattern.permute.xlu0 3
          %6420 = vperm.xlu0 %6419, %v6412
          %v6421 = vpop.permute.xlu0 %6420
          %6424 = vset.pattern.permute.xlu0 3
          %6425 = vperm.xlu0 %6424, %v6413
          %v6426 = vpop.permute.xlu0 %6425
          %v6428 = vsel %vm6417, %v6421, 0.0
          %v6429 = vsel %vm6417, %v6426, 0.0
          %6430 = vset.pattern.permute.xlu0 1
          %6431 = vperm.xlu0 %6430, %v6412
          %v6432 = vpop.permute.xlu0 %6431
          %6434 = vset.pattern.permute.xlu0 1
          %6435 = vperm.xlu0 %6434, %v6413
          %v6436 = vpop.permute.xlu0 %6435
          %v6438 = vsel %vm6416, %v6432, %v6428
          %v6439 = vsel %vm6416, %v6436, %v6429
          %6440 = vst [vmem:[#allocation18] sm:$0xff] %v6438
          %6441 = vst [vmem:[#allocation18 + $0x8] sm:$0xff] %v6439
        $region108: #{tpu_custom_call.1} parent=63 // pred_fallthru
          _
        // Predicated region
        $region109: #{tpu_custom_call.1} parent=63 // pred_check
          %p6442 = pneg %p286
        $region110: #{tpu_custom_call.1} parent=63 // pred_check_branch
          %6444 = sbr.rel (%p6442) target = $region112
        $region111: #{tpu_custom_call.1} parent=63 // pred_region
          %6446 = vsyncadd [#allocation6], 0
          %s6447 = sshll.u32 [#allocation18], 4
          %s6448 = int_to_ptr.vmem [resolvable:$true] %s6447
          %s6449 = sshll.u32 %s11, 4
          %s6450 = int_to_ptr.hbm [resolvable:$true] %s6449
          %6455 = dma.vmem_to_hbm [thread:$0]  %s6448, 256, %s6450, [#allocation6], 128, 128, 8
        $region112: #{tpu_custom_call.1} parent=63 // pred_fallthru
          _
        // Predicated region
        $region113: #{tpu_custom_call.1} parent=63 // pred_check
          %p6456 = pneg %p286
        $region114: #{tpu_custom_call.1} parent=63 // pred_check_branch
          %6458 = sbr.rel (%p6456) target = $region116
        $region115: #{tpu_custom_call.1} parent=63 // pred_region
          %6460 = dma.done [#allocation6], 256
        $region116: #{tpu_custom_call.1} parent=63 // pred_fallthru
          _
      $region64: #{tpu_custom_call.1} parent=5 // pred_fallthru
        _
      %p6461 = scmp.le.s32.totalorder 2, %s22
      // Predicated region
      $region117: #{tpu_custom_call.1} parent=5 // pred_check
        %p6462 = pneg %p6461
      $region118: #{tpu_custom_call.1} parent=5 // pred_check_branch
        %6464 = sbr.rel (%p6462) target = $region120
      $region119: #{tpu_custom_call.1} parent=5 // pred_region
        %s6465 = ssub.s32 %s22, 2
      $region120: #{tpu_custom_call.1} parent=5 // pred_fallthru
        _
    $region6: #{tpu_custom_call.1} parent=1 // loop_footer
      %s26 = sadd.s32 1, %s22
    $region7: #{tpu_custom_call.1} parent=1 // loop_footer_branch
      %21 = sbr.rel target = $region3
    $region8: #{tpu_custom_call.1} parent=1 // loop_exit
      _
    %6466 = vsyncpa [#allocation5], 1
    %s6467 = scalar_lea.sflag [#allocation5], 1
    %6468 = vsyncpa %s6467, 1
    %6469 = vsyncpa [#allocation8], 1
    %6470 = vsyncpa [#allocation11], 1
    %6471 = vsyncpa [#allocation14], 1
    %6472 = vsyncpa [#allocation6], 1
    %s6473 = scalar_lea.sflag [#allocation6], 1
    %6474 = vsyncpa %s6473, 1

</llo_original>
